<compile_context>
chip_gen: v7x
topology: tpu7x:2x2x1
jax: 0.10.0
libtpu: 0.0.40
codegen_flags: <defaults>
</compile_context>

<pallas_src>
import jax
import jax.numpy as jnp
from jax.experimental import pallas as pl
from jax.experimental.pallas import tpu as pltpu


# ----------------------------- Pallas kernel --------------------------------

def attention_kernel(x2d_ref,
                     wih_f_ref, whh_f_ref, bih_f_ref, bhh_f_ref,
                     wih_b_ref, whh_b_ref, bih_b_ref, bhh_b_ref,
                     w_attn_ref, b_attn_ref,
                     w_comb_ref, b_comb_ref,
                     w_out_ref, b_out_ref,
                     out_ref, hidden_ref, attnw_ref,
                     gru_out_ref):
    B = hidden_ref.shape[0]
    T = attnw_ref.shape[1]
    H = whh_f_ref.shape[0]                       # whh_T is (H, 3H)

    x2d = x2d_ref[...].astype(jnp.float32)       # (T*B, I), rows ordered (t, b)

    # ---- hoisted input projection: one matmul per direction over all T*B ----
    gi_f_all = jnp.dot(x2d, wih_f_ref[...],
                       preferred_element_type=jnp.float32) + bih_f_ref[...]   # (T*B, 3H)
    gi_b_all = jnp.dot(x2d, wih_b_ref[...],
                       preferred_element_type=jnp.float32) + bih_b_ref[...]   # (T*B, 3H)

    whh_f = whh_f_ref[...]; bhh_f = bhh_f_ref[...]
    whh_b = whh_b_ref[...]; bhh_b = bhh_b_ref[...]

    def gates(gi, gh, h_prev):
        # PyTorch gate order in the stacked weights: [r, z, n]
        i_r, i_z, i_n = gi[:, 0:H], gi[:, H:2 * H], gi[:, 2 * H:3 * H]
        h_r, h_z, h_n = gh[:, 0:H], gh[:, H:2 * H], gh[:, 2 * H:3 * H]
        r = jax.nn.sigmoid(i_r + h_r)
        z = jax.nn.sigmoid(i_z + h_z)
        n = jnp.tanh(i_n + r * h_n)
        return (1.0 - z) * n + z * h_prev

    # ---- bidirectional single-layer GRU, fwd/bwd interleaved, unrolled T ----
    # (dropout=0.3 in nn.GRU is a no-op for n_layers=1)
    h_f = jnp.zeros((B, H), jnp.float32)
    h_b = jnp.zeros((B, H), jnp.float32)
    for t in range(T):
        tb = T - 1 - t
        # recurrent matmuls for both directions issued back-to-back
        gh_f = jnp.dot(h_f, whh_f, preferred_element_type=jnp.float32) + bhh_f
        gh_b = jnp.dot(h_b, whh_b, preferred_element_type=jnp.float32) + bhh_b
        h_f = gates(gi_f_all[t * B:(t + 1) * B, :], gh_f, h_f)
        h_b = gates(gi_b_all[tb * B:(tb + 1) * B, :], gh_b, h_b)
        # per-timestep GRU outputs go straight to VMEM scratch (bounds live ranges)
        gru_out_ref[:, t, 0:H] = h_f
        gru_out_ref[:, tb, H:2 * H] = h_b

    # hidden = cat(hidden[0], hidden[1], dim=1): (B, 2H)
    hidden = jnp.concatenate([h_f, h_b], axis=-1)

    out_all = gru_out_ref[...]                   # (B, T, 2H) == output.transpose(0,1)

    w_attn = w_attn_ref[...]; b_attn = b_attn_ref[...]

    # attn_weights = attn(hidden): (B, T)
    a1 = jnp.dot(hidden, w_attn, preferred_element_type=jnp.float32) + b_attn
    # bmm(a1.unsqueeze(1), output).squeeze(1): single batched reduction over T
    a2 = jnp.einsum('bqt,btk->bqk', a1[:, None, :], out_all,
                    preferred_element_type=jnp.float32)[:, 0, :]        # (B, 2H)
    # attn_weights = softmax(attn(a2)) over last dim
    logits = jnp.dot(a2, w_attn, preferred_element_type=jnp.float32) + b_attn
    attn_weights = jax.nn.softmax(logits, axis=-1)                      # (B, T)
    # attn_applied = bmm(attn_weights.unsqueeze(1), output).squeeze(1)
    attn_applied = jnp.einsum('bqt,btk->bqk', attn_weights[:, None, :], out_all,
                              preferred_element_type=jnp.float32)[:, 0, :]

    # attn_combine -> relu -> out
    comb = jnp.dot(attn_applied, w_comb_ref[...],
                   preferred_element_type=jnp.float32) + b_comb_ref[...]
    comb = jnp.maximum(comb, 0.0)
    final = jnp.dot(comb, w_out_ref[...],
                    preferred_element_type=jnp.float32) + b_out_ref[...]

    out_ref[...] = final.astype(out_ref.dtype)
    hidden_ref[...] = hidden.astype(hidden_ref.dtype)
    attnw_ref[...] = attn_weights.astype(attnw_ref.dtype)


# ------------------------------- wrapper -------------------------------------

def attention_forward(x, params):
    T, B, I = x.shape
    H = params["whh_f"].shape[0]
    O = params["w_out"].shape[1]

    # Flatten (T, B, I) -> (T*B, I) in XLA so the kernel's input projection is
    # one well-shaped matmul per direction (rows ordered t-major).
    x2d = x.reshape(T * B, I)

    args = (x2d,
            params["wih_f"], params["whh_f"], params["bih_f"], params["bhh_f"],
            params["wih_b"], params["whh_b"], params["bih_b"], params["bhh_b"],
            params["w_attn"], params["b_attn"],
            params["w_comb"], params["b_comb"],
            params["w_out"], params["b_out"])

    vmem = pl.BlockSpec(memory_space=pltpu.MemorySpace.VMEM)
    out_shape = (
        jax.ShapeDtypeStruct((B, O), jnp.float32),        # output
        jax.ShapeDtypeStruct((B, 2 * H), jnp.float32),    # hidden (concatenated)
        jax.ShapeDtypeStruct((B, T), jnp.float32),        # attn_weights
    )
    return pl.pallas_call(
        attention_kernel,
        out_shape=out_shape,
        in_specs=[vmem] * len(args),
        out_specs=(vmem, vmem, vmem),
        scratch_shapes=[pltpu.VMEM((B, T, 2 * H), jnp.float32)],   # per-step GRU outputs
        compiler_params=pltpu.CompilerParams(vmem_limit_bytes=32 * 1024 * 1024),
    )(*args)


# --------------------------- parameter construction --------------------------

def make_params(key, input_size, hidden_size, output_size, max_length):
    H, I, T, O = hidden_size, input_size, max_length, output_size
    bound = 1.0 / jnp.sqrt(jnp.float32(H))
    keys = jax.random.split(key, 16)

    def u(k, shape):
        return jax.random.uniform(k, shape, jnp.float32, -bound, bound)

    # GRU weights stored pre-transposed: (in, 3H) / (H, 3H); biases as (1, 3H)
    params = {
        "wih_f": u(keys[0], (I, 3 * H)), "whh_f": u(keys[1], (H, 3 * H)),
        "bih_f": u(keys[2], (1, 3 * H)), "bhh_f": u(keys[3], (1, 3 * H)),
        "wih_b": u(keys[4], (I, 3 * H)), "whh_b": u(keys[5], (H, 3 * H)),
        "bih_b": u(keys[6], (1, 3 * H)), "bhh_b": u(keys[7], (1, 3 * H)),
        # Linear layers, pre-transposed to (in, out)
        "w_attn": u(keys[8], (2 * H, T)), "b_attn": u(keys[9], (1, T)),
        "w_comb": u(keys[10], (2 * H, H)), "b_comb": u(keys[11], (1, H)),
        "w_out": u(keys[12], (H, O)), "b_out": u(keys[13], (1, O)),
    }
    return params


# ------------------------------ pure-JAX reference ---------------------------

def reference_forward(x, p):
    T, B, _ = x.shape
    H = p["whh_f"].shape[0]

    def cell(x_t, h, w_ih, w_hh, b_ih, b_hh):
        gi = x_t @ w_ih + b_ih
        gh = h @ w_hh + b_hh
        i_r, i_z, i_n = gi[:, :H], gi[:, H:2 * H], gi[:, 2 * H:]
        h_r, h_z, h_n = gh[:, :H], gh[:, H:2 * H], gh[:, 2 * H:]
        r = jax.nn.sigmoid(i_r + h_r)
        z = jax.nn.sigmoid(i_z + h_z)
        n = jnp.tanh(i_n + r * h_n)
        return (1.0 - z) * n + z * h

    h = jnp.zeros((B, H), jnp.float32)
    out_f = []
    for t in range(T):
        h = cell(x[t], h, p["wih_f"], p["whh_f"], p["bih_f"], p["bhh_f"])
        out_f.append(h)
    hf = h
    h = jnp.zeros((B, H), jnp.float32)
    out_b = [None] * T
    for t in range(T - 1, -1, -1):
        h = cell(x[t], h, p["wih_b"], p["whh_b"], p["bih_b"], p["bhh_b"])
        out_b[t] = h
    hb = h

    output = jnp.stack([jnp.concatenate([out_f[t], out_b[t]], -1) for t in range(T)], 1)  # (B,T,2H)
    hidden = jnp.concatenate([hf, hb], -1)
    a1 = hidden @ p["w_attn"] + p["b_attn"]
    a2 = jnp.einsum("bt,btk->bk", a1, output)
    aw = jax.nn.softmax(a2 @ p["w_attn"] + p["b_attn"], axis=-1)
    applied = jnp.einsum("bt,btk->bk", aw, output)
    comb = jnp.maximum(applied @ p["w_comb"] + p["b_comb"], 0.0)
    out = comb @ p["w_out"] + p["b_out"]
    return out, hidden, aw


# ---------------------------------- main --------------------------------------

if __name__ == "__main__":
    T = 8            # max_length == sequence length (required by the bmm shapes)
    B = 2            # batch
    INPUT = 16       # input_size
    HIDDEN = 32      # hidden_size
    OUTPUT = 5       # output_size

    key = jax.random.PRNGKey(0)
    kx, kp = jax.random.split(key)
    x = jax.random.normal(kx, (T, B, INPUT), jnp.float32)
    params = make_params(kp, INPUT, HIDDEN, OUTPUT, T)

    out, hidden, attn_w = attention_forward(x, params)
    jax.block_until_ready((out, hidden, attn_w))

    ref_out, ref_hidden, ref_aw = reference_forward(x, params)
    assert out.shape == (B, OUTPUT)
    assert hidden.shape == (B, 2 * HIDDEN)
    assert attn_w.shape == (B, T)
    assert jnp.allclose(out, ref_out, atol=2e-3, rtol=2e-3)
    assert jnp.allclose(hidden, ref_hidden, atol=2e-3, rtol=2e-3)
    assert jnp.allclose(attn_w, ref_aw, atol=2e-3, rtol=2e-3)

    print("KERNEL_OK")
</pallas_src>

<mosaic_0001>
module attributes {stable_mosaic.version = 11 : i64} {
  func.func @attention_kernel(%arg0: memref<16x16xf32, #tpu.memory_space<vmem>>, %arg1: memref<16x96xf32, #tpu.memory_space<vmem>>, %arg2: memref<32x96xf32, #tpu.memory_space<vmem>>, %arg3: memref<1x96xf32, #tpu.memory_space<vmem>>, %arg4: memref<1x96xf32, #tpu.memory_space<vmem>>, %arg5: memref<16x96xf32, #tpu.memory_space<vmem>>, %arg6: memref<32x96xf32, #tpu.memory_space<vmem>>, %arg7: memref<1x96xf32, #tpu.memory_space<vmem>>, %arg8: memref<1x96xf32, #tpu.memory_space<vmem>>, %arg9: memref<64x8xf32, #tpu.memory_space<vmem>>, %arg10: memref<1x8xf32, #tpu.memory_space<vmem>>, %arg11: memref<64x32xf32, #tpu.memory_space<vmem>>, %arg12: memref<1x32xf32, #tpu.memory_space<vmem>>, %arg13: memref<32x5xf32, #tpu.memory_space<vmem>>, %arg14: memref<1x5xf32, #tpu.memory_space<vmem>>, %arg15: memref<2x5xf32, #tpu.memory_space<vmem>>, %arg16: memref<2x64xf32, #tpu.memory_space<vmem>>, %arg17: memref<2x8xf32, #tpu.memory_space<vmem>>, %arg18: memref<2x8x64xf32, #tpu.memory_space<vmem>>) attributes {dimension_semantics = [], scalar_prefetch = 0 : i64, scratch_operands = 1 : i64, tpu.core_type = #tpu.core_type<tc>} {
    %c0 = arith.constant 0 : index
    %c0_0 = arith.constant 0 : index
    %0 = vector.load %arg0[%c0, %c0_0] : memref<16x16xf32, #tpu.memory_space<vmem>>, vector<16x16xf32>
    %c0_1 = arith.constant 0 : index
    %c0_2 = arith.constant 0 : index
    %1 = vector.load %arg1[%c0_1, %c0_2] : memref<16x96xf32, #tpu.memory_space<vmem>>, vector<16x96xf32>
    %cst = arith.constant dense<0.000000e+00> : vector<16x96xf32>
    %2 = tpu.matmul %0, %1, %cst {dimension_numbers = #tpu.dot_dimension_numbers<[1], [0], [0], [1], [0, 0, 1, 1], [], []>} : vector<16x16xf32>, vector<16x96xf32>, vector<16x96xf32> -> vector<16x96xf32>
    %c0_3 = arith.constant 0 : index
    %c0_4 = arith.constant 0 : index
    %3 = vector.load %arg3[%c0_3, %c0_4] : memref<1x96xf32, #tpu.memory_space<vmem>>, vector<1x96xf32>
    %4 = vector.broadcast %3 : vector<1x96xf32> to vector<16x96xf32>
    %5 = arith.addf %2, %4 : vector<16x96xf32>
    %c0_5 = arith.constant 0 : index
    %c0_6 = arith.constant 0 : index
    %6 = vector.load %arg5[%c0_5, %c0_6] : memref<16x96xf32, #tpu.memory_space<vmem>>, vector<16x96xf32>
    %cst_7 = arith.constant dense<0.000000e+00> : vector<16x96xf32>
    %7 = tpu.matmul %0, %6, %cst_7 {dimension_numbers = #tpu.dot_dimension_numbers<[1], [0], [0], [1], [0, 0, 1, 1], [], []>} : vector<16x16xf32>, vector<16x96xf32>, vector<16x96xf32> -> vector<16x96xf32>
    %c0_8 = arith.constant 0 : index
    %c0_9 = arith.constant 0 : index
    %8 = vector.load %arg7[%c0_8, %c0_9] : memref<1x96xf32, #tpu.memory_space<vmem>>, vector<1x96xf32>
    %9 = vector.broadcast %8 : vector<1x96xf32> to vector<16x96xf32>
    %10 = arith.addf %7, %9 : vector<16x96xf32>
    %c0_10 = arith.constant 0 : index
    %c0_11 = arith.constant 0 : index
    %11 = vector.load %arg2[%c0_10, %c0_11] : memref<32x96xf32, #tpu.memory_space<vmem>>, vector<32x96xf32>
    %c0_12 = arith.constant 0 : index
    %c0_13 = arith.constant 0 : index
    %12 = vector.load %arg4[%c0_12, %c0_13] : memref<1x96xf32, #tpu.memory_space<vmem>>, vector<1x96xf32>
    %c0_14 = arith.constant 0 : index
    %c0_15 = arith.constant 0 : index
    %13 = vector.load %arg6[%c0_14, %c0_15] : memref<32x96xf32, #tpu.memory_space<vmem>>, vector<32x96xf32>
    %c0_16 = arith.constant 0 : index
    %c0_17 = arith.constant 0 : index
    %14 = vector.load %arg8[%c0_16, %c0_17] : memref<1x96xf32, #tpu.memory_space<vmem>>, vector<1x96xf32>
    %cst_18 = arith.constant 0.000000e+00 : f32
    %15 = vector.broadcast %cst_18 : f32 to vector<2x32xf32>
    %cst_19 = arith.constant 0.000000e+00 : f32
    %16 = vector.broadcast %cst_19 : f32 to vector<2x32xf32>
    %cst_20 = arith.constant dense<0.000000e+00> : vector<2x96xf32>
    %17 = tpu.matmul %15, %11, %cst_20 {dimension_numbers = #tpu.dot_dimension_numbers<[1], [0], [0], [1], [0, 0, 1, 1], [], []>} : vector<2x32xf32>, vector<32x96xf32>, vector<2x96xf32> -> vector<2x96xf32>
    %18 = vector.broadcast %12 : vector<1x96xf32> to vector<2x96xf32>
    %19 = arith.addf %17, %18 : vector<2x96xf32>
    %cst_21 = arith.constant dense<0.000000e+00> : vector<2x96xf32>
    %20 = tpu.matmul %16, %13, %cst_21 {dimension_numbers = #tpu.dot_dimension_numbers<[1], [0], [0], [1], [0, 0, 1, 1], [], []>} : vector<2x32xf32>, vector<32x96xf32>, vector<2x96xf32> -> vector<2x96xf32>
    %21 = vector.broadcast %14 : vector<1x96xf32> to vector<2x96xf32>
    %22 = arith.addf %20, %21 : vector<2x96xf32>
    %23 = vector.extract_strided_slice %5 {offsets = [0, 0], sizes = [2, 96], strides = [1, 1]} : vector<16x96xf32> to vector<2x96xf32>
    %24 = vector.extract_strided_slice %23 {offsets = [0, 0], sizes = [2, 32], strides = [1, 1]} : vector<2x96xf32> to vector<2x32xf32>
    %25 = vector.extract_strided_slice %23 {offsets = [0, 32], sizes = [2, 32], strides = [1, 1]} : vector<2x96xf32> to vector<2x32xf32>
    %26 = vector.extract_strided_slice %23 {offsets = [0, 64], sizes = [2, 32], strides = [1, 1]} : vector<2x96xf32> to vector<2x32xf32>
    %27 = vector.extract_strided_slice %19 {offsets = [0, 0], sizes = [2, 32], strides = [1, 1]} : vector<2x96xf32> to vector<2x32xf32>
    %28 = vector.extract_strided_slice %19 {offsets = [0, 32], sizes = [2, 32], strides = [1, 1]} : vector<2x96xf32> to vector<2x32xf32>
    %29 = vector.extract_strided_slice %19 {offsets = [0, 64], sizes = [2, 32], strides = [1, 1]} : vector<2x96xf32> to vector<2x32xf32>
    %30 = arith.addf %24, %27 : vector<2x32xf32>
    %31 = arith.negf %30 : vector<2x32xf32>
    %32 = math.exp %31 : vector<2x32xf32>
    %cst_22 = arith.constant 1.000000e+00 : f32
    %33 = vector.broadcast %cst_22 : f32 to vector<2x32xf32>
    %34 = arith.addf %33, %32 : vector<2x32xf32>
    %35 = arith.divf %33, %34 : vector<2x32xf32>
    %36 = arith.addf %25, %28 : vector<2x32xf32>
    %37 = arith.negf %36 : vector<2x32xf32>
    %38 = math.exp %37 : vector<2x32xf32>
    %cst_23 = arith.constant 1.000000e+00 : f32
    %39 = vector.broadcast %cst_23 : f32 to vector<2x32xf32>
    %40 = arith.addf %39, %38 : vector<2x32xf32>
    %41 = arith.divf %39, %40 : vector<2x32xf32>
    %42 = arith.mulf %35, %29 : vector<2x32xf32>
    %43 = arith.addf %26, %42 : vector<2x32xf32>
    %44 = math.tanh %43 : vector<2x32xf32>
    %cst_24 = arith.constant 1.000000e+00 : f32
    %45 = vector.broadcast %cst_24 : f32 to vector<2x32xf32>
    %46 = arith.subf %45, %41 : vector<2x32xf32>
    %47 = arith.mulf %46, %44 : vector<2x32xf32>
    %48 = arith.mulf %41, %15 : vector<2x32xf32>
    %49 = arith.addf %47, %48 : vector<2x32xf32>
    %50 = vector.extract_strided_slice %10 {offsets = [14, 0], sizes = [2, 96], strides = [1, 1]} : vector<16x96xf32> to vector<2x96xf32>
    %51 = vector.extract_strided_slice %50 {offsets = [0, 0], sizes = [2, 32], strides = [1, 1]} : vector<2x96xf32> to vector<2x32xf32>
    %52 = vector.extract_strided_slice %50 {offsets = [0, 32], sizes = [2, 32], strides = [1, 1]} : vector<2x96xf32> to vector<2x32xf32>
    %53 = vector.extract_strided_slice %50 {offsets = [0, 64], sizes = [2, 32], strides = [1, 1]} : vector<2x96xf32> to vector<2x32xf32>
    %54 = vector.extract_strided_slice %22 {offsets = [0, 0], sizes = [2, 32], strides = [1, 1]} : vector<2x96xf32> to vector<2x32xf32>
    %55 = vector.extract_strided_slice %22 {offsets = [0, 32], sizes = [2, 32], strides = [1, 1]} : vector<2x96xf32> to vector<2x32xf32>
    %56 = vector.extract_strided_slice %22 {offsets = [0, 64], sizes = [2, 32], strides = [1, 1]} : vector<2x96xf32> to vector<2x32xf32>
    %57 = arith.addf %51, %54 : vector<2x32xf32>
    %58 = arith.negf %57 : vector<2x32xf32>
    %59 = math.exp %58 : vector<2x32xf32>
    %cst_25 = arith.constant 1.000000e+00 : f32
    %60 = vector.broadcast %cst_25 : f32 to vector<2x32xf32>
    %61 = arith.addf %60, %59 : vector<2x32xf32>
    %62 = arith.divf %60, %61 : vector<2x32xf32>
    %63 = arith.addf %52, %55 : vector<2x32xf32>
    %64 = arith.negf %63 : vector<2x32xf32>
    %65 = math.exp %64 : vector<2x32xf32>
    %cst_26 = arith.constant 1.000000e+00 : f32
    %66 = vector.broadcast %cst_26 : f32 to vector<2x32xf32>
    %67 = arith.addf %66, %65 : vector<2x32xf32>
    %68 = arith.divf %66, %67 : vector<2x32xf32>
    %69 = arith.mulf %62, %56 : vector<2x32xf32>
    %70 = arith.addf %53, %69 : vector<2x32xf32>
    %71 = math.tanh %70 : vector<2x32xf32>
    %cst_27 = arith.constant 1.000000e+00 : f32
    %72 = vector.broadcast %cst_27 : f32 to vector<2x32xf32>
    %73 = arith.subf %72, %68 : vector<2x32xf32>
    %74 = arith.mulf %73, %71 : vector<2x32xf32>
    %75 = arith.mulf %68, %16 : vector<2x32xf32>
    %76 = arith.addf %74, %75 : vector<2x32xf32>
    %c0_28 = arith.constant 0 : index
    %c0_29 = arith.constant 0 : index
    %c0_30 = arith.constant 0 : index
    %77 = vector.load %arg18[%c0_28, %c0_29, %c0_30] : memref<2x8x64xf32, #tpu.memory_space<vmem>>, vector<2x1x32xf32>
    %78 = vector.shape_cast %77 : vector<2x1x32xf32> to vector<2x32xf32>
    %79 = vector.shape_cast %49 : vector<2x32xf32> to vector<2x1x32xf32>
    tpu.vector_store %arg18[%c0_28, %c0_29, %c0_30], %79 {strides = array<i32>} : memref<2x8x64xf32, #tpu.memory_space<vmem>>, vector<2x1x32xf32>,
    %c0_31 = arith.constant 0 : index
    %c7 = arith.constant 7 : index
    %c32 = arith.constant 32 : index
    %80 = vector.load %arg18[%c0_31, %c7, %c32] : memref<2x8x64xf32, #tpu.memory_space<vmem>>, vector<2x1x32xf32>
    %81 = vector.shape_cast %80 : vector<2x1x32xf32> to vector<2x32xf32>
    %82 = vector.shape_cast %76 : vector<2x32xf32> to vector<2x1x32xf32>
    tpu.vector_store %arg18[%c0_31, %c7, %c32], %82 {strides = array<i32>} : memref<2x8x64xf32, #tpu.memory_space<vmem>>, vector<2x1x32xf32>,
    %cst_32 = arith.constant dense<0.000000e+00> : vector<2x96xf32>
    %83 = tpu.matmul %49, %11, %cst_32 {dimension_numbers = #tpu.dot_dimension_numbers<[1], [0], [0], [1], [0, 0, 1, 1], [], []>} : vector<2x32xf32>, vector<32x96xf32>, vector<2x96xf32> -> vector<2x96xf32>
    %84 = vector.broadcast %12 : vector<1x96xf32> to vector<2x96xf32>
    %85 = arith.addf %83, %84 : vector<2x96xf32>
    %cst_33 = arith.constant dense<0.000000e+00> : vector<2x96xf32>
    %86 = tpu.matmul %76, %13, %cst_33 {dimension_numbers = #tpu.dot_dimension_numbers<[1], [0], [0], [1], [0, 0, 1, 1], [], []>} : vector<2x32xf32>, vector<32x96xf32>, vector<2x96xf32> -> vector<2x96xf32>
    %87 = vector.broadcast %14 : vector<1x96xf32> to vector<2x96xf32>
    %88 = arith.addf %86, %87 : vector<2x96xf32>
    %89 = vector.extract_strided_slice %5 {offsets = [2, 0], sizes = [2, 96], strides = [1, 1]} : vector<16x96xf32> to vector<2x96xf32>
    %90 = vector.extract_strided_slice %89 {offsets = [0, 0], sizes = [2, 32], strides = [1, 1]} : vector<2x96xf32> to vector<2x32xf32>
    %91 = vector.extract_strided_slice %89 {offsets = [0, 32], sizes = [2, 32], strides = [1, 1]} : vector<2x96xf32> to vector<2x32xf32>
    %92 = vector.extract_strided_slice %89 {offsets = [0, 64], sizes = [2, 32], strides = [1, 1]} : vector<2x96xf32> to vector<2x32xf32>
    %93 = vector.extract_strided_slice %85 {offsets = [0, 0], sizes = [2, 32], strides = [1, 1]} : vector<2x96xf32> to vector<2x32xf32>
    %94 = vector.extract_strided_slice %85 {offsets = [0, 32], sizes = [2, 32], strides = [1, 1]} : vector<2x96xf32> to vector<2x32xf32>
    %95 = vector.extract_strided_slice %85 {offsets = [0, 64], sizes = [2, 32], strides = [1, 1]} : vector<2x96xf32> to vector<2x32xf32>
    %96 = arith.addf %90, %93 : vector<2x32xf32>
    %97 = arith.negf %96 : vector<2x32xf32>
    %98 = math.exp %97 : vector<2x32xf32>
    %cst_34 = arith.constant 1.000000e+00 : f32
    %99 = vector.broadcast %cst_34 : f32 to vector<2x32xf32>
    %100 = arith.addf %99, %98 : vector<2x32xf32>
    %101 = arith.divf %99, %100 : vector<2x32xf32>
    %102 = arith.addf %91, %94 : vector<2x32xf32>
    %103 = arith.negf %102 : vector<2x32xf32>
    %104 = math.exp %103 : vector<2x32xf32>
    %cst_35 = arith.constant 1.000000e+00 : f32
    %105 = vector.broadcast %cst_35 : f32 to vector<2x32xf32>
    %106 = arith.addf %105, %104 : vector<2x32xf32>
    %107 = arith.divf %105, %106 : vector<2x32xf32>
    %108 = arith.mulf %101, %95 : vector<2x32xf32>
    %109 = arith.addf %92, %108 : vector<2x32xf32>
    %110 = math.tanh %109 : vector<2x32xf32>
    %cst_36 = arith.constant 1.000000e+00 : f32
    %111 = vector.broadcast %cst_36 : f32 to vector<2x32xf32>
    %112 = arith.subf %111, %107 : vector<2x32xf32>
    %113 = arith.mulf %112, %110 : vector<2x32xf32>
    %114 = arith.mulf %107, %49 : vector<2x32xf32>
    %115 = arith.addf %113, %114 : vector<2x32xf32>
    %116 = vector.extract_strided_slice %10 {offsets = [12, 0], sizes = [2, 96], strides = [1, 1]} : vector<16x96xf32> to vector<2x96xf32>
    %117 = vector.extract_strided_slice %116 {offsets = [0, 0], sizes = [2, 32], strides = [1, 1]} : vector<2x96xf32> to vector<2x32xf32>
    %118 = vector.extract_strided_slice %116 {offsets = [0, 32], sizes = [2, 32], strides = [1, 1]} : vector<2x96xf32> to vector<2x32xf32>
    %119 = vector.extract_strided_slice %116 {offsets = [0, 64], sizes = [2, 32], strides = [1, 1]} : vector<2x96xf32> to vector<2x32xf32>
    %120 = vector.extract_strided_slice %88 {offsets = [0, 0], sizes = [2, 32], strides = [1, 1]} : vector<2x96xf32> to vector<2x32xf32>
    %121 = vector.extract_strided_slice %88 {offsets = [0, 32], sizes = [2, 32], strides = [1, 1]} : vector<2x96xf32> to vector<2x32xf32>
    %122 = vector.extract_strided_slice %88 {offsets = [0, 64], sizes = [2, 32], strides = [1, 1]} : vector<2x96xf32> to vector<2x32xf32>
    %123 = arith.addf %117, %120 : vector<2x32xf32>
    %124 = arith.negf %123 : vector<2x32xf32>
    %125 = math.exp %124 : vector<2x32xf32>
    %cst_37 = arith.constant 1.000000e+00 : f32
    %126 = vector.broadcast %cst_37 : f32 to vector<2x32xf32>
    %127 = arith.addf %126, %125 : vector<2x32xf32>
    %128 = arith.divf %126, %127 : vector<2x32xf32>
    %129 = arith.addf %118, %121 : vector<2x32xf32>
    %130 = arith.negf %129 : vector<2x32xf32>
    %131 = math.exp %130 : vector<2x32xf32>
    %cst_38 = arith.constant 1.000000e+00 : f32
    %132 = vector.broadcast %cst_38 : f32 to vector<2x32xf32>
    %133 = arith.addf %132, %131 : vector<2x32xf32>
    %134 = arith.divf %132, %133 : vector<2x32xf32>
    %135 = arith.mulf %128, %122 : vector<2x32xf32>
    %136 = arith.addf %119, %135 : vector<2x32xf32>
    %137 = math.tanh %136 : vector<2x32xf32>
    %cst_39 = arith.constant 1.000000e+00 : f32
    %138 = vector.broadcast %cst_39 : f32 to vector<2x32xf32>
    %139 = arith.subf %138, %134 : vector<2x32xf32>
    %140 = arith.mulf %139, %137 : vector<2x32xf32>
    %141 = arith.mulf %134, %76 : vector<2x32xf32>
    %142 = arith.addf %140, %141 : vector<2x32xf32>
    %c0_40 = arith.constant 0 : index
    %c1 = arith.constant 1 : index
    %c0_41 = arith.constant 0 : index
    %143 = vector.load %arg18[%c0_40, %c1, %c0_41] : memref<2x8x64xf32, #tpu.memory_space<vmem>>, vector<2x1x32xf32>
    %144 = vector.shape_cast %143 : vector<2x1x32xf32> to vector<2x32xf32>
    %145 = vector.shape_cast %115 : vector<2x32xf32> to vector<2x1x32xf32>
    tpu.vector_store %arg18[%c0_40, %c1, %c0_41], %145 {strides = array<i32>} : memref<2x8x64xf32, #tpu.memory_space<vmem>>, vector<2x1x32xf32>,
    %c0_42 = arith.constant 0 : index
    %c6 = arith.constant 6 : index
    %c32_43 = arith.constant 32 : index
    %146 = vector.load %arg18[%c0_42, %c6, %c32_43] : memref<2x8x64xf32, #tpu.memory_space<vmem>>, vector<2x1x32xf32>
    %147 = vector.shape_cast %146 : vector<2x1x32xf32> to vector<2x32xf32>
    %148 = vector.shape_cast %142 : vector<2x32xf32> to vector<2x1x32xf32>
    tpu.vector_store %arg18[%c0_42, %c6, %c32_43], %148 {strides = array<i32>} : memref<2x8x64xf32, #tpu.memory_space<vmem>>, vector<2x1x32xf32>,
    %cst_44 = arith.constant dense<0.000000e+00> : vector<2x96xf32>
    %149 = tpu.matmul %115, %11, %cst_44 {dimension_numbers = #tpu.dot_dimension_numbers<[1], [0], [0], [1], [0, 0, 1, 1], [], []>} : vector<2x32xf32>, vector<32x96xf32>, vector<2x96xf32> -> vector<2x96xf32>
    %150 = vector.broadcast %12 : vector<1x96xf32> to vector<2x96xf32>
    %151 = arith.addf %149, %150 : vector<2x96xf32>
    %cst_45 = arith.constant dense<0.000000e+00> : vector<2x96xf32>
    %152 = tpu.matmul %142, %13, %cst_45 {dimension_numbers = #tpu.dot_dimension_numbers<[1], [0], [0], [1], [0, 0, 1, 1], [], []>} : vector<2x32xf32>, vector<32x96xf32>, vector<2x96xf32> -> vector<2x96xf32>
    %153 = vector.broadcast %14 : vector<1x96xf32> to vector<2x96xf32>
    %154 = arith.addf %152, %153 : vector<2x96xf32>
    %155 = vector.extract_strided_slice %5 {offsets = [4, 0], sizes = [2, 96], strides = [1, 1]} : vector<16x96xf32> to vector<2x96xf32>
    %156 = vector.extract_strided_slice %155 {offsets = [0, 0], sizes = [2, 32], strides = [1, 1]} : vector<2x96xf32> to vector<2x32xf32>
    %157 = vector.extract_strided_slice %155 {offsets = [0, 32], sizes = [2, 32], strides = [1, 1]} : vector<2x96xf32> to vector<2x32xf32>
    %158 = vector.extract_strided_slice %155 {offsets = [0, 64], sizes = [2, 32], strides = [1, 1]} : vector<2x96xf32> to vector<2x32xf32>
    %159 = vector.extract_strided_slice %151 {offsets = [0, 0], sizes = [2, 32], strides = [1, 1]} : vector<2x96xf32> to vector<2x32xf32>
    %160 = vector.extract_strided_slice %151 {offsets = [0, 32], sizes = [2, 32], strides = [1, 1]} : vector<2x96xf32> to vector<2x32xf32>
    %161 = vector.extract_strided_slice %151 {offsets = [0, 64], sizes = [2, 32], strides = [1, 1]} : vector<2x96xf32> to vector<2x32xf32>
    %162 = arith.addf %156, %159 : vector<2x32xf32>
    %163 = arith.negf %162 : vector<2x32xf32>
    %164 = math.exp %163 : vector<2x32xf32>
    %cst_46 = arith.constant 1.000000e+00 : f32
    %165 = vector.broadcast %cst_46 : f32 to vector<2x32xf32>
    %166 = arith.addf %165, %164 : vector<2x32xf32>
    %167 = arith.divf %165, %166 : vector<2x32xf32>
    %168 = arith.addf %157, %160 : vector<2x32xf32>
    %169 = arith.negf %168 : vector<2x32xf32>
    %170 = math.exp %169 : vector<2x32xf32>
    %cst_47 = arith.constant 1.000000e+00 : f32
    %171 = vector.broadcast %cst_47 : f32 to vector<2x32xf32>
    %172 = arith.addf %171, %170 : vector<2x32xf32>
    %173 = arith.divf %171, %172 : vector<2x32xf32>
    %174 = arith.mulf %167, %161 : vector<2x32xf32>
    %175 = arith.addf %158, %174 : vector<2x32xf32>
    %176 = math.tanh %175 : vector<2x32xf32>
    %cst_48 = arith.constant 1.000000e+00 : f32
    %177 = vector.broadcast %cst_48 : f32 to vector<2x32xf32>
    %178 = arith.subf %177, %173 : vector<2x32xf32>
    %179 = arith.mulf %178, %176 : vector<2x32xf32>
    %180 = arith.mulf %173, %115 : vector<2x32xf32>
    %181 = arith.addf %179, %180 : vector<2x32xf32>
    %182 = vector.extract_strided_slice %10 {offsets = [10, 0], sizes = [2, 96], strides = [1, 1]} : vector<16x96xf32> to vector<2x96xf32>
    %183 = vector.extract_strided_slice %182 {offsets = [0, 0], sizes = [2, 32], strides = [1, 1]} : vector<2x96xf32> to vector<2x32xf32>
    %184 = vector.extract_strided_slice %182 {offsets = [0, 32], sizes = [2, 32], strides = [1, 1]} : vector<2x96xf32> to vector<2x32xf32>
    %185 = vector.extract_strided_slice %182 {offsets = [0, 64], sizes = [2, 32], strides = [1, 1]} : vector<2x96xf32> to vector<2x32xf32>
    %186 = vector.extract_strided_slice %154 {offsets = [0, 0], sizes = [2, 32], strides = [1, 1]} : vector<2x96xf32> to vector<2x32xf32>
    %187 = vector.extract_strided_slice %154 {offsets = [0, 32], sizes = [2, 32], strides = [1, 1]} : vector<2x96xf32> to vector<2x32xf32>
    %188 = vector.extract_strided_slice %154 {offsets = [0, 64], sizes = [2, 32], strides = [1, 1]} : vector<2x96xf32> to vector<2x32xf32>
    %189 = arith.addf %183, %186 : vector<2x32xf32>
    %190 = arith.negf %189 : vector<2x32xf32>
    %191 = math.exp %190 : vector<2x32xf32>
    %cst_49 = arith.constant 1.000000e+00 : f32
    %192 = vector.broadcast %cst_49 : f32 to vector<2x32xf32>
    %193 = arith.addf %192, %191 : vector<2x32xf32>
    %194 = arith.divf %192, %193 : vector<2x32xf32>
    %195 = arith.addf %184, %187 : vector<2x32xf32>
    %196 = arith.negf %195 : vector<2x32xf32>
    %197 = math.exp %196 : vector<2x32xf32>
    %cst_50 = arith.constant 1.000000e+00 : f32
    %198 = vector.broadcast %cst_50 : f32 to vector<2x32xf32>
    %199 = arith.addf %198, %197 : vector<2x32xf32>
    %200 = arith.divf %198, %199 : vector<2x32xf32>
    %201 = arith.mulf %194, %188 : vector<2x32xf32>
    %202 = arith.addf %185, %201 : vector<2x32xf32>
    %203 = math.tanh %202 : vector<2x32xf32>
    %cst_51 = arith.constant 1.000000e+00 : f32
    %204 = vector.broadcast %cst_51 : f32 to vector<2x32xf32>
    %205 = arith.subf %204, %200 : vector<2x32xf32>
    %206 = arith.mulf %205, %203 : vector<2x32xf32>
    %207 = arith.mulf %200, %142 : vector<2x32xf32>
    %208 = arith.addf %206, %207 : vector<2x32xf32>
    %c0_52 = arith.constant 0 : index
    %c2 = arith.constant 2 : index
    %c0_53 = arith.constant 0 : index
    %209 = vector.load %arg18[%c0_52, %c2, %c0_53] : memref<2x8x64xf32, #tpu.memory_space<vmem>>, vector<2x1x32xf32>
    %210 = vector.shape_cast %209 : vector<2x1x32xf32> to vector<2x32xf32>
    %211 = vector.shape_cast %181 : vector<2x32xf32> to vector<2x1x32xf32>
    tpu.vector_store %arg18[%c0_52, %c2, %c0_53], %211 {strides = array<i32>} : memref<2x8x64xf32, #tpu.memory_space<vmem>>, vector<2x1x32xf32>,
    %c0_54 = arith.constant 0 : index
    %c5 = arith.constant 5 : index
    %c32_55 = arith.constant 32 : index
    %212 = vector.load %arg18[%c0_54, %c5, %c32_55] : memref<2x8x64xf32, #tpu.memory_space<vmem>>, vector<2x1x32xf32>
    %213 = vector.shape_cast %212 : vector<2x1x32xf32> to vector<2x32xf32>
    %214 = vector.shape_cast %208 : vector<2x32xf32> to vector<2x1x32xf32>
    tpu.vector_store %arg18[%c0_54, %c5, %c32_55], %214 {strides = array<i32>} : memref<2x8x64xf32, #tpu.memory_space<vmem>>, vector<2x1x32xf32>,
    %cst_56 = arith.constant dense<0.000000e+00> : vector<2x96xf32>
    %215 = tpu.matmul %181, %11, %cst_56 {dimension_numbers = #tpu.dot_dimension_numbers<[1], [0], [0], [1], [0, 0, 1, 1], [], []>} : vector<2x32xf32>, vector<32x96xf32>, vector<2x96xf32> -> vector<2x96xf32>
    %216 = vector.broadcast %12 : vector<1x96xf32> to vector<2x96xf32>
    %217 = arith.addf %215, %216 : vector<2x96xf32>
    %cst_57 = arith.constant dense<0.000000e+00> : vector<2x96xf32>
    %218 = tpu.matmul %208, %13, %cst_57 {dimension_numbers = #tpu.dot_dimension_numbers<[1], [0], [0], [1], [0, 0, 1, 1], [], []>} : vector<2x32xf32>, vector<32x96xf32>, vector<2x96xf32> -> vector<2x96xf32>
    %219 = vector.broadcast %14 : vector<1x96xf32> to vector<2x96xf32>
    %220 = arith.addf %218, %219 : vector<2x96xf32>
    %221 = vector.extract_strided_slice %5 {offsets = [6, 0], sizes = [2, 96], strides = [1, 1]} : vector<16x96xf32> to vector<2x96xf32>
    %222 = vector.extract_strided_slice %221 {offsets = [0, 0], sizes = [2, 32], strides = [1, 1]} : vector<2x96xf32> to vector<2x32xf32>
    %223 = vector.extract_strided_slice %221 {offsets = [0, 32], sizes = [2, 32], strides = [1, 1]} : vector<2x96xf32> to vector<2x32xf32>
    %224 = vector.extract_strided_slice %221 {offsets = [0, 64], sizes = [2, 32], strides = [1, 1]} : vector<2x96xf32> to vector<2x32xf32>
    %225 = vector.extract_strided_slice %217 {offsets = [0, 0], sizes = [2, 32], strides = [1, 1]} : vector<2x96xf32> to vector<2x32xf32>
    %226 = vector.extract_strided_slice %217 {offsets = [0, 32], sizes = [2, 32], strides = [1, 1]} : vector<2x96xf32> to vector<2x32xf32>
    %227 = vector.extract_strided_slice %217 {offsets = [0, 64], sizes = [2, 32], strides = [1, 1]} : vector<2x96xf32> to vector<2x32xf32>
    %228 = arith.addf %222, %225 : vector<2x32xf32>
    %229 = arith.negf %228 : vector<2x32xf32>
    %230 = math.exp %229 : vector<2x32xf32>
    %cst_58 = arith.constant 1.000000e+00 : f32
    %231 = vector.broadcast %cst_58 : f32 to vector<2x32xf32>
    %232 = arith.addf %231, %230 : vector<2x32xf32>
    %233 = arith.divf %231, %232 : vector<2x32xf32>
    %234 = arith.addf %223, %226 : vector<2x32xf32>
    %235 = arith.negf %234 : vector<2x32xf32>
    %236 = math.exp %235 : vector<2x32xf32>
    %cst_59 = arith.constant 1.000000e+00 : f32
    %237 = vector.broadcast %cst_59 : f32 to vector<2x32xf32>
    %238 = arith.addf %237, %236 : vector<2x32xf32>
    %239 = arith.divf %237, %238 : vector<2x32xf32>
    %240 = arith.mulf %233, %227 : vector<2x32xf32>
    %241 = arith.addf %224, %240 : vector<2x32xf32>
    %242 = math.tanh %241 : vector<2x32xf32>
    %cst_60 = arith.constant 1.000000e+00 : f32
    %243 = vector.broadcast %cst_60 : f32 to vector<2x32xf32>
    %244 = arith.subf %243, %239 : vector<2x32xf32>
    %245 = arith.mulf %244, %242 : vector<2x32xf32>
    %246 = arith.mulf %239, %181 : vector<2x32xf32>
    %247 = arith.addf %245, %246 : vector<2x32xf32>
    %248 = vector.extract_strided_slice %10 {offsets = [8, 0], sizes = [2, 96], strides = [1, 1]} : vector<16x96xf32> to vector<2x96xf32>
    %249 = vector.extract_strided_slice %248 {offsets = [0, 0], sizes = [2, 32], strides = [1, 1]} : vector<2x96xf32> to vector<2x32xf32>
    %250 = vector.extract_strided_slice %248 {offsets = [0, 32], sizes = [2, 32], strides = [1, 1]} : vector<2x96xf32> to vector<2x32xf32>
    %251 = vector.extract_strided_slice %248 {offsets = [0, 64], sizes = [2, 32], strides = [1, 1]} : vector<2x96xf32> to vector<2x32xf32>
    %252 = vector.extract_strided_slice %220 {offsets = [0, 0], sizes = [2, 32], strides = [1, 1]} : vector<2x96xf32> to vector<2x32xf32>
    %253 = vector.extract_strided_slice %220 {offsets = [0, 32], sizes = [2, 32], strides = [1, 1]} : vector<2x96xf32> to vector<2x32xf32>
    %254 = vector.extract_strided_slice %220 {offsets = [0, 64], sizes = [2, 32], strides = [1, 1]} : vector<2x96xf32> to vector<2x32xf32>
    %255 = arith.addf %249, %252 : vector<2x32xf32>
    %256 = arith.negf %255 : vector<2x32xf32>
    %257 = math.exp %256 : vector<2x32xf32>
    %cst_61 = arith.constant 1.000000e+00 : f32
    %258 = vector.broadcast %cst_61 : f32 to vector<2x32xf32>
    %259 = arith.addf %258, %257 : vector<2x32xf32>
    %260 = arith.divf %258, %259 : vector<2x32xf32>
    %261 = arith.addf %250, %253 : vector<2x32xf32>
    %262 = arith.negf %261 : vector<2x32xf32>
    %263 = math.exp %262 : vector<2x32xf32>
    %cst_62 = arith.constant 1.000000e+00 : f32
    %264 = vector.broadcast %cst_62 : f32 to vector<2x32xf32>
    %265 = arith.addf %264, %263 : vector<2x32xf32>
    %266 = arith.divf %264, %265 : vector<2x32xf32>
    %267 = arith.mulf %260, %254 : vector<2x32xf32>
    %268 = arith.addf %251, %267 : vector<2x32xf32>
    %269 = math.tanh %268 : vector<2x32xf32>
    %cst_63 = arith.constant 1.000000e+00 : f32
    %270 = vector.broadcast %cst_63 : f32 to vector<2x32xf32>
    %271 = arith.subf %270, %266 : vector<2x32xf32>
    %272 = arith.mulf %271, %269 : vector<2x32xf32>
    %273 = arith.mulf %266, %208 : vector<2x32xf32>
    %274 = arith.addf %272, %273 : vector<2x32xf32>
    %c0_64 = arith.constant 0 : index
    %c3 = arith.constant 3 : index
    %c0_65 = arith.constant 0 : index
    %275 = vector.load %arg18[%c0_64, %c3, %c0_65] : memref<2x8x64xf32, #tpu.memory_space<vmem>>, vector<2x1x32xf32>
    %276 = vector.shape_cast %275 : vector<2x1x32xf32> to vector<2x32xf32>
    %277 = vector.shape_cast %247 : vector<2x32xf32> to vector<2x1x32xf32>
    tpu.vector_store %arg18[%c0_64, %c3, %c0_65], %277 {strides = array<i32>} : memref<2x8x64xf32, #tpu.memory_space<vmem>>, vector<2x1x32xf32>,
    %c0_66 = arith.constant 0 : index
    %c4 = arith.constant 4 : index
    %c32_67 = arith.constant 32 : index
    %278 = vector.load %arg18[%c0_66, %c4, %c32_67] : memref<2x8x64xf32, #tpu.memory_space<vmem>>, vector<2x1x32xf32>
    %279 = vector.shape_cast %278 : vector<2x1x32xf32> to vector<2x32xf32>
    %280 = vector.shape_cast %274 : vector<2x32xf32> to vector<2x1x32xf32>
    tpu.vector_store %arg18[%c0_66, %c4, %c32_67], %280 {strides = array<i32>} : memref<2x8x64xf32, #tpu.memory_space<vmem>>, vector<2x1x32xf32>,
    %cst_68 = arith.constant dense<0.000000e+00> : vector<2x96xf32>
    %281 = tpu.matmul %247, %11, %cst_68 {dimension_numbers = #tpu.dot_dimension_numbers<[1], [0], [0], [1], [0, 0, 1, 1], [], []>} : vector<2x32xf32>, vector<32x96xf32>, vector<2x96xf32> -> vector<2x96xf32>
    %282 = vector.broadcast %12 : vector<1x96xf32> to vector<2x96xf32>
    %283 = arith.addf %281, %282 : vector<2x96xf32>
    %cst_69 = arith.constant dense<0.000000e+00> : vector<2x96xf32>
    %284 = tpu.matmul %274, %13, %cst_69 {dimension_numbers = #tpu.dot_dimension_numbers<[1], [0], [0], [1], [0, 0, 1, 1], [], []>} : vector<2x32xf32>, vector<32x96xf32>, vector<2x96xf32> -> vector<2x96xf32>
    %285 = vector.broadcast %14 : vector<1x96xf32> to vector<2x96xf32>
    %286 = arith.addf %284, %285 : vector<2x96xf32>
    %287 = vector.extract_strided_slice %5 {offsets = [8, 0], sizes = [2, 96], strides = [1, 1]} : vector<16x96xf32> to vector<2x96xf32>
    %288 = vector.extract_strided_slice %287 {offsets = [0, 0], sizes = [2, 32], strides = [1, 1]} : vector<2x96xf32> to vector<2x32xf32>
    %289 = vector.extract_strided_slice %287 {offsets = [0, 32], sizes = [2, 32], strides = [1, 1]} : vector<2x96xf32> to vector<2x32xf32>
    %290 = vector.extract_strided_slice %287 {offsets = [0, 64], sizes = [2, 32], strides = [1, 1]} : vector<2x96xf32> to vector<2x32xf32>
    %291 = vector.extract_strided_slice %283 {offsets = [0, 0], sizes = [2, 32], strides = [1, 1]} : vector<2x96xf32> to vector<2x32xf32>
    %292 = vector.extract_strided_slice %283 {offsets = [0, 32], sizes = [2, 32], strides = [1, 1]} : vector<2x96xf32> to vector<2x32xf32>
    %293 = vector.extract_strided_slice %283 {offsets = [0, 64], sizes = [2, 32], strides = [1, 1]} : vector<2x96xf32> to vector<2x32xf32>
    %294 = arith.addf %288, %291 : vector<2x32xf32>
    %295 = arith.negf %294 : vector<2x32xf32>
    %296 = math.exp %295 : vector<2x32xf32>
    %cst_70 = arith.constant 1.000000e+00 : f32
    %297 = vector.broadcast %cst_70 : f32 to vector<2x32xf32>
    %298 = arith.addf %297, %296 : vector<2x32xf32>
    %299 = arith.divf %297, %298 : vector<2x32xf32>
    %300 = arith.addf %289, %292 : vector<2x32xf32>
    %301 = arith.negf %300 : vector<2x32xf32>
    %302 = math.exp %301 : vector<2x32xf32>
    %cst_71 = arith.constant 1.000000e+00 : f32
    %303 = vector.broadcast %cst_71 : f32 to vector<2x32xf32>
    %304 = arith.addf %303, %302 : vector<2x32xf32>
    %305 = arith.divf %303, %304 : vector<2x32xf32>
    %306 = arith.mulf %299, %293 : vector<2x32xf32>
    %307 = arith.addf %290, %306 : vector<2x32xf32>
    %308 = math.tanh %307 : vector<2x32xf32>
    %cst_72 = arith.constant 1.000000e+00 : f32
    %309 = vector.broadcast %cst_72 : f32 to vector<2x32xf32>
    %310 = arith.subf %309, %305 : vector<2x32xf32>
    %311 = arith.mulf %310, %308 : vector<2x32xf32>
    %312 = arith.mulf %305, %247 : vector<2x32xf32>
    %313 = arith.addf %311, %312 : vector<2x32xf32>
    %314 = vector.extract_strided_slice %10 {offsets = [6, 0], sizes = [2, 96], strides = [1, 1]} : vector<16x96xf32> to vector<2x96xf32>
    %315 = vector.extract_strided_slice %314 {offsets = [0, 0], sizes = [2, 32], strides = [1, 1]} : vector<2x96xf32> to vector<2x32xf32>
    %316 = vector.extract_strided_slice %314 {offsets = [0, 32], sizes = [2, 32], strides = [1, 1]} : vector<2x96xf32> to vector<2x32xf32>
    %317 = vector.extract_strided_slice %314 {offsets = [0, 64], sizes = [2, 32], strides = [1, 1]} : vector<2x96xf32> to vector<2x32xf32>
    %318 = vector.extract_strided_slice %286 {offsets = [0, 0], sizes = [2, 32], strides = [1, 1]} : vector<2x96xf32> to vector<2x32xf32>
    %319 = vector.extract_strided_slice %286 {offsets = [0, 32], sizes = [2, 32], strides = [1, 1]} : vector<2x96xf32> to vector<2x32xf32>
    %320 = vector.extract_strided_slice %286 {offsets = [0, 64], sizes = [2, 32], strides = [1, 1]} : vector<2x96xf32> to vector<2x32xf32>
    %321 = arith.addf %315, %318 : vector<2x32xf32>
    %322 = arith.negf %321 : vector<2x32xf32>
    %323 = math.exp %322 : vector<2x32xf32>
    %cst_73 = arith.constant 1.000000e+00 : f32
    %324 = vector.broadcast %cst_73 : f32 to vector<2x32xf32>
    %325 = arith.addf %324, %323 : vector<2x32xf32>
    %326 = arith.divf %324, %325 : vector<2x32xf32>
    %327 = arith.addf %316, %319 : vector<2x32xf32>
    %328 = arith.negf %327 : vector<2x32xf32>
    %329 = math.exp %328 : vector<2x32xf32>
    %cst_74 = arith.constant 1.000000e+00 : f32
    %330 = vector.broadcast %cst_74 : f32 to vector<2x32xf32>
    %331 = arith.addf %330, %329 : vector<2x32xf32>
    %332 = arith.divf %330, %331 : vector<2x32xf32>
    %333 = arith.mulf %326, %320 : vector<2x32xf32>
    %334 = arith.addf %317, %333 : vector<2x32xf32>
    %335 = math.tanh %334 : vector<2x32xf32>
    %cst_75 = arith.constant 1.000000e+00 : f32
    %336 = vector.broadcast %cst_75 : f32 to vector<2x32xf32>
    %337 = arith.subf %336, %332 : vector<2x32xf32>
    %338 = arith.mulf %337, %335 : vector<2x32xf32>
    %339 = arith.mulf %332, %274 : vector<2x32xf32>
    %340 = arith.addf %338, %339 : vector<2x32xf32>
    %c0_76 = arith.constant 0 : index
    %c4_77 = arith.constant 4 : index
    %c0_78 = arith.constant 0 : index
    %341 = vector.load %arg18[%c0_76, %c4_77, %c0_78] : memref<2x8x64xf32, #tpu.memory_space<vmem>>, vector<2x1x32xf32>
    %342 = vector.shape_cast %341 : vector<2x1x32xf32> to vector<2x32xf32>
    %343 = vector.shape_cast %313 : vector<2x32xf32> to vector<2x1x32xf32>
    tpu.vector_store %arg18[%c0_76, %c4_77, %c0_78], %343 {strides = array<i32>} : memref<2x8x64xf32, #tpu.memory_space<vmem>>, vector<2x1x32xf32>,
    %c0_79 = arith.constant 0 : index
    %c3_80 = arith.constant 3 : index
    %c32_81 = arith.constant 32 : index
    %344 = vector.load %arg18[%c0_79, %c3_80, %c32_81] : memref<2x8x64xf32, #tpu.memory_space<vmem>>, vector<2x1x32xf32>
    %345 = vector.shape_cast %344 : vector<2x1x32xf32> to vector<2x32xf32>
    %346 = vector.shape_cast %340 : vector<2x32xf32> to vector<2x1x32xf32>
    tpu.vector_store %arg18[%c0_79, %c3_80, %c32_81], %346 {strides = array<i32>} : memref<2x8x64xf32, #tpu.memory_space<vmem>>, vector<2x1x32xf32>,
    %cst_82 = arith.constant dense<0.000000e+00> : vector<2x96xf32>
    %347 = tpu.matmul %313, %11, %cst_82 {dimension_numbers = #tpu.dot_dimension_numbers<[1], [0], [0], [1], [0, 0, 1, 1], [], []>} : vector<2x32xf32>, vector<32x96xf32>, vector<2x96xf32> -> vector<2x96xf32>
    %348 = vector.broadcast %12 : vector<1x96xf32> to vector<2x96xf32>
    %349 = arith.addf %347, %348 : vector<2x96xf32>
    %cst_83 = arith.constant dense<0.000000e+00> : vector<2x96xf32>
    %350 = tpu.matmul %340, %13, %cst_83 {dimension_numbers = #tpu.dot_dimension_numbers<[1], [0], [0], [1], [0, 0, 1, 1], [], []>} : vector<2x32xf32>, vector<32x96xf32>, vector<2x96xf32> -> vector<2x96xf32>
    %351 = vector.broadcast %14 : vector<1x96xf32> to vector<2x96xf32>
    %352 = arith.addf %350, %351 : vector<2x96xf32>
    %353 = vector.extract_strided_slice %5 {offsets = [10, 0], sizes = [2, 96], strides = [1, 1]} : vector<16x96xf32> to vector<2x96xf32>
    %354 = vector.extract_strided_slice %353 {offsets = [0, 0], sizes = [2, 32], strides = [1, 1]} : vector<2x96xf32> to vector<2x32xf32>
    %355 = vector.extract_strided_slice %353 {offsets = [0, 32], sizes = [2, 32], strides = [1, 1]} : vector<2x96xf32> to vector<2x32xf32>
    %356 = vector.extract_strided_slice %353 {offsets = [0, 64], sizes = [2, 32], strides = [1, 1]} : vector<2x96xf32> to vector<2x32xf32>
    %357 = vector.extract_strided_slice %349 {offsets = [0, 0], sizes = [2, 32], strides = [1, 1]} : vector<2x96xf32> to vector<2x32xf32>
    %358 = vector.extract_strided_slice %349 {offsets = [0, 32], sizes = [2, 32], strides = [1, 1]} : vector<2x96xf32> to vector<2x32xf32>
    %359 = vector.extract_strided_slice %349 {offsets = [0, 64], sizes = [2, 32], strides = [1, 1]} : vector<2x96xf32> to vector<2x32xf32>
    %360 = arith.addf %354, %357 : vector<2x32xf32>
    %361 = arith.negf %360 : vector<2x32xf32>
    %362 = math.exp %361 : vector<2x32xf32>
    %cst_84 = arith.constant 1.000000e+00 : f32
    %363 = vector.broadcast %cst_84 : f32 to vector<2x32xf32>
    %364 = arith.addf %363, %362 : vector<2x32xf32>
    %365 = arith.divf %363, %364 : vector<2x32xf32>
    %366 = arith.addf %355, %358 : vector<2x32xf32>
    %367 = arith.negf %366 : vector<2x32xf32>
    %368 = math.exp %367 : vector<2x32xf32>
    %cst_85 = arith.constant 1.000000e+00 : f32
    %369 = vector.broadcast %cst_85 : f32 to vector<2x32xf32>
    %370 = arith.addf %369, %368 : vector<2x32xf32>
    %371 = arith.divf %369, %370 : vector<2x32xf32>
    %372 = arith.mulf %365, %359 : vector<2x32xf32>
    %373 = arith.addf %356, %372 : vector<2x32xf32>
    %374 = math.tanh %373 : vector<2x32xf32>
    %cst_86 = arith.constant 1.000000e+00 : f32
    %375 = vector.broadcast %cst_86 : f32 to vector<2x32xf32>
    %376 = arith.subf %375, %371 : vector<2x32xf32>
    %377 = arith.mulf %376, %374 : vector<2x32xf32>
    %378 = arith.mulf %371, %313 : vector<2x32xf32>
    %379 = arith.addf %377, %378 : vector<2x32xf32>
    %380 = vector.extract_strided_slice %10 {offsets = [4, 0], sizes = [2, 96], strides = [1, 1]} : vector<16x96xf32> to vector<2x96xf32>
    %381 = vector.extract_strided_slice %380 {offsets = [0, 0], sizes = [2, 32], strides = [1, 1]} : vector<2x96xf32> to vector<2x32xf32>
    %382 = vector.extract_strided_slice %380 {offsets = [0, 32], sizes = [2, 32], strides = [1, 1]} : vector<2x96xf32> to vector<2x32xf32>
    %383 = vector.extract_strided_slice %380 {offsets = [0, 64], sizes = [2, 32], strides = [1, 1]} : vector<2x96xf32> to vector<2x32xf32>
    %384 = vector.extract_strided_slice %352 {offsets = [0, 0], sizes = [2, 32], strides = [1, 1]} : vector<2x96xf32> to vector<2x32xf32>
    %385 = vector.extract_strided_slice %352 {offsets = [0, 32], sizes = [2, 32], strides = [1, 1]} : vector<2x96xf32> to vector<2x32xf32>
    %386 = vector.extract_strided_slice %352 {offsets = [0, 64], sizes = [2, 32], strides = [1, 1]} : vector<2x96xf32> to vector<2x32xf32>
    %387 = arith.addf %381, %384 : vector<2x32xf32>
    %388 = arith.negf %387 : vector<2x32xf32>
    %389 = math.exp %388 : vector<2x32xf32>
    %cst_87 = arith.constant 1.000000e+00 : f32
    %390 = vector.broadcast %cst_87 : f32 to vector<2x32xf32>
    %391 = arith.addf %390, %389 : vector<2x32xf32>
    %392 = arith.divf %390, %391 : vector<2x32xf32>
    %393 = arith.addf %382, %385 : vector<2x32xf32>
    %394 = arith.negf %393 : vector<2x32xf32>
    %395 = math.exp %394 : vector<2x32xf32>
    %cst_88 = arith.constant 1.000000e+00 : f32
    %396 = vector.broadcast %cst_88 : f32 to vector<2x32xf32>
    %397 = arith.addf %396, %395 : vector<2x32xf32>
    %398 = arith.divf %396, %397 : vector<2x32xf32>
    %399 = arith.mulf %392, %386 : vector<2x32xf32>
    %400 = arith.addf %383, %399 : vector<2x32xf32>
    %401 = math.tanh %400 : vector<2x32xf32>
    %cst_89 = arith.constant 1.000000e+00 : f32
    %402 = vector.broadcast %cst_89 : f32 to vector<2x32xf32>
    %403 = arith.subf %402, %398 : vector<2x32xf32>
    %404 = arith.mulf %403, %401 : vector<2x32xf32>
    %405 = arith.mulf %398, %340 : vector<2x32xf32>
    %406 = arith.addf %404, %405 : vector<2x32xf32>
    %c0_90 = arith.constant 0 : index
    %c5_91 = arith.constant 5 : index
    %c0_92 = arith.constant 0 : index
    %407 = vector.load %arg18[%c0_90, %c5_91, %c0_92] : memref<2x8x64xf32, #tpu.memory_space<vmem>>, vector<2x1x32xf32>
    %408 = vector.shape_cast %407 : vector<2x1x32xf32> to vector<2x32xf32>
    %409 = vector.shape_cast %379 : vector<2x32xf32> to vector<2x1x32xf32>
    tpu.vector_store %arg18[%c0_90, %c5_91, %c0_92], %409 {strides = array<i32>} : memref<2x8x64xf32, #tpu.memory_space<vmem>>, vector<2x1x32xf32>,
    %c0_93 = arith.constant 0 : index
    %c2_94 = arith.constant 2 : index
    %c32_95 = arith.constant 32 : index
    %410 = vector.load %arg18[%c0_93, %c2_94, %c32_95] : memref<2x8x64xf32, #tpu.memory_space<vmem>>, vector<2x1x32xf32>
    %411 = vector.shape_cast %410 : vector<2x1x32xf32> to vector<2x32xf32>
    %412 = vector.shape_cast %406 : vector<2x32xf32> to vector<2x1x32xf32>
    tpu.vector_store %arg18[%c0_93, %c2_94, %c32_95], %412 {strides = array<i32>} : memref<2x8x64xf32, #tpu.memory_space<vmem>>, vector<2x1x32xf32>,
    %cst_96 = arith.constant dense<0.000000e+00> : vector<2x96xf32>
    %413 = tpu.matmul %379, %11, %cst_96 {dimension_numbers = #tpu.dot_dimension_numbers<[1], [0], [0], [1], [0, 0, 1, 1], [], []>} : vector<2x32xf32>, vector<32x96xf32>, vector<2x96xf32> -> vector<2x96xf32>
    %414 = vector.broadcast %12 : vector<1x96xf32> to vector<2x96xf32>
    %415 = arith.addf %413, %414 : vector<2x96xf32>
    %cst_97 = arith.constant dense<0.000000e+00> : vector<2x96xf32>
    %416 = tpu.matmul %406, %13, %cst_97 {dimension_numbers = #tpu.dot_dimension_numbers<[1], [0], [0], [1], [0, 0, 1, 1], [], []>} : vector<2x32xf32>, vector<32x96xf32>, vector<2x96xf32> -> vector<2x96xf32>
    %417 = vector.broadcast %14 : vector<1x96xf32> to vector<2x96xf32>
    %418 = arith.addf %416, %417 : vector<2x96xf32>
    %419 = vector.extract_strided_slice %5 {offsets = [12, 0], sizes = [2, 96], strides = [1, 1]} : vector<16x96xf32> to vector<2x96xf32>
    %420 = vector.extract_strided_slice %419 {offsets = [0, 0], sizes = [2, 32], strides = [1, 1]} : vector<2x96xf32> to vector<2x32xf32>
    %421 = vector.extract_strided_slice %419 {offsets = [0, 32], sizes = [2, 32], strides = [1, 1]} : vector<2x96xf32> to vector<2x32xf32>
    %422 = vector.extract_strided_slice %419 {offsets = [0, 64], sizes = [2, 32], strides = [1, 1]} : vector<2x96xf32> to vector<2x32xf32>
    %423 = vector.extract_strided_slice %415 {offsets = [0, 0], sizes = [2, 32], strides = [1, 1]} : vector<2x96xf32> to vector<2x32xf32>
    %424 = vector.extract_strided_slice %415 {offsets = [0, 32], sizes = [2, 32], strides = [1, 1]} : vector<2x96xf32> to vector<2x32xf32>
    %425 = vector.extract_strided_slice %415 {offsets = [0, 64], sizes = [2, 32], strides = [1, 1]} : vector<2x96xf32> to vector<2x32xf32>
    %426 = arith.addf %420, %423 : vector<2x32xf32>
    %427 = arith.negf %426 : vector<2x32xf32>
    %428 = math.exp %427 : vector<2x32xf32>
    %cst_98 = arith.constant 1.000000e+00 : f32
    %429 = vector.broadcast %cst_98 : f32 to vector<2x32xf32>
    %430 = arith.addf %429, %428 : vector<2x32xf32>
    %431 = arith.divf %429, %430 : vector<2x32xf32>
    %432 = arith.addf %421, %424 : vector<2x32xf32>
    %433 = arith.negf %432 : vector<2x32xf32>
    %434 = math.exp %433 : vector<2x32xf32>
    %cst_99 = arith.constant 1.000000e+00 : f32
    %435 = vector.broadcast %cst_99 : f32 to vector<2x32xf32>
    %436 = arith.addf %435, %434 : vector<2x32xf32>
    %437 = arith.divf %435, %436 : vector<2x32xf32>
    %438 = arith.mulf %431, %425 : vector<2x32xf32>
    %439 = arith.addf %422, %438 : vector<2x32xf32>
    %440 = math.tanh %439 : vector<2x32xf32>
    %cst_100 = arith.constant 1.000000e+00 : f32
    %441 = vector.broadcast %cst_100 : f32 to vector<2x32xf32>
    %442 = arith.subf %441, %437 : vector<2x32xf32>
    %443 = arith.mulf %442, %440 : vector<2x32xf32>
    %444 = arith.mulf %437, %379 : vector<2x32xf32>
    %445 = arith.addf %443, %444 : vector<2x32xf32>
    %446 = vector.extract_strided_slice %10 {offsets = [2, 0], sizes = [2, 96], strides = [1, 1]} : vector<16x96xf32> to vector<2x96xf32>
    %447 = vector.extract_strided_slice %446 {offsets = [0, 0], sizes = [2, 32], strides = [1, 1]} : vector<2x96xf32> to vector<2x32xf32>
    %448 = vector.extract_strided_slice %446 {offsets = [0, 32], sizes = [2, 32], strides = [1, 1]} : vector<2x96xf32> to vector<2x32xf32>
    %449 = vector.extract_strided_slice %446 {offsets = [0, 64], sizes = [2, 32], strides = [1, 1]} : vector<2x96xf32> to vector<2x32xf32>
    %450 = vector.extract_strided_slice %418 {offsets = [0, 0], sizes = [2, 32], strides = [1, 1]} : vector<2x96xf32> to vector<2x32xf32>
    %451 = vector.extract_strided_slice %418 {offsets = [0, 32], sizes = [2, 32], strides = [1, 1]} : vector<2x96xf32> to vector<2x32xf32>
    %452 = vector.extract_strided_slice %418 {offsets = [0, 64], sizes = [2, 32], strides = [1, 1]} : vector<2x96xf32> to vector<2x32xf32>
    %453 = arith.addf %447, %450 : vector<2x32xf32>
    %454 = arith.negf %453 : vector<2x32xf32>
    %455 = math.exp %454 : vector<2x32xf32>
    %cst_101 = arith.constant 1.000000e+00 : f32
    %456 = vector.broadcast %cst_101 : f32 to vector<2x32xf32>
    %457 = arith.addf %456, %455 : vector<2x32xf32>
    %458 = arith.divf %456, %457 : vector<2x32xf32>
    %459 = arith.addf %448, %451 : vector<2x32xf32>
    %460 = arith.negf %459 : vector<2x32xf32>
    %461 = math.exp %460 : vector<2x32xf32>
    %cst_102 = arith.constant 1.000000e+00 : f32
    %462 = vector.broadcast %cst_102 : f32 to vector<2x32xf32>
    %463 = arith.addf %462, %461 : vector<2x32xf32>
    %464 = arith.divf %462, %463 : vector<2x32xf32>
    %465 = arith.mulf %458, %452 : vector<2x32xf32>
    %466 = arith.addf %449, %465 : vector<2x32xf32>
    %467 = math.tanh %466 : vector<2x32xf32>
    %cst_103 = arith.constant 1.000000e+00 : f32
    %468 = vector.broadcast %cst_103 : f32 to vector<2x32xf32>
    %469 = arith.subf %468, %464 : vector<2x32xf32>
    %470 = arith.mulf %469, %467 : vector<2x32xf32>
    %471 = arith.mulf %464, %406 : vector<2x32xf32>
    %472 = arith.addf %470, %471 : vector<2x32xf32>
    %c0_104 = arith.constant 0 : index
    %c6_105 = arith.constant 6 : index
    %c0_106 = arith.constant 0 : index
    %473 = vector.load %arg18[%c0_104, %c6_105, %c0_106] : memref<2x8x64xf32, #tpu.memory_space<vmem>>, vector<2x1x32xf32>
    %474 = vector.shape_cast %473 : vector<2x1x32xf32> to vector<2x32xf32>
    %475 = vector.shape_cast %445 : vector<2x32xf32> to vector<2x1x32xf32>
    tpu.vector_store %arg18[%c0_104, %c6_105, %c0_106], %475 {strides = array<i32>} : memref<2x8x64xf32, #tpu.memory_space<vmem>>, vector<2x1x32xf32>,
    %c0_107 = arith.constant 0 : index
    %c1_108 = arith.constant 1 : index
    %c32_109 = arith.constant 32 : index
    %476 = vector.load %arg18[%c0_107, %c1_108, %c32_109] : memref<2x8x64xf32, #tpu.memory_space<vmem>>, vector<2x1x32xf32>
    %477 = vector.shape_cast %476 : vector<2x1x32xf32> to vector<2x32xf32>
    %478 = vector.shape_cast %472 : vector<2x32xf32> to vector<2x1x32xf32>
    tpu.vector_store %arg18[%c0_107, %c1_108, %c32_109], %478 {strides = array<i32>} : memref<2x8x64xf32, #tpu.memory_space<vmem>>, vector<2x1x32xf32>,
    %cst_110 = arith.constant dense<0.000000e+00> : vector<2x96xf32>
    %479 = tpu.matmul %445, %11, %cst_110 {dimension_numbers = #tpu.dot_dimension_numbers<[1], [0], [0], [1], [0, 0, 1, 1], [], []>} : vector<2x32xf32>, vector<32x96xf32>, vector<2x96xf32> -> vector<2x96xf32>
    %480 = vector.broadcast %12 : vector<1x96xf32> to vector<2x96xf32>
    %481 = arith.addf %479, %480 : vector<2x96xf32>
    %cst_111 = arith.constant dense<0.000000e+00> : vector<2x96xf32>
    %482 = tpu.matmul %472, %13, %cst_111 {dimension_numbers = #tpu.dot_dimension_numbers<[1], [0], [0], [1], [0, 0, 1, 1], [], []>} : vector<2x32xf32>, vector<32x96xf32>, vector<2x96xf32> -> vector<2x96xf32>
    %483 = vector.broadcast %14 : vector<1x96xf32> to vector<2x96xf32>
    %484 = arith.addf %482, %483 : vector<2x96xf32>
    %485 = vector.extract_strided_slice %5 {offsets = [14, 0], sizes = [2, 96], strides = [1, 1]} : vector<16x96xf32> to vector<2x96xf32>
    %486 = vector.extract_strided_slice %485 {offsets = [0, 0], sizes = [2, 32], strides = [1, 1]} : vector<2x96xf32> to vector<2x32xf32>
    %487 = vector.extract_strided_slice %485 {offsets = [0, 32], sizes = [2, 32], strides = [1, 1]} : vector<2x96xf32> to vector<2x32xf32>
    %488 = vector.extract_strided_slice %485 {offsets = [0, 64], sizes = [2, 32], strides = [1, 1]} : vector<2x96xf32> to vector<2x32xf32>
    %489 = vector.extract_strided_slice %481 {offsets = [0, 0], sizes = [2, 32], strides = [1, 1]} : vector<2x96xf32> to vector<2x32xf32>
    %490 = vector.extract_strided_slice %481 {offsets = [0, 32], sizes = [2, 32], strides = [1, 1]} : vector<2x96xf32> to vector<2x32xf32>
    %491 = vector.extract_strided_slice %481 {offsets = [0, 64], sizes = [2, 32], strides = [1, 1]} : vector<2x96xf32> to vector<2x32xf32>
    %492 = arith.addf %486, %489 : vector<2x32xf32>
    %493 = arith.negf %492 : vector<2x32xf32>
    %494 = math.exp %493 : vector<2x32xf32>
    %cst_112 = arith.constant 1.000000e+00 : f32
    %495 = vector.broadcast %cst_112 : f32 to vector<2x32xf32>
    %496 = arith.addf %495, %494 : vector<2x32xf32>
    %497 = arith.divf %495, %496 : vector<2x32xf32>
    %498 = arith.addf %487, %490 : vector<2x32xf32>
    %499 = arith.negf %498 : vector<2x32xf32>
    %500 = math.exp %499 : vector<2x32xf32>
    %cst_113 = arith.constant 1.000000e+00 : f32
    %501 = vector.broadcast %cst_113 : f32 to vector<2x32xf32>
    %502 = arith.addf %501, %500 : vector<2x32xf32>
    %503 = arith.divf %501, %502 : vector<2x32xf32>
    %504 = arith.mulf %497, %491 : vector<2x32xf32>
    %505 = arith.addf %488, %504 : vector<2x32xf32>
    %506 = math.tanh %505 : vector<2x32xf32>
    %cst_114 = arith.constant 1.000000e+00 : f32
    %507 = vector.broadcast %cst_114 : f32 to vector<2x32xf32>
    %508 = arith.subf %507, %503 : vector<2x32xf32>
    %509 = arith.mulf %508, %506 : vector<2x32xf32>
    %510 = arith.mulf %503, %445 : vector<2x32xf32>
    %511 = arith.addf %509, %510 : vector<2x32xf32>
    %512 = vector.extract_strided_slice %10 {offsets = [0, 0], sizes = [2, 96], strides = [1, 1]} : vector<16x96xf32> to vector<2x96xf32>
    %513 = vector.extract_strided_slice %512 {offsets = [0, 0], sizes = [2, 32], strides = [1, 1]} : vector<2x96xf32> to vector<2x32xf32>
    %514 = vector.extract_strided_slice %512 {offsets = [0, 32], sizes = [2, 32], strides = [1, 1]} : vector<2x96xf32> to vector<2x32xf32>
    %515 = vector.extract_strided_slice %512 {offsets = [0, 64], sizes = [2, 32], strides = [1, 1]} : vector<2x96xf32> to vector<2x32xf32>
    %516 = vector.extract_strided_slice %484 {offsets = [0, 0], sizes = [2, 32], strides = [1, 1]} : vector<2x96xf32> to vector<2x32xf32>
    %517 = vector.extract_strided_slice %484 {offsets = [0, 32], sizes = [2, 32], strides = [1, 1]} : vector<2x96xf32> to vector<2x32xf32>
    %518 = vector.extract_strided_slice %484 {offsets = [0, 64], sizes = [2, 32], strides = [1, 1]} : vector<2x96xf32> to vector<2x32xf32>
    %519 = arith.addf %513, %516 : vector<2x32xf32>
    %520 = arith.negf %519 : vector<2x32xf32>
    %521 = math.exp %520 : vector<2x32xf32>
    %cst_115 = arith.constant 1.000000e+00 : f32
    %522 = vector.broadcast %cst_115 : f32 to vector<2x32xf32>
    %523 = arith.addf %522, %521 : vector<2x32xf32>
    %524 = arith.divf %522, %523 : vector<2x32xf32>
    %525 = arith.addf %514, %517 : vector<2x32xf32>
    %526 = arith.negf %525 : vector<2x32xf32>
    %527 = math.exp %526 : vector<2x32xf32>
    %cst_116 = arith.constant 1.000000e+00 : f32
    %528 = vector.broadcast %cst_116 : f32 to vector<2x32xf32>
    %529 = arith.addf %528, %527 : vector<2x32xf32>
    %530 = arith.divf %528, %529 : vector<2x32xf32>
    %531 = arith.mulf %524, %518 : vector<2x32xf32>
    %532 = arith.addf %515, %531 : vector<2x32xf32>
    %533 = math.tanh %532 : vector<2x32xf32>
    %cst_117 = arith.constant 1.000000e+00 : f32
    %534 = vector.broadcast %cst_117 : f32 to vector<2x32xf32>
    %535 = arith.subf %534, %530 : vector<2x32xf32>
    %536 = arith.mulf %535, %533 : vector<2x32xf32>
    %537 = arith.mulf %530, %472 : vector<2x32xf32>
    %538 = arith.addf %536, %537 : vector<2x32xf32>
    %c0_118 = arith.constant 0 : index
    %c7_119 = arith.constant 7 : index
    %c0_120 = arith.constant 0 : index
    %539 = vector.load %arg18[%c0_118, %c7_119, %c0_120] : memref<2x8x64xf32, #tpu.memory_space<vmem>>, vector<2x1x32xf32>
    %540 = vector.shape_cast %539 : vector<2x1x32xf32> to vector<2x32xf32>
    %541 = vector.shape_cast %511 : vector<2x32xf32> to vector<2x1x32xf32>
    tpu.vector_store %arg18[%c0_118, %c7_119, %c0_120], %541 {strides = array<i32>} : memref<2x8x64xf32, #tpu.memory_space<vmem>>, vector<2x1x32xf32>,
    %c0_121 = arith.constant 0 : index
    %c0_122 = arith.constant 0 : index
    %c32_123 = arith.constant 32 : index
    %542 = vector.load %arg18[%c0_121, %c0_122, %c32_123] : memref<2x8x64xf32, #tpu.memory_space<vmem>>, vector<2x1x32xf32>
    %543 = vector.shape_cast %542 : vector<2x1x32xf32> to vector<2x32xf32>
    %544 = vector.shape_cast %538 : vector<2x32xf32> to vector<2x1x32xf32>
    tpu.vector_store %arg18[%c0_121, %c0_122, %c32_123], %544 {strides = array<i32>} : memref<2x8x64xf32, #tpu.memory_space<vmem>>, vector<2x1x32xf32>,
    %545 = tpu.concatenate %511, %538 in 1 : vector<2x32xf32>, vector<2x32xf32> -> vector<2x64xf32>
    %c0_124 = arith.constant 0 : index
    %c0_125 = arith.constant 0 : index
    %c0_126 = arith.constant 0 : index
    %546 = vector.load %arg18[%c0_124, %c0_125, %c0_126] : memref<2x8x64xf32, #tpu.memory_space<vmem>>, vector<2x8x64xf32>
    %c0_127 = arith.constant 0 : index
    %c0_128 = arith.constant 0 : index
    %547 = vector.load %arg9[%c0_127, %c0_128] : memref<64x8xf32, #tpu.memory_space<vmem>>, vector<64x8xf32>
    %c0_129 = arith.constant 0 : index
    %c0_130 = arith.constant 0 : index
    %548 = vector.load %arg10[%c0_129, %c0_130] : memref<1x8xf32, #tpu.memory_space<vmem>>, vector<1x8xf32>
    %cst_131 = arith.constant dense<0.000000e+00> : vector<2x8xf32>
    %549 = tpu.matmul %545, %547, %cst_131 {dimension_numbers = #tpu.dot_dimension_numbers<[1], [0], [0], [1], [0, 0, 1, 1], [], []>} : vector<2x64xf32>, vector<64x8xf32>, vector<2x8xf32> -> vector<2x8xf32>
    %550 = vector.broadcast %548 : vector<1x8xf32> to vector<2x8xf32>
    %551 = arith.addf %549, %550 : vector<2x8xf32>
    %552 = vector.shape_cast %551 : vector<2x8xf32> to vector<2x1x8xf32>
    "tpu.trace_start"() <{level = 10 : i32, message = "bqt,btk->bqk"}> : () -> ()
    %cst_132 = arith.constant dense<0.000000e+00> : vector<2x1x64xf32>
    %553 = tpu.matmul %552, %546, %cst_132 {dimension_numbers = #tpu.dot_dimension_numbers<[2], [1], [1], [2], [0, 0, 0, 1, 1, 2], [0], [0]>} : vector<2x1x8xf32>, vector<2x8x64xf32>, vector<2x1x64xf32> -> vector<2x1x64xf32>
    "tpu.trace_stop"() : () -> ()
    %554 = vector.shape_cast %553 : vector<2x1x64xf32> to vector<2x64xf32>
    %cst_133 = arith.constant dense<0.000000e+00> : vector<2x8xf32>
    %555 = tpu.matmul %554, %547, %cst_133 {dimension_numbers = #tpu.dot_dimension_numbers<[1], [0], [0], [1], [0, 0, 1, 1], [], []>} : vector<2x64xf32>, vector<64x8xf32>, vector<2x8xf32> -> vector<2x8xf32>
    %556 = vector.broadcast %548 : vector<1x8xf32> to vector<2x8xf32>
    %557 = arith.addf %555, %556 : vector<2x8xf32>
    %cst_134 = arith.constant dense<0xFF800000> : vector<2xf32>
    %558 = vector.multi_reduction <maximumf>, %557, %cst_134 [1] : vector<2x8xf32> to vector<2xf32>
    %cst_135 = arith.constant 0xFF800000 : f32
    %559 = vector.broadcast %cst_135 : f32 to vector<2xf32>
    %560 = arith.maximumf %559, %558 : vector<2xf32>
    %561 = vector.shape_cast %560 : vector<2xf32> to vector<2x1xf32>
    %562 = vector.broadcast %561 : vector<2x1xf32> to vector<2x8xf32>
    %563 = arith.subf %557, %562 : vector<2x8xf32>
    %564 = math.exp %563 : vector<2x8xf32>
    %cst_136 = arith.constant dense<0.000000e+00> : vector<2xf32>
    %565 = vector.multi_reduction <add>, %564, %cst_136 [1] : vector<2x8xf32> to vector<2xf32>
    %566 = vector.shape_cast %565 : vector<2xf32> to vector<2x1xf32>
    %567 = vector.broadcast %566 : vector<2x1xf32> to vector<2x8xf32>
    %568 = arith.divf %564, %567 : vector<2x8xf32>
    %569 = vector.shape_cast %568 : vector<2x8xf32> to vector<2x1x8xf32>
    "tpu.trace_start"() <{level = 10 : i32, message = "bqt,btk->bqk"}> : () -> ()
    %cst_137 = arith.constant dense<0.000000e+00> : vector<2x1x64xf32>
    %570 = tpu.matmul %569, %546, %cst_137 {dimension_numbers = #tpu.dot_dimension_numbers<[2], [1], [1], [2], [0, 0, 0, 1, 1, 2], [0], [0]>} : vector<2x1x8xf32>, vector<2x8x64xf32>, vector<2x1x64xf32> -> vector<2x1x64xf32>
    "tpu.trace_stop"() : () -> ()
    %571 = vector.shape_cast %570 : vector<2x1x64xf32> to vector<2x64xf32>
    %c0_138 = arith.constant 0 : index
    %c0_139 = arith.constant 0 : index
    %572 = vector.load %arg11[%c0_138, %c0_139] : memref<64x32xf32, #tpu.memory_space<vmem>>, vector<64x32xf32>
    %cst_140 = arith.constant dense<0.000000e+00> : vector<2x32xf32>
    %573 = tpu.matmul %571, %572, %cst_140 {dimension_numbers = #tpu.dot_dimension_numbers<[1], [0], [0], [1], [0, 0, 1, 1], [], []>} : vector<2x64xf32>, vector<64x32xf32>, vector<2x32xf32> -> vector<2x32xf32>
    %c0_141 = arith.constant 0 : index
    %c0_142 = arith.constant 0 : index
    %574 = vector.load %arg12[%c0_141, %c0_142] : memref<1x32xf32, #tpu.memory_space<vmem>>, vector<1x32xf32>
    %575 = vector.broadcast %574 : vector<1x32xf32> to vector<2x32xf32>
    %576 = arith.addf %573, %575 : vector<2x32xf32>
    %cst_143 = arith.constant 0.000000e+00 : f32
    %577 = vector.broadcast %cst_143 : f32 to vector<2x32xf32>
    %578 = arith.maximumf %576, %577 : vector<2x32xf32>
    %c0_144 = arith.constant 0 : index
    %c0_145 = arith.constant 0 : index
    %579 = vector.load %arg13[%c0_144, %c0_145] : memref<32x5xf32, #tpu.memory_space<vmem>>, vector<32x5xf32>
    %cst_146 = arith.constant dense<0.000000e+00> : vector<2x5xf32>
    %580 = tpu.matmul %578, %579, %cst_146 {dimension_numbers = #tpu.dot_dimension_numbers<[1], [0], [0], [1], [0, 0, 1, 1], [], []>} : vector<2x32xf32>, vector<32x5xf32>, vector<2x5xf32> -> vector<2x5xf32>
    %c0_147 = arith.constant 0 : index
    %c0_148 = arith.constant 0 : index
    %581 = vector.load %arg14[%c0_147, %c0_148] : memref<1x5xf32, #tpu.memory_space<vmem>>, vector<1x5xf32>
    %582 = vector.broadcast %581 : vector<1x5xf32> to vector<2x5xf32>
    %583 = arith.addf %580, %582 : vector<2x5xf32>
    %c0_149 = arith.constant 0 : index
    %c0_150 = arith.constant 0 : index
    %584 = vector.load %arg15[%c0_149, %c0_150] : memref<2x5xf32, #tpu.memory_space<vmem>>, vector<2x5xf32>
    tpu.vector_store %arg15[%c0_149, %c0_150], %583 {strides = array<i32>} : memref<2x5xf32, #tpu.memory_space<vmem>>, vector<2x5xf32>,
    %c0_151 = arith.constant 0 : index
    %c0_152 = arith.constant 0 : index
    %585 = vector.load %arg16[%c0_151, %c0_152] : memref<2x64xf32, #tpu.memory_space<vmem>>, vector<2x64xf32>
    tpu.vector_store %arg16[%c0_151, %c0_152], %545 {strides = array<i32>} : memref<2x64xf32, #tpu.memory_space<vmem>>, vector<2x64xf32>,
    %c0_153 = arith.constant 0 : index
    %c0_154 = arith.constant 0 : index
    %586 = vector.load %arg17[%c0_153, %c0_154] : memref<2x8xf32, #tpu.memory_space<vmem>>, vector<2x8xf32>
    tpu.vector_store %arg17[%c0_153, %c0_154], %568 {strides = array<i32>} : memref<2x8xf32, #tpu.memory_space<vmem>>, vector<2x8xf32>,
    return
  }
}

</mosaic_0001>

<llo_original>
// kernel: tpu_custom_call.1
$region0: #{tpu_custom_call.1}
  #allocation0 [shape = 'u32[]', space=smem, size = 0x4, offset = 0x4, fixed_abs, tag = 'smem constant byte address 0x4 - core index']
  #allocation1 [shape = 'u32[144,128]{1,0:T(1,128)}', space=vmem, size = 0x12000, scoped, tag = 'internal scratch']
  #allocation2 [shape = 'f32[2,8,64]{2,1,0:T(8,128)}', space=vmem, size = 0x2000, scoped, tag = 'scratch operand']
  %s0 = inlined_call_operand.vmem [shape: f32[16,16], index: 0, kind: input, shape index: {}]
  %s1 = inlined_call_operand.vmem [shape: f32[16,96], index: 1, kind: input, shape index: {}]
  %s2 = inlined_call_operand.vmem [shape: f32[32,96], index: 2, kind: input, shape index: {}]
  %s3 = inlined_call_operand.vmem [shape: f32[1,96], index: 3, kind: input, shape index: {}]
  %s4 = inlined_call_operand.vmem [shape: f32[1,96], index: 4, kind: input, shape index: {}]
  %s5 = inlined_call_operand.vmem [shape: f32[16,96], index: 5, kind: input, shape index: {}]
  %s6 = inlined_call_operand.vmem [shape: f32[32,96], index: 6, kind: input, shape index: {}]
  %s7 = inlined_call_operand.vmem [shape: f32[1,96], index: 7, kind: input, shape index: {}]
  %s8 = inlined_call_operand.vmem [shape: f32[1,96], index: 8, kind: input, shape index: {}]
  %s9 = inlined_call_operand.vmem [shape: f32[64,8], index: 9, kind: input, shape index: {}]
  %s10 = inlined_call_operand.vmem [shape: f32[1,8], index: 10, kind: input, shape index: {}]
  %s11 = inlined_call_operand.vmem [shape: f32[64,32], index: 11, kind: input, shape index: {}]
  %s12 = inlined_call_operand.vmem [shape: f32[1,32], index: 12, kind: input, shape index: {}]
  %s13 = inlined_call_operand.vmem [shape: f32[32,5], index: 13, kind: input, shape index: {}]
  %s14 = inlined_call_operand.vmem [shape: f32[1,5], index: 14, kind: input, shape index: {}]
  %s15 = inlined_call_operand.hbm [shape: f32[2,5], index: 15, kind: output, shape index: {0}]
  %s16 = inlined_call_operand.hbm [shape: f32[2,64], index: 16, kind: output, shape index: {1}]
  %s17 = inlined_call_operand.hbm [shape: f32[2,8], index: 17, kind: output, shape index: {2}]
  %18 = xla_tuple %s15, %s16, %s17
  %s19 = sld [smem:[#allocation0]]
  $region86: #{tpu_custom_call.1} parent=0
    _
  %s21 = ssub.s32 1, %s19
  %s22 = scalar_select 0, %s21, %s19
  $region1: #{tpu_custom_call.1} parent=0
    #allocation3 [shape = 'u8[1024]{0}', space=vmem, size = 0x400, scoped, tag = 'output window, operand 0, single buffered']
    #allocation4 [shape = 's32[1]{0}', space=sflag, size = 0x4, scoped, tag = 'scoped memory for tpu_custom_call.1']
    #allocation5 [shape = 'u8[1024]{0}', space=vmem, size = 0x400, scoped, tag = 'output window, operand 1, single buffered']
    #allocation6 [shape = 's32[1]{0}', space=sflag, size = 0x4, scoped, tag = 'scoped memory for tpu_custom_call.1']
    #allocation7 [shape = 'u8[1024]{0}', space=vmem, size = 0x400, scoped, tag = 'output window, operand 2, single buffered']
    %23 = vsyncpa [#allocation4], 0
    %24 = vsyncpa [#allocation6], 0
    // Predicated region
    $region2: #{tpu_custom_call.1} parent=1 // pred_check
      _
    $region3: #{tpu_custom_call.1} parent=1 // pred_check_branch
      %26 = sbr.rel (0) target = $region5
    $region4: #{tpu_custom_call.1} parent=1 // pred_region
      _
    $region5: #{tpu_custom_call.1} parent=1 // pred_fallthru
      _
    // Predicated region
    $region6: #{tpu_custom_call.1} parent=1 // pred_check
      _
    $region7: #{tpu_custom_call.1} parent=1 // pred_check_branch
      %28 = sbr.rel (0) target = $region9
    $region8: #{tpu_custom_call.1} parent=1 // pred_region
      _
    $region9: #{tpu_custom_call.1} parent=1 // pred_fallthru
      _
    // Predicated region
    $region10: #{tpu_custom_call.1} parent=1 // pred_check
      _
    $region11: #{tpu_custom_call.1} parent=1 // pred_check_branch
      %30 = sbr.rel (0) target = $region13
    $region12: #{tpu_custom_call.1} parent=1 // pred_region
      _
    $region13: #{tpu_custom_call.1} parent=1 // pred_fallthru
      _
    // Predicated region
    $region14: #{tpu_custom_call.1} parent=1 // pred_check
      _
    $region15: #{tpu_custom_call.1} parent=1 // pred_check_branch
      %32 = sbr.rel (0) target = $region17
    $region16: #{tpu_custom_call.1} parent=1 // pred_region
      _
    $region17: #{tpu_custom_call.1} parent=1 // pred_fallthru
      _
    // Predicated region
    $region18: #{tpu_custom_call.1} parent=1 // pred_check
      _
    $region19: #{tpu_custom_call.1} parent=1 // pred_check_branch
      %34 = sbr.rel (0) target = $region21
    $region20: #{tpu_custom_call.1} parent=1 // pred_region
      _
    $region21: #{tpu_custom_call.1} parent=1 // pred_fallthru
      _
    // Predicated region
    $region22: #{tpu_custom_call.1} parent=1 // pred_check
      _
    $region23: #{tpu_custom_call.1} parent=1 // pred_check_branch
      %36 = sbr.rel (0) target = $region25
    $region24: #{tpu_custom_call.1} parent=1 // pred_region
      _
    $region25: #{tpu_custom_call.1} parent=1 // pred_fallthru
      _
    // Predicated region
    $region26: #{tpu_custom_call.1} parent=1 // pred_check
      _
    $region27: #{tpu_custom_call.1} parent=1 // pred_check_branch
      %38 = sbr.rel (0) target = $region29
    $region28: #{tpu_custom_call.1} parent=1 // pred_region
      _
    $region29: #{tpu_custom_call.1} parent=1 // pred_fallthru
      _
    // Predicated region
    $region30: #{tpu_custom_call.1} parent=1 // pred_check
      _
    $region31: #{tpu_custom_call.1} parent=1 // pred_check_branch
      %40 = sbr.rel (0) target = $region33
    $region32: #{tpu_custom_call.1} parent=1 // pred_region
      _
    $region33: #{tpu_custom_call.1} parent=1 // pred_fallthru
      _
    // Predicated region
    $region34: #{tpu_custom_call.1} parent=1 // pred_check
      _
    $region35: #{tpu_custom_call.1} parent=1 // pred_check_branch
      %42 = sbr.rel (0) target = $region37
    $region36: #{tpu_custom_call.1} parent=1 // pred_region
      _
    $region37: #{tpu_custom_call.1} parent=1 // pred_fallthru
      _
    // Predicated region
    $region38: #{tpu_custom_call.1} parent=1 // pred_check
      _
    $region39: #{tpu_custom_call.1} parent=1 // pred_check_branch
      %44 = sbr.rel (0) target = $region41
    $region40: #{tpu_custom_call.1} parent=1 // pred_region
      _
    $region41: #{tpu_custom_call.1} parent=1 // pred_fallthru
      _
    // Predicated region
    $region42: #{tpu_custom_call.1} parent=1 // pred_check
      _
    $region43: #{tpu_custom_call.1} parent=1 // pred_check_branch
      %46 = sbr.rel (0) target = $region45
    $region44: #{tpu_custom_call.1} parent=1 // pred_region
      _
    $region45: #{tpu_custom_call.1} parent=1 // pred_fallthru
      _
    // Predicated region
    $region46: #{tpu_custom_call.1} parent=1 // pred_check
      _
    $region47: #{tpu_custom_call.1} parent=1 // pred_check_branch
      %48 = sbr.rel (0) target = $region49
    $region48: #{tpu_custom_call.1} parent=1 // pred_region
      _
    $region49: #{tpu_custom_call.1} parent=1 // pred_fallthru
      _
    // Predicated region
    $region50: #{tpu_custom_call.1} parent=1 // pred_check
      _
    $region51: #{tpu_custom_call.1} parent=1 // pred_check_branch
      %50 = sbr.rel (0) target = $region53
    $region52: #{tpu_custom_call.1} parent=1 // pred_region
      _
    $region53: #{tpu_custom_call.1} parent=1 // pred_fallthru
      _
    // Predicated region
    $region54: #{tpu_custom_call.1} parent=1 // pred_check
      _
    $region55: #{tpu_custom_call.1} parent=1 // pred_check_branch
      %52 = sbr.rel (0) target = $region57
    $region56: #{tpu_custom_call.1} parent=1 // pred_region
      _
    $region57: #{tpu_custom_call.1} parent=1 // pred_fallthru
      _
    // Predicated region
    $region58: #{tpu_custom_call.1} parent=1 // pred_check
      _
    $region59: #{tpu_custom_call.1} parent=1 // pred_check_branch
      %54 = sbr.rel (0) target = $region61
    $region60: #{tpu_custom_call.1} parent=1 // pred_region
      _
    $region61: #{tpu_custom_call.1} parent=1 // pred_fallthru
      _
    %v55 = vld [vmem:[%s0] sm:$0xff]
    %v56 = vld [vmem:[%s0 + $0x8] sm:$0xff]
    %v57 = vld [vmem:[%s1] sm:$0xff]
    %v58 = vld [vmem:[%s1 + $0x8] sm:$0xff]
    %v59 = vld [vmem:[%s3] sm:$0x1]
    %v61 = vlaneseq
    %v62 = vshrl.u32 %v61, 7
    %v63 = vsub.s32 0, %v62
    %v64 = vrot.slane %v59, %v63
    %vm66 = vcmask 130048
    %v68 = vsel %vm66, %v55, 0
    %v71 = vsel %vm66, %v56, 0
    %73 = vmatprep.subr.mxu0 0.0
    %74 = vmatpush1.msra.mxu0 %v57
    %75 = vmatprep.subr.mxu0 0.0
    %76 = vmatpush1.msra.mxu0 %v58
    %77 = vmatprep.subr.mxu0 0.0
    %78 = vmatpush1.msra.mxu0 0.0
    %79 = vmatprep.subr.mxu0 0.0
    %80 = vmatpush1.msra.mxu0 0.0
    %81 = vmatprep.subr.mxu0 0.0
    %82 = vmatpush1.msra.mxu0 0.0
    %83 = vmatprep.subr.mxu0 0.0
    %84 = vmatpush1.msra.mxu0 0.0
    %85 = vmatprep.subr.mxu0 0.0
    %86 = vmatpush1.msra.mxu0 0.0
    %87 = vmatprep.subr.mxu0 0.0
    %88 = vmatpush1.msra.mxu0 0.0
    %89 = vmatprep.subr.mxu0 0.0
    %90 = vmatpush1.msra.mxu0 0.0
    %91 = vmatprep.subr.mxu0 0.0
    %92 = vmatpush1.msra.mxu0 0.0
    %93 = vmatprep.subr.mxu0 0.0
    %94 = vmatpush1.msra.mxu0 0.0
    %95 = vmatprep.subr.mxu0 0.0
    %96 = vmatpush1.msra.mxu0 0.0
    %97 = vmatprep.subr.mxu0 0.0
    %98 = vmatpush1.msra.mxu0 0.0
    %99 = vmatprep.subr.mxu0 0.0
    %100 = vmatpush1.msra.mxu0 0.0
    %101 = vmatprep.subr.mxu0 0.0
    %102 = vmatpush1.msra.mxu0 0.0
    %103 = vmatprep.subr.mxu0 0.0
    %104 = vmatpush1.msra.mxu0 0.0
    %105 = vmatprep.subr.mxu0 0.0
    %106 = vmatpush1.msra.mxu0 0.0
    %107 = vmatprep.subr.mxu0 0.0
    %108 = vmatpush1.msra.mxu0 0.0
    %109 = vmatprep.subr.mxu0 0.0
    %110 = vmatpush1.msra.mxu0 0.0
    %111 = vmatprep.subr.mxu0 0.0
    %112 = vmatpush1.msra.mxu0 0.0
    %113 = vmatprep.subr.mxu0 0.0
    %114 = vmatpush1.msra.mxu0 0.0
    %115 = vmatprep.subr.mxu0 0.0
    %116 = vmatpush1.msra.mxu0 0.0
    %117 = vmatprep.subr.mxu0 0.0
    %118 = vmatpush1.msra.mxu0 0.0
    %119 = vmatprep.subr.mxu0 0.0
    %120 = vmatpush1.msra.mxu0 0.0
    %121 = vmatprep.subr.mxu0 0.0
    %122 = vmatpush1.msra.mxu0 0.0
    %123 = vmatprep.subr.mxu0 0.0
    %124 = vmatpush1.msra.mxu0 0.0
    %125 = vmatprep.subr.mxu0 0.0
    %126 = vmatpush1.msra.mxu0 0.0
    %127 = vmatprep.subr.mxu0 0.0
    %128 = vmatpush1.msra.mxu0 0.0
    %129 = vmatprep.subr.mxu0 0.0
    %130 = vmatpush1.msra.mxu0 0.0
    %131 = vmatprep.subr.mxu0 0.0
    %132 = vmatpush1.msra.mxu0 0.0
    %133 = vmatprep.subr.mxu0 0.0
    %134 = vmatpush1.msra.mxu0 0.0
    %135 = vmatprep.subr.mxu0 0.0
    %136 = vmatpush1.msra.mxu0 0.0
    %137 = vmatprep.mubr.f32.mxu0 0.0
    %138 = vmatmul.mubr.f32.gmra.mrb[0].mxu0 %v68
    %v139 = vpop.f32.mrb[0].mxu0
    %v140 = vadd.f32 %v64, %v139
    %v141 = vpop.f32.mrb[0].mxu0
    %142 = vmatprep.mubr.f32.mxu0 0.0
    %143 = vmatmul.mubr.f32.gmra.mrb[0].mxu0 %v71
    %v144 = vpop.f32.mrb[0].mxu0
    %v145 = vadd.f32 %v64, %v144
    %v146 = vpop.f32.mrb[0].mxu0
    %147 = vdwg.mxu0
    %v148 = vld [vmem:[%s5] sm:$0xff]
    %v149 = vld [vmem:[%s5 + $0x8] sm:$0xff]
    %v150 = vld [vmem:[%s7] sm:$0x1]
    %v152 = vlaneseq
    %v153 = vshrl.u32 %v152, 7
    %v154 = vsub.s32 0, %v153
    %v155 = vrot.slane %v150, %v154
    %157 = vmatprep.subr.mxu0 0.0
    %158 = vmatpush1.msra.mxu0 %v148
    %159 = vmatprep.subr.mxu0 0.0
    %160 = vmatpush1.msra.mxu0 %v149
    %161 = vmatprep.subr.mxu0 0.0
    %162 = vmatpush1.msra.mxu0 0.0
    %163 = vmatprep.subr.mxu0 0.0
    %164 = vmatpush1.msra.mxu0 0.0
    %165 = vmatprep.subr.mxu0 0.0
    %166 = vmatpush1.msra.mxu0 0.0
    %167 = vmatprep.subr.mxu0 0.0
    %168 = vmatpush1.msra.mxu0 0.0
    %169 = vmatprep.subr.mxu0 0.0
    %170 = vmatpush1.msra.mxu0 0.0
    %171 = vmatprep.subr.mxu0 0.0
    %172 = vmatpush1.msra.mxu0 0.0
    %173 = vmatprep.subr.mxu0 0.0
    %174 = vmatpush1.msra.mxu0 0.0
    %175 = vmatprep.subr.mxu0 0.0
    %176 = vmatpush1.msra.mxu0 0.0
    %177 = vmatprep.subr.mxu0 0.0
    %178 = vmatpush1.msra.mxu0 0.0
    %179 = vmatprep.subr.mxu0 0.0
    %180 = vmatpush1.msra.mxu0 0.0
    %181 = vmatprep.subr.mxu0 0.0
    %182 = vmatpush1.msra.mxu0 0.0
    %183 = vmatprep.subr.mxu0 0.0
    %184 = vmatpush1.msra.mxu0 0.0
    %185 = vmatprep.subr.mxu0 0.0
    %186 = vmatpush1.msra.mxu0 0.0
    %187 = vmatprep.subr.mxu0 0.0
    %188 = vmatpush1.msra.mxu0 0.0
    %189 = vmatprep.subr.mxu0 0.0
    %190 = vmatpush1.msra.mxu0 0.0
    %191 = vmatprep.subr.mxu0 0.0
    %192 = vmatpush1.msra.mxu0 0.0
    %193 = vmatprep.subr.mxu0 0.0
    %194 = vmatpush1.msra.mxu0 0.0
    %195 = vmatprep.subr.mxu0 0.0
    %196 = vmatpush1.msra.mxu0 0.0
    %197 = vmatprep.subr.mxu0 0.0
    %198 = vmatpush1.msra.mxu0 0.0
    %199 = vmatprep.subr.mxu0 0.0
    %200 = vmatpush1.msra.mxu0 0.0
    %201 = vmatprep.subr.mxu0 0.0
    %202 = vmatpush1.msra.mxu0 0.0
    %203 = vmatprep.subr.mxu0 0.0
    %204 = vmatpush1.msra.mxu0 0.0
    %205 = vmatprep.subr.mxu0 0.0
    %206 = vmatpush1.msra.mxu0 0.0
    %207 = vmatprep.subr.mxu0 0.0
    %208 = vmatpush1.msra.mxu0 0.0
    %209 = vmatprep.subr.mxu0 0.0
    %210 = vmatpush1.msra.mxu0 0.0
    %211 = vmatprep.subr.mxu0 0.0
    %212 = vmatpush1.msra.mxu0 0.0
    %213 = vmatprep.subr.mxu0 0.0
    %214 = vmatpush1.msra.mxu0 0.0
    %215 = vmatprep.subr.mxu0 0.0
    %216 = vmatpush1.msra.mxu0 0.0
    %217 = vmatprep.subr.mxu0 0.0
    %218 = vmatpush1.msra.mxu0 0.0
    %219 = vmatprep.subr.mxu0 0.0
    %220 = vmatpush1.msra.mxu0 0.0
    %221 = vmatprep.mubr.f32.mxu0 0.0
    %222 = vmatmul.mubr.f32.gmra.mrb[0].mxu0 %v68
    %v223 = vpop.f32.mrb[0].mxu0
    %v224 = vadd.f32 %v155, %v223
    %v225 = vpop.f32.mrb[0].mxu0
    %226 = vmatprep.mubr.f32.mxu0 0.0
    %227 = vmatmul.mubr.f32.gmra.mrb[0].mxu0 %v71
    %v228 = vpop.f32.mrb[0].mxu0
    %v229 = vadd.f32 %v155, %v228
    %v230 = vpop.f32.mrb[0].mxu0
    %231 = vdwg.mxu0
    %v232 = vld [vmem:[%s2] sm:$0xff]
    %v233 = vld [vmem:[%s2 + $0x8] sm:$0xff]
    %v234 = vld [vmem:[%s2 + $0x10] sm:$0xff]
    %v235 = vld [vmem:[%s2 + $0x18] sm:$0xff]
    %v236 = vld [vmem:[%s4] sm:$0x1]
    %v237 = vld [vmem:[%s6] sm:$0xff]
    %v238 = vld [vmem:[%s6 + $0x8] sm:$0xff]
    %v239 = vld [vmem:[%s6 + $0x10] sm:$0xff]
    %v240 = vld [vmem:[%s6 + $0x18] sm:$0xff]
    %v241 = vld [vmem:[%s8] sm:$0x1]
    %v243 = vlaneseq
    %v244 = vshrl.u32 %v243, 7
    %v245 = vsub.s32 0, %v244
    %v246 = vrot.slane %v236, %v245
    %vm248 = vcmask 261120
    %v250 = vsel %vm248, 0.0, 0
    %252 = vmatprep.subr.mxu0 0.0
    %253 = vmatpush1.msra.mxu0 %v232
    %254 = vmatprep.subr.mxu0 0.0
    %255 = vmatpush1.msra.mxu0 %v233
    %256 = vmatprep.subr.mxu0 0.0
    %257 = vmatpush1.msra.mxu0 %v234
    %258 = vmatprep.subr.mxu0 0.0
    %259 = vmatpush1.msra.mxu0 %v235
    %260 = vmatprep.subr.mxu0 0.0
    %261 = vmatpush1.msra.mxu0 0.0
    %262 = vmatprep.subr.mxu0 0.0
    %263 = vmatpush1.msra.mxu0 0.0
    %264 = vmatprep.subr.mxu0 0.0
    %265 = vmatpush1.msra.mxu0 0.0
    %266 = vmatprep.subr.mxu0 0.0
    %267 = vmatpush1.msra.mxu0 0.0
    %268 = vmatprep.subr.mxu0 0.0
    %269 = vmatpush1.msra.mxu0 0.0
    %270 = vmatprep.subr.mxu0 0.0
    %271 = vmatpush1.msra.mxu0 0.0
    %272 = vmatprep.subr.mxu0 0.0
    %273 = vmatpush1.msra.mxu0 0.0
    %274 = vmatprep.subr.mxu0 0.0
    %275 = vmatpush1.msra.mxu0 0.0
    %276 = vmatprep.subr.mxu0 0.0
    %277 = vmatpush1.msra.mxu0 0.0
    %278 = vmatprep.subr.mxu0 0.0
    %279 = vmatpush1.msra.mxu0 0.0
    %280 = vmatprep.subr.mxu0 0.0
    %281 = vmatpush1.msra.mxu0 0.0
    %282 = vmatprep.subr.mxu0 0.0
    %283 = vmatpush1.msra.mxu0 0.0
    %284 = vmatprep.subr.mxu0 0.0
    %285 = vmatpush1.msra.mxu0 0.0
    %286 = vmatprep.subr.mxu0 0.0
    %287 = vmatpush1.msra.mxu0 0.0
    %288 = vmatprep.subr.mxu0 0.0
    %289 = vmatpush1.msra.mxu0 0.0
    %290 = vmatprep.subr.mxu0 0.0
    %291 = vmatpush1.msra.mxu0 0.0
    %292 = vmatprep.subr.mxu0 0.0
    %293 = vmatpush1.msra.mxu0 0.0
    %294 = vmatprep.subr.mxu0 0.0
    %295 = vmatpush1.msra.mxu0 0.0
    %296 = vmatprep.subr.mxu0 0.0
    %297 = vmatpush1.msra.mxu0 0.0
    %298 = vmatprep.subr.mxu0 0.0
    %299 = vmatpush1.msra.mxu0 0.0
    %300 = vmatprep.subr.mxu0 0.0
    %301 = vmatpush1.msra.mxu0 0.0
    %302 = vmatprep.subr.mxu0 0.0
    %303 = vmatpush1.msra.mxu0 0.0
    %304 = vmatprep.subr.mxu0 0.0
    %305 = vmatpush1.msra.mxu0 0.0
    %306 = vmatprep.subr.mxu0 0.0
    %307 = vmatpush1.msra.mxu0 0.0
    %308 = vmatprep.subr.mxu0 0.0
    %309 = vmatpush1.msra.mxu0 0.0
    %310 = vmatprep.subr.mxu0 0.0
    %311 = vmatpush1.msra.mxu0 0.0
    %312 = vmatprep.subr.mxu0 0.0
    %313 = vmatpush1.msra.mxu0 0.0
    %314 = vmatprep.subr.mxu0 0.0
    %315 = vmatpush1.msra.mxu0 0.0
    %316 = vmatprep.mubr.f32.mxu0 0.0
    %317 = vmatmul.mubr.f32.gmra.mrb[0].mxu0 %v250
    %v318 = vpop.f32.mrb[0].mxu0
    %v319 = vadd.f32 %v246, %v318
    %v320 = vpop.f32.mrb[0].mxu0
    %321 = vdwg.mxu0
    %v323 = vlaneseq
    %v324 = vshrl.u32 %v323, 7
    %v325 = vsub.s32 0, %v324
    %v326 = vrot.slane %v241, %v325
    %328 = vmatprep.subr.mxu0 0.0
    %329 = vmatpush1.msra.mxu0 %v237
    %330 = vmatprep.subr.mxu0 0.0
    %331 = vmatpush1.msra.mxu0 %v238
    %332 = vmatprep.subr.mxu0 0.0
    %333 = vmatpush1.msra.mxu0 %v239
    %334 = vmatprep.subr.mxu0 0.0
    %335 = vmatpush1.msra.mxu0 %v240
    %336 = vmatprep.subr.mxu0 0.0
    %337 = vmatpush1.msra.mxu0 0.0
    %338 = vmatprep.subr.mxu0 0.0
    %339 = vmatpush1.msra.mxu0 0.0
    %340 = vmatprep.subr.mxu0 0.0
    %341 = vmatpush1.msra.mxu0 0.0
    %342 = vmatprep.subr.mxu0 0.0
    %343 = vmatpush1.msra.mxu0 0.0
    %344 = vmatprep.subr.mxu0 0.0
    %345 = vmatpush1.msra.mxu0 0.0
    %346 = vmatprep.subr.mxu0 0.0
    %347 = vmatpush1.msra.mxu0 0.0
    %348 = vmatprep.subr.mxu0 0.0
    %349 = vmatpush1.msra.mxu0 0.0
    %350 = vmatprep.subr.mxu0 0.0
    %351 = vmatpush1.msra.mxu0 0.0
    %352 = vmatprep.subr.mxu0 0.0
    %353 = vmatpush1.msra.mxu0 0.0
    %354 = vmatprep.subr.mxu0 0.0
    %355 = vmatpush1.msra.mxu0 0.0
    %356 = vmatprep.subr.mxu0 0.0
    %357 = vmatpush1.msra.mxu0 0.0
    %358 = vmatprep.subr.mxu0 0.0
    %359 = vmatpush1.msra.mxu0 0.0
    %360 = vmatprep.subr.mxu0 0.0
    %361 = vmatpush1.msra.mxu0 0.0
    %362 = vmatprep.subr.mxu0 0.0
    %363 = vmatpush1.msra.mxu0 0.0
    %364 = vmatprep.subr.mxu0 0.0
    %365 = vmatpush1.msra.mxu0 0.0
    %366 = vmatprep.subr.mxu0 0.0
    %367 = vmatpush1.msra.mxu0 0.0
    %368 = vmatprep.subr.mxu0 0.0
    %369 = vmatpush1.msra.mxu0 0.0
    %370 = vmatprep.subr.mxu0 0.0
    %371 = vmatpush1.msra.mxu0 0.0
    %372 = vmatprep.subr.mxu0 0.0
    %373 = vmatpush1.msra.mxu0 0.0
    %374 = vmatprep.subr.mxu0 0.0
    %375 = vmatpush1.msra.mxu0 0.0
    %376 = vmatprep.subr.mxu0 0.0
    %377 = vmatpush1.msra.mxu0 0.0
    %378 = vmatprep.subr.mxu0 0.0
    %379 = vmatpush1.msra.mxu0 0.0
    %380 = vmatprep.subr.mxu0 0.0
    %381 = vmatpush1.msra.mxu0 0.0
    %382 = vmatprep.subr.mxu0 0.0
    %383 = vmatpush1.msra.mxu0 0.0
    %384 = vmatprep.subr.mxu0 0.0
    %385 = vmatpush1.msra.mxu0 0.0
    %386 = vmatprep.subr.mxu0 0.0
    %387 = vmatpush1.msra.mxu0 0.0
    %388 = vmatprep.subr.mxu0 0.0
    %389 = vmatpush1.msra.mxu0 0.0
    %390 = vmatprep.subr.mxu0 0.0
    %391 = vmatpush1.msra.mxu0 0.0
    %392 = vmatprep.mubr.f32.mxu0 0.0
    %393 = vmatmul.mubr.f32.gmra.mrb[0].mxu0 %v250
    %v394 = vpop.f32.mrb[0].mxu0
    %v395 = vadd.f32 %v326, %v394
    %v396 = vpop.f32.mrb[0].mxu0
    %397 = vdwg.mxu0
    %v398 = vadd.f32 %v140, %v319
    %v399 = vxor.u32 %v398, 2147483648
    %v400 = vmul.f32 %v399, 1.442695
    %v401 = vpow.pop %v400
    %v402 = vadd.f32 %v401, 1.0
    %v403 = vrcp.pop %v402
    %v404 = vmul.f32 1.0, %v403
    %406 = vrot.lane.b32.xlu0 %v319, 64
    %v407 = vpop.permute.xlu0 %406
    %v409 = vmul.f32 %v404, %v407
    %411 = vrot.lane.b32.xlu0 %v409, 64
    %v412 = vpop.permute.xlu0 %411
    %v414 = vadd.f32 %v140, %v412
    %v415 = vtanh.pop %v414
    %v416 = vsub.f32 1.0, %v404
    %418 = vrot.lane.b32.xlu0 %v415, 96
    %v419 = vpop.permute.xlu0 %418
    %v421 = vmul.f32 %v416, %v419
    %v422 = vmul.f32 %v404, 0.0
    %v423 = vadd.f32 %v421, %v422
    %v425 = vrot.slane %v395, 2
    %v427 = vadd.f32 %v229, %v425
    %v428 = vxor.u32 %v427, 2147483648
    %v429 = vmul.f32 %v428, 1.442695
    %v430 = vpow.pop %v429
    %v431 = vadd.f32 %v430, 1.0
    %v432 = vrcp.pop %v431
    %v433 = vmul.f32 1.0, %v432
    %434 = vrot.lane.b32.xlu0 %v425, 64
    %v435 = vpop.permute.xlu0 %434
    %v437 = vmul.f32 %v433, %v435
    %439 = vrot.lane.b32.xlu0 %v437, 64
    %v440 = vpop.permute.xlu0 %439
    %v442 = vadd.f32 %v229, %v440
    %v443 = vtanh.pop %v442
    %v444 = vsub.f32 1.0, %v433
    %446 = vrot.lane.b32.xlu0 %v443, 96
    %v447 = vpop.permute.xlu0 %446
    %v449 = vmul.f32 %v444, %v447
    %v450 = vmul.f32 %v433, 0.0
    %v451 = vadd.f32 %v449, %v450
    %v454 = vunpack.c.l.s4 1966171168
    %v455 = vunpack.c.0.s8 %v454
    %v456 = vlaneseq
    %v457 = vshrl.u32 %v456, 7
    %v458 = vsub.s32 %v455, %v457
    %v459 = vrot.slane %v423, %v458
    %v460 = vcombine.high %v459, %v459
    %v462 = vunpack.c.l.s4 1966171168
    %v463 = vunpack.c.0.s8 %v462
    %v464 = vlaneseq
    %v465 = vshrl.u32 %v464, 7
    %v466 = vsub.s32 %v463, %v465
    %v467 = vrot.slane %v459, %v466
    %v469 = vunpack.c.l.s4 1966171168
    %v470 = vunpack.c.0.s8 %v469
    %v471 = vlaneseq
    %v472 = vshrl.u32 %v471, 7
    %v473 = vsub.s32 %v470, %v472
    %v474 = vrot.slane %v460, %v473
    %v475 = vlaneseq
    %v476 = vshrl.u32 %v475, 7
    %v477 = vsub.s32 0, %v476
    %v478 = vrot.slane %v467, %v477
    %v479 = vlaneseq
    %v480 = vshrl.u32 %v479, 7
    %v481 = vsub.s32 0, %v480
    %v482 = vrot.slane %v474, %v481
    %483 = vrot.lane.b32.xlu0 %v478, 96
    %v484 = vpop.permute.xlu0 %483
    %485 = vrot.lane.b32.xlu0 %v482, 96
    %v486 = vpop.permute.xlu0 %485
    %vm489 = vcmask 253952
    %490 = vst.msk [vmem:[#allocation2] sm:$0x1] %vm489, %v484
    %491 = vst.msk [vmem:[#allocation2 + $0x8] sm:$0x1] %vm489, %v486
    %v493 = vcombine.high %v451, %v451
    %v495 = vunpack.c.l.s4 1966171168
    %v496 = vunpack.c.0.s8 %v495
    %v497 = vlaneseq
    %v498 = vshrl.u32 %v497, 7
    %v499 = vsub.s32 %v496, %v498
    %v500 = vrot.slane %v493, %v499
    %v501 = vcombine.high %v500, %v500
    %v503 = vunpack.c.l.s4 1966171168
    %v504 = vunpack.c.0.s8 %v503
    %v505 = vlaneseq
    %v506 = vshrl.u32 %v505, 7
    %v507 = vsub.s32 %v504, %v506
    %v508 = vrot.slane %v500, %v507
    %v510 = vunpack.c.l.s4 1966171168
    %v511 = vunpack.c.0.s8 %v510
    %v512 = vlaneseq
    %v513 = vshrl.u32 %v512, 7
    %v514 = vsub.s32 %v511, %v513
    %v515 = vrot.slane %v501, %v514
    %v516 = vcombine.high %v508, %v508
    %v517 = vcombine.high %v515, %v515
    %vm520 = vcmask 516352
    %521 = vst.msk [vmem:[#allocation2 + $0x7] sm:$0x1] %vm520, %v516
    %522 = vst.msk [vmem:[#allocation2 + $0xf] sm:$0x1] %vm520, %v517
    %523 = vrot.lane.b32.xlu0 %v423, 96
    %v524 = vpop.permute.xlu0 %523
    %v525 = vsel %vm248, %v524, 0
    %527 = vmatprep.subr.mxu0 0.0
    %528 = vmatpush1.msra.mxu0 %v232
    %529 = vmatprep.subr.mxu0 0.0
    %530 = vmatpush1.msra.mxu0 %v233
    %531 = vmatprep.subr.mxu0 0.0
    %532 = vmatpush1.msra.mxu0 %v234
    %533 = vmatprep.subr.mxu0 0.0
    %534 = vmatpush1.msra.mxu0 %v235
    %535 = vmatprep.subr.mxu0 0.0
    %536 = vmatpush1.msra.mxu0 0.0
    %537 = vmatprep.subr.mxu0 0.0
    %538 = vmatpush1.msra.mxu0 0.0
    %539 = vmatprep.subr.mxu0 0.0
    %540 = vmatpush1.msra.mxu0 0.0
    %541 = vmatprep.subr.mxu0 0.0
    %542 = vmatpush1.msra.mxu0 0.0
    %543 = vmatprep.subr.mxu0 0.0
    %544 = vmatpush1.msra.mxu0 0.0
    %545 = vmatprep.subr.mxu0 0.0
    %546 = vmatpush1.msra.mxu0 0.0
    %547 = vmatprep.subr.mxu0 0.0
    %548 = vmatpush1.msra.mxu0 0.0
    %549 = vmatprep.subr.mxu0 0.0
    %550 = vmatpush1.msra.mxu0 0.0
    %551 = vmatprep.subr.mxu0 0.0
    %552 = vmatpush1.msra.mxu0 0.0
    %553 = vmatprep.subr.mxu0 0.0
    %554 = vmatpush1.msra.mxu0 0.0
    %555 = vmatprep.subr.mxu0 0.0
    %556 = vmatpush1.msra.mxu0 0.0
    %557 = vmatprep.subr.mxu0 0.0
    %558 = vmatpush1.msra.mxu0 0.0
    %559 = vmatprep.subr.mxu0 0.0
    %560 = vmatpush1.msra.mxu0 0.0
    %561 = vmatprep.subr.mxu0 0.0
    %562 = vmatpush1.msra.mxu0 0.0
    %563 = vmatprep.subr.mxu0 0.0
    %564 = vmatpush1.msra.mxu0 0.0
    %565 = vmatprep.subr.mxu0 0.0
    %566 = vmatpush1.msra.mxu0 0.0
    %567 = vmatprep.subr.mxu0 0.0
    %568 = vmatpush1.msra.mxu0 0.0
    %569 = vmatprep.subr.mxu0 0.0
    %570 = vmatpush1.msra.mxu0 0.0
    %571 = vmatprep.subr.mxu0 0.0
    %572 = vmatpush1.msra.mxu0 0.0
    %573 = vmatprep.subr.mxu0 0.0
    %574 = vmatpush1.msra.mxu0 0.0
    %575 = vmatprep.subr.mxu0 0.0
    %576 = vmatpush1.msra.mxu0 0.0
    %577 = vmatprep.subr.mxu0 0.0
    %578 = vmatpush1.msra.mxu0 0.0
    %579 = vmatprep.subr.mxu0 0.0
    %580 = vmatpush1.msra.mxu0 0.0
    %581 = vmatprep.subr.mxu0 0.0
    %582 = vmatpush1.msra.mxu0 0.0
    %583 = vmatprep.subr.mxu0 0.0
    %584 = vmatpush1.msra.mxu0 0.0
    %585 = vmatprep.subr.mxu0 0.0
    %586 = vmatpush1.msra.mxu0 0.0
    %587 = vmatprep.subr.mxu0 0.0
    %588 = vmatpush1.msra.mxu0 0.0
    %589 = vmatprep.subr.mxu0 0.0
    %590 = vmatpush1.msra.mxu0 0.0
    %591 = vmatprep.mubr.f32.mxu0 0.0
    %592 = vmatmul.mubr.f32.gmra.mrb[0].mxu0 %v525
    %v593 = vpop.f32.mrb[0].mxu0
    %v594 = vadd.f32 %v246, %v593
    %v595 = vpop.f32.mrb[0].mxu0
    %596 = vdwg.mxu0
    %v597 = vrot.slane %v451, 6
    %598 = vrot.lane.b32.xlu0 %v597, 96
    %v599 = vpop.permute.xlu0 %598
    %v600 = vsel %vm248, %v599, 0
    %602 = vmatprep.subr.mxu0 0.0
    %603 = vmatpush1.msra.mxu0 %v237
    %604 = vmatprep.subr.mxu0 0.0
    %605 = vmatpush1.msra.mxu0 %v238
    %606 = vmatprep.subr.mxu0 0.0
    %607 = vmatpush1.msra.mxu0 %v239
    %608 = vmatprep.subr.mxu0 0.0
    %609 = vmatpush1.msra.mxu0 %v240
    %610 = vmatprep.subr.mxu0 0.0
    %611 = vmatpush1.msra.mxu0 0.0
    %612 = vmatprep.subr.mxu0 0.0
    %613 = vmatpush1.msra.mxu0 0.0
    %614 = vmatprep.subr.mxu0 0.0
    %615 = vmatpush1.msra.mxu0 0.0
    %616 = vmatprep.subr.mxu0 0.0
    %617 = vmatpush1.msra.mxu0 0.0
    %618 = vmatprep.subr.mxu0 0.0
    %619 = vmatpush1.msra.mxu0 0.0
    %620 = vmatprep.subr.mxu0 0.0
    %621 = vmatpush1.msra.mxu0 0.0
    %622 = vmatprep.subr.mxu0 0.0
    %623 = vmatpush1.msra.mxu0 0.0
    %624 = vmatprep.subr.mxu0 0.0
    %625 = vmatpush1.msra.mxu0 0.0
    %626 = vmatprep.subr.mxu0 0.0
    %627 = vmatpush1.msra.mxu0 0.0
    %628 = vmatprep.subr.mxu0 0.0
    %629 = vmatpush1.msra.mxu0 0.0
    %630 = vmatprep.subr.mxu0 0.0
    %631 = vmatpush1.msra.mxu0 0.0
    %632 = vmatprep.subr.mxu0 0.0
    %633 = vmatpush1.msra.mxu0 0.0
    %634 = vmatprep.subr.mxu0 0.0
    %635 = vmatpush1.msra.mxu0 0.0
    %636 = vmatprep.subr.mxu0 0.0
    %637 = vmatpush1.msra.mxu0 0.0
    %638 = vmatprep.subr.mxu0 0.0
    %639 = vmatpush1.msra.mxu0 0.0
    %640 = vmatprep.subr.mxu0 0.0
    %641 = vmatpush1.msra.mxu0 0.0
    %642 = vmatprep.subr.mxu0 0.0
    %643 = vmatpush1.msra.mxu0 0.0
    %644 = vmatprep.subr.mxu0 0.0
    %645 = vmatpush1.msra.mxu0 0.0
    %646 = vmatprep.subr.mxu0 0.0
    %647 = vmatpush1.msra.mxu0 0.0
    %648 = vmatprep.subr.mxu0 0.0
    %649 = vmatpush1.msra.mxu0 0.0
    %650 = vmatprep.subr.mxu0 0.0
    %651 = vmatpush1.msra.mxu0 0.0
    %652 = vmatprep.subr.mxu0 0.0
    %653 = vmatpush1.msra.mxu0 0.0
    %654 = vmatprep.subr.mxu0 0.0
    %655 = vmatpush1.msra.mxu0 0.0
    %656 = vmatprep.subr.mxu0 0.0
    %657 = vmatpush1.msra.mxu0 0.0
    %658 = vmatprep.subr.mxu0 0.0
    %659 = vmatpush1.msra.mxu0 0.0
    %660 = vmatprep.subr.mxu0 0.0
    %661 = vmatpush1.msra.mxu0 0.0
    %662 = vmatprep.subr.mxu0 0.0
    %663 = vmatpush1.msra.mxu0 0.0
    %664 = vmatprep.subr.mxu0 0.0
    %665 = vmatpush1.msra.mxu0 0.0
    %666 = vmatprep.mubr.f32.mxu0 0.0
    %667 = vmatmul.mubr.f32.gmra.mrb[0].mxu0 %v600
    %v668 = vpop.f32.mrb[0].mxu0
    %v669 = vadd.f32 %v326, %v668
    %v670 = vpop.f32.mrb[0].mxu0
    %671 = vdwg.mxu0
    %v673 = vrot.slane %v594, 6
    %v675 = vadd.f32 %v140, %v673
    %v676 = vxor.u32 %v675, 2147483648
    %v677 = vmul.f32 %v676, 1.442695
    %v678 = vpow.pop %v677
    %v679 = vadd.f32 %v678, 1.0
    %v680 = vrcp.pop %v679
    %v681 = vmul.f32 1.0, %v680
    %682 = vrot.lane.b32.xlu0 %v673, 64
    %v683 = vpop.permute.xlu0 %682
    %v685 = vmul.f32 %v681, %v683
    %687 = vrot.lane.b32.xlu0 %v685, 64
    %v688 = vpop.permute.xlu0 %687
    %v690 = vadd.f32 %v140, %v688
    %v691 = vtanh.pop %v690
    %v692 = vsub.f32 1.0, %v681
    %694 = vrot.lane.b32.xlu0 %v691, 96
    %v695 = vpop.permute.xlu0 %694
    %v697 = vmul.f32 %v692, %v695
    %v698 = vrot.slane %v423, 6
    %v700 = vmul.f32 %v681, %v698
    %v701 = vadd.f32 %v697, %v700
    %v703 = vrot.slane %v669, 4
    %v705 = vadd.f32 %v229, %v703
    %v706 = vxor.u32 %v705, 2147483648
    %v707 = vmul.f32 %v706, 1.442695
    %v708 = vpow.pop %v707
    %v709 = vadd.f32 %v708, 1.0
    %v710 = vrcp.pop %v709
    %v711 = vmul.f32 1.0, %v710
    %712 = vrot.lane.b32.xlu0 %v703, 64
    %v713 = vpop.permute.xlu0 %712
    %v715 = vmul.f32 %v711, %v713
    %717 = vrot.lane.b32.xlu0 %v715, 64
    %v718 = vpop.permute.xlu0 %717
    %v720 = vadd.f32 %v229, %v718
    %v721 = vtanh.pop %v720
    %v722 = vsub.f32 1.0, %v711
    %724 = vrot.lane.b32.xlu0 %v721, 96
    %v725 = vpop.permute.xlu0 %724
    %v727 = vmul.f32 %v722, %v725
    %v728 = vrot.slane %v451, 2
    %v730 = vmul.f32 %v711, %v728
    %v731 = vadd.f32 %v727, %v730
    %v734 = vunpack.c.l.s4 1966171168
    %v735 = vunpack.c.0.s8 %v734
    %v736 = vlaneseq
    %v737 = vshrl.u32 %v736, 7
    %v738 = vsub.s32 %v735, %v737
    %v739 = vrot.slane %v701, %v738
    %v740 = vcombine.high %v739, %v739
    %v742 = vunpack.c.l.s4 1966171168
    %v743 = vunpack.c.0.s8 %v742
    %v744 = vlaneseq
    %v745 = vshrl.u32 %v744, 7
    %v746 = vsub.s32 %v743, %v745
    %v747 = vrot.slane %v739, %v746
    %v749 = vunpack.c.l.s4 1966171168
    %v750 = vunpack.c.0.s8 %v749
    %v751 = vlaneseq
    %v752 = vshrl.u32 %v751, 7
    %v753 = vsub.s32 %v750, %v752
    %v754 = vrot.slane %v740, %v753
    %v755 = vcombine.high %v747, %v747
    %v756 = vcombine.high %v754, %v754
    %v757 = vlaneseq
    %v758 = vshrl.u32 %v757, 7
    %v759 = vsub.s32 0, %v758
    %v760 = vrot.slane %v755, %v759
    %v761 = vlaneseq
    %v762 = vshrl.u32 %v761, 7
    %v763 = vsub.s32 0, %v762
    %v764 = vrot.slane %v756, %v763
    %765 = vrot.lane.b32.xlu0 %v760, 96
    %v766 = vpop.permute.xlu0 %765
    %767 = vrot.lane.b32.xlu0 %v764, 96
    %v768 = vpop.permute.xlu0 %767
    %771 = vst.msk [vmem:[#allocation2 + $0x1] sm:$0x1] %vm489, %v766
    %772 = vst.msk [vmem:[#allocation2 + $0x9] sm:$0x1] %vm489, %v768
    %v774 = vcombine.high %v731, %v731
    %v776 = vunpack.c.l.s4 1966171168
    %v777 = vunpack.c.0.s8 %v776
    %v778 = vlaneseq
    %v779 = vshrl.u32 %v778, 7
    %v780 = vsub.s32 %v777, %v779
    %v781 = vrot.slane %v774, %v780
    %v782 = vcombine.high %v781, %v781
    %v784 = vunpack.c.l.s4 1966171168
    %v785 = vunpack.c.0.s8 %v784
    %v786 = vlaneseq
    %v787 = vshrl.u32 %v786, 7
    %v788 = vsub.s32 %v785, %v787
    %v789 = vrot.slane %v781, %v788
    %v791 = vunpack.c.l.s4 1966171168
    %v792 = vunpack.c.0.s8 %v791
    %v793 = vlaneseq
    %v794 = vshrl.u32 %v793, 7
    %v795 = vsub.s32 %v792, %v794
    %v796 = vrot.slane %v782, %v795
    %799 = vst.msk [vmem:[#allocation2 + $0x6] sm:$0x1] %vm520, %v789
    %800 = vst.msk [vmem:[#allocation2 + $0xe] sm:$0x1] %vm520, %v796
    %v801 = vrot.slane %v701, 2
    %802 = vrot.lane.b32.xlu0 %v801, 96
    %v803 = vpop.permute.xlu0 %802
    %v804 = vsel %vm248, %v803, 0
    %806 = vmatprep.subr.mxu0 0.0
    %807 = vmatpush1.msra.mxu0 %v232
    %808 = vmatprep.subr.mxu0 0.0
    %809 = vmatpush1.msra.mxu0 %v233
    %810 = vmatprep.subr.mxu0 0.0
    %811 = vmatpush1.msra.mxu0 %v234
    %812 = vmatprep.subr.mxu0 0.0
    %813 = vmatpush1.msra.mxu0 %v235
    %814 = vmatprep.subr.mxu0 0.0
    %815 = vmatpush1.msra.mxu0 0.0
    %816 = vmatprep.subr.mxu0 0.0
    %817 = vmatpush1.msra.mxu0 0.0
    %818 = vmatprep.subr.mxu0 0.0
    %819 = vmatpush1.msra.mxu0 0.0
    %820 = vmatprep.subr.mxu0 0.0
    %821 = vmatpush1.msra.mxu0 0.0
    %822 = vmatprep.subr.mxu0 0.0
    %823 = vmatpush1.msra.mxu0 0.0
    %824 = vmatprep.subr.mxu0 0.0
    %825 = vmatpush1.msra.mxu0 0.0
    %826 = vmatprep.subr.mxu0 0.0
    %827 = vmatpush1.msra.mxu0 0.0
    %828 = vmatprep.subr.mxu0 0.0
    %829 = vmatpush1.msra.mxu0 0.0
    %830 = vmatprep.subr.mxu0 0.0
    %831 = vmatpush1.msra.mxu0 0.0
    %832 = vmatprep.subr.mxu0 0.0
    %833 = vmatpush1.msra.mxu0 0.0
    %834 = vmatprep.subr.mxu0 0.0
    %835 = vmatpush1.msra.mxu0 0.0
    %836 = vmatprep.subr.mxu0 0.0
    %837 = vmatpush1.msra.mxu0 0.0
    %838 = vmatprep.subr.mxu0 0.0
    %839 = vmatpush1.msra.mxu0 0.0
    %840 = vmatprep.subr.mxu0 0.0
    %841 = vmatpush1.msra.mxu0 0.0
    %842 = vmatprep.subr.mxu0 0.0
    %843 = vmatpush1.msra.mxu0 0.0
    %844 = vmatprep.subr.mxu0 0.0
    %845 = vmatpush1.msra.mxu0 0.0
    %846 = vmatprep.subr.mxu0 0.0
    %847 = vmatpush1.msra.mxu0 0.0
    %848 = vmatprep.subr.mxu0 0.0
    %849 = vmatpush1.msra.mxu0 0.0
    %850 = vmatprep.subr.mxu0 0.0
    %851 = vmatpush1.msra.mxu0 0.0
    %852 = vmatprep.subr.mxu0 0.0
    %853 = vmatpush1.msra.mxu0 0.0
    %854 = vmatprep.subr.mxu0 0.0
    %855 = vmatpush1.msra.mxu0 0.0
    %856 = vmatprep.subr.mxu0 0.0
    %857 = vmatpush1.msra.mxu0 0.0
    %858 = vmatprep.subr.mxu0 0.0
    %859 = vmatpush1.msra.mxu0 0.0
    %860 = vmatprep.subr.mxu0 0.0
    %861 = vmatpush1.msra.mxu0 0.0
    %862 = vmatprep.subr.mxu0 0.0
    %863 = vmatpush1.msra.mxu0 0.0
    %864 = vmatprep.subr.mxu0 0.0
    %865 = vmatpush1.msra.mxu0 0.0
    %866 = vmatprep.subr.mxu0 0.0
    %867 = vmatpush1.msra.mxu0 0.0
    %868 = vmatprep.subr.mxu0 0.0
    %869 = vmatpush1.msra.mxu0 0.0
    %870 = vmatprep.mubr.f32.mxu0 0.0
    %871 = vmatmul.mubr.f32.gmra.mrb[0].mxu0 %v804
    %v872 = vpop.f32.mrb[0].mxu0
    %v873 = vadd.f32 %v246, %v872
    %v874 = vpop.f32.mrb[0].mxu0
    %875 = vdwg.mxu0
    %v876 = vrot.slane %v731, 4
    %877 = vrot.lane.b32.xlu0 %v876, 96
    %v878 = vpop.permute.xlu0 %877
    %v879 = vsel %vm248, %v878, 0
    %881 = vmatprep.subr.mxu0 0.0
    %882 = vmatpush1.msra.mxu0 %v237
    %883 = vmatprep.subr.mxu0 0.0
    %884 = vmatpush1.msra.mxu0 %v238
    %885 = vmatprep.subr.mxu0 0.0
    %886 = vmatpush1.msra.mxu0 %v239
    %887 = vmatprep.subr.mxu0 0.0
    %888 = vmatpush1.msra.mxu0 %v240
    %889 = vmatprep.subr.mxu0 0.0
    %890 = vmatpush1.msra.mxu0 0.0
    %891 = vmatprep.subr.mxu0 0.0
    %892 = vmatpush1.msra.mxu0 0.0
    %893 = vmatprep.subr.mxu0 0.0
    %894 = vmatpush1.msra.mxu0 0.0
    %895 = vmatprep.subr.mxu0 0.0
    %896 = vmatpush1.msra.mxu0 0.0
    %897 = vmatprep.subr.mxu0 0.0
    %898 = vmatpush1.msra.mxu0 0.0
    %899 = vmatprep.subr.mxu0 0.0
    %900 = vmatpush1.msra.mxu0 0.0
    %901 = vmatprep.subr.mxu0 0.0
    %902 = vmatpush1.msra.mxu0 0.0
    %903 = vmatprep.subr.mxu0 0.0
    %904 = vmatpush1.msra.mxu0 0.0
    %905 = vmatprep.subr.mxu0 0.0
    %906 = vmatpush1.msra.mxu0 0.0
    %907 = vmatprep.subr.mxu0 0.0
    %908 = vmatpush1.msra.mxu0 0.0
    %909 = vmatprep.subr.mxu0 0.0
    %910 = vmatpush1.msra.mxu0 0.0
    %911 = vmatprep.subr.mxu0 0.0
    %912 = vmatpush1.msra.mxu0 0.0
    %913 = vmatprep.subr.mxu0 0.0
    %914 = vmatpush1.msra.mxu0 0.0
    %915 = vmatprep.subr.mxu0 0.0
    %916 = vmatpush1.msra.mxu0 0.0
    %917 = vmatprep.subr.mxu0 0.0
    %918 = vmatpush1.msra.mxu0 0.0
    %919 = vmatprep.subr.mxu0 0.0
    %920 = vmatpush1.msra.mxu0 0.0
    %921 = vmatprep.subr.mxu0 0.0
    %922 = vmatpush1.msra.mxu0 0.0
    %923 = vmatprep.subr.mxu0 0.0
    %924 = vmatpush1.msra.mxu0 0.0
    %925 = vmatprep.subr.mxu0 0.0
    %926 = vmatpush1.msra.mxu0 0.0
    %927 = vmatprep.subr.mxu0 0.0
    %928 = vmatpush1.msra.mxu0 0.0
    %929 = vmatprep.subr.mxu0 0.0
    %930 = vmatpush1.msra.mxu0 0.0
    %931 = vmatprep.subr.mxu0 0.0
    %932 = vmatpush1.msra.mxu0 0.0
    %933 = vmatprep.subr.mxu0 0.0
    %934 = vmatpush1.msra.mxu0 0.0
    %935 = vmatprep.subr.mxu0 0.0
    %936 = vmatpush1.msra.mxu0 0.0
    %937 = vmatprep.subr.mxu0 0.0
    %938 = vmatpush1.msra.mxu0 0.0
    %939 = vmatprep.subr.mxu0 0.0
    %940 = vmatpush1.msra.mxu0 0.0
    %941 = vmatprep.subr.mxu0 0.0
    %942 = vmatpush1.msra.mxu0 0.0
    %943 = vmatprep.subr.mxu0 0.0
    %944 = vmatpush1.msra.mxu0 0.0
    %945 = vmatprep.mubr.f32.mxu0 0.0
    %946 = vmatmul.mubr.f32.gmra.mrb[0].mxu0 %v879
    %v947 = vpop.f32.mrb[0].mxu0
    %v948 = vadd.f32 %v326, %v947
    %v949 = vpop.f32.mrb[0].mxu0
    %950 = vdwg.mxu0
    %v952 = vrot.slane %v873, 4
    %v954 = vadd.f32 %v140, %v952
    %v955 = vxor.u32 %v954, 2147483648
    %v956 = vmul.f32 %v955, 1.442695
    %v957 = vpow.pop %v956
    %v958 = vadd.f32 %v957, 1.0
    %v959 = vrcp.pop %v958
    %v960 = vmul.f32 1.0, %v959
    %961 = vrot.lane.b32.xlu0 %v952, 64
    %v962 = vpop.permute.xlu0 %961
    %v964 = vmul.f32 %v960, %v962
    %966 = vrot.lane.b32.xlu0 %v964, 64
    %v967 = vpop.permute.xlu0 %966
    %v969 = vadd.f32 %v140, %v967
    %v970 = vtanh.pop %v969
    %v971 = vsub.f32 1.0, %v960
    %973 = vrot.lane.b32.xlu0 %v970, 96
    %v974 = vpop.permute.xlu0 %973
    %v976 = vmul.f32 %v971, %v974
    %v977 = vrot.slane %v701, 6
    %v979 = vmul.f32 %v960, %v977
    %v980 = vadd.f32 %v976, %v979
    %v982 = vrot.slane %v948, 6
    %v984 = vadd.f32 %v229, %v982
    %v985 = vxor.u32 %v984, 2147483648
    %v986 = vmul.f32 %v985, 1.442695
    %v987 = vpow.pop %v986
    %v988 = vadd.f32 %v987, 1.0
    %v989 = vrcp.pop %v988
    %v990 = vmul.f32 1.0, %v989
    %991 = vrot.lane.b32.xlu0 %v982, 64
    %v992 = vpop.permute.xlu0 %991
    %v994 = vmul.f32 %v990, %v992
    %996 = vrot.lane.b32.xlu0 %v994, 64
    %v997 = vpop.permute.xlu0 %996
    %v999 = vadd.f32 %v229, %v997
    %v1000 = vtanh.pop %v999
    %v1001 = vsub.f32 1.0, %v990
    %1003 = vrot.lane.b32.xlu0 %v1000, 96
    %v1004 = vpop.permute.xlu0 %1003
    %v1006 = vmul.f32 %v1001, %v1004
    %v1007 = vrot.slane %v731, 2
    %v1009 = vmul.f32 %v990, %v1007
    %v1010 = vadd.f32 %v1006, %v1009
    %v1012 = vcombine.high %v980, %v980
    %v1014 = vunpack.c.l.s4 1966171168
    %v1015 = vunpack.c.0.s8 %v1014
    %v1016 = vlaneseq
    %v1017 = vshrl.u32 %v1016, 7
    %v1018 = vsub.s32 %v1015, %v1017
    %v1019 = vrot.slane %v1012, %v1018
    %v1020 = vcombine.high %v1019, %v1019
    %v1022 = vunpack.c.l.s4 1966171168
    %v1023 = vunpack.c.0.s8 %v1022
    %v1024 = vlaneseq
    %v1025 = vshrl.u32 %v1024, 7
    %v1026 = vsub.s32 %v1023, %v1025
    %v1027 = vrot.slane %v1019, %v1026
    %v1029 = vunpack.c.l.s4 1966171168
    %v1030 = vunpack.c.0.s8 %v1029
    %v1031 = vlaneseq
    %v1032 = vshrl.u32 %v1031, 7
    %v1033 = vsub.s32 %v1030, %v1032
    %v1034 = vrot.slane %v1020, %v1033
    %v1035 = vlaneseq
    %v1036 = vshrl.u32 %v1035, 7
    %v1037 = vsub.s32 0, %v1036
    %v1038 = vrot.slane %v1027, %v1037
    %v1039 = vlaneseq
    %v1040 = vshrl.u32 %v1039, 7
    %v1041 = vsub.s32 0, %v1040
    %v1042 = vrot.slane %v1034, %v1041
    %1043 = vrot.lane.b32.xlu0 %v1038, 96
    %v1044 = vpop.permute.xlu0 %1043
    %1045 = vrot.lane.b32.xlu0 %v1042, 96
    %v1046 = vpop.permute.xlu0 %1045
    %1049 = vst.msk [vmem:[#allocation2 + $0x2] sm:$0x1] %vm489, %v1044
    %1050 = vst.msk [vmem:[#allocation2 + $0xa] sm:$0x1] %vm489, %v1046
    %v1053 = vunpack.c.l.s4 1966171168
    %v1054 = vunpack.c.0.s8 %v1053
    %v1055 = vlaneseq
    %v1056 = vshrl.u32 %v1055, 7
    %v1057 = vsub.s32 %v1054, %v1056
    %v1058 = vrot.slane %v1010, %v1057
    %v1059 = vcombine.high %v1058, %v1058
    %v1061 = vunpack.c.l.s4 1966171168
    %v1062 = vunpack.c.0.s8 %v1061
    %v1063 = vlaneseq
    %v1064 = vshrl.u32 %v1063, 7
    %v1065 = vsub.s32 %v1062, %v1064
    %v1066 = vrot.slane %v1058, %v1065
    %v1068 = vunpack.c.l.s4 1966171168
    %v1069 = vunpack.c.0.s8 %v1068
    %v1070 = vlaneseq
    %v1071 = vshrl.u32 %v1070, 7
    %v1072 = vsub.s32 %v1069, %v1071
    %v1073 = vrot.slane %v1059, %v1072
    %v1074 = vcombine.high %v1066, %v1066
    %v1075 = vcombine.high %v1073, %v1073
    %1078 = vst.msk [vmem:[#allocation2 + $0x5] sm:$0x1] %vm520, %v1074
    %1079 = vst.msk [vmem:[#allocation2 + $0xd] sm:$0x1] %vm520, %v1075
    %v1080 = vrot.slane %v980, 4
    %1081 = vrot.lane.b32.xlu0 %v1080, 96
    %v1082 = vpop.permute.xlu0 %1081
    %v1083 = vsel %vm248, %v1082, 0
    %1085 = vmatprep.subr.mxu0 0.0
    %1086 = vmatpush1.msra.mxu0 %v232
    %1087 = vmatprep.subr.mxu0 0.0
    %1088 = vmatpush1.msra.mxu0 %v233
    %1089 = vmatprep.subr.mxu0 0.0
    %1090 = vmatpush1.msra.mxu0 %v234
    %1091 = vmatprep.subr.mxu0 0.0
    %1092 = vmatpush1.msra.mxu0 %v235
    %1093 = vmatprep.subr.mxu0 0.0
    %1094 = vmatpush1.msra.mxu0 0.0
    %1095 = vmatprep.subr.mxu0 0.0
    %1096 = vmatpush1.msra.mxu0 0.0
    %1097 = vmatprep.subr.mxu0 0.0
    %1098 = vmatpush1.msra.mxu0 0.0
    %1099 = vmatprep.subr.mxu0 0.0
    %1100 = vmatpush1.msra.mxu0 0.0
    %1101 = vmatprep.subr.mxu0 0.0
    %1102 = vmatpush1.msra.mxu0 0.0
    %1103 = vmatprep.subr.mxu0 0.0
    %1104 = vmatpush1.msra.mxu0 0.0
    %1105 = vmatprep.subr.mxu0 0.0
    %1106 = vmatpush1.msra.mxu0 0.0
    %1107 = vmatprep.subr.mxu0 0.0
    %1108 = vmatpush1.msra.mxu0 0.0
    %1109 = vmatprep.subr.mxu0 0.0
    %1110 = vmatpush1.msra.mxu0 0.0
    %1111 = vmatprep.subr.mxu0 0.0
    %1112 = vmatpush1.msra.mxu0 0.0
    %1113 = vmatprep.subr.mxu0 0.0
    %1114 = vmatpush1.msra.mxu0 0.0
    %1115 = vmatprep.subr.mxu0 0.0
    %1116 = vmatpush1.msra.mxu0 0.0
    %1117 = vmatprep.subr.mxu0 0.0
    %1118 = vmatpush1.msra.mxu0 0.0
    %1119 = vmatprep.subr.mxu0 0.0
    %1120 = vmatpush1.msra.mxu0 0.0
    %1121 = vmatprep.subr.mxu0 0.0
    %1122 = vmatpush1.msra.mxu0 0.0
    %1123 = vmatprep.subr.mxu0 0.0
    %1124 = vmatpush1.msra.mxu0 0.0
    %1125 = vmatprep.subr.mxu0 0.0
    %1126 = vmatpush1.msra.mxu0 0.0
    %1127 = vmatprep.subr.mxu0 0.0
    %1128 = vmatpush1.msra.mxu0 0.0
    %1129 = vmatprep.subr.mxu0 0.0
    %1130 = vmatpush1.msra.mxu0 0.0
    %1131 = vmatprep.subr.mxu0 0.0
    %1132 = vmatpush1.msra.mxu0 0.0
    %1133 = vmatprep.subr.mxu0 0.0
    %1134 = vmatpush1.msra.mxu0 0.0
    %1135 = vmatprep.subr.mxu0 0.0
    %1136 = vmatpush1.msra.mxu0 0.0
    %1137 = vmatprep.subr.mxu0 0.0
    %1138 = vmatpush1.msra.mxu0 0.0
    %1139 = vmatprep.subr.mxu0 0.0
    %1140 = vmatpush1.msra.mxu0 0.0
    %1141 = vmatprep.subr.mxu0 0.0
    %1142 = vmatpush1.msra.mxu0 0.0
    %1143 = vmatprep.subr.mxu0 0.0
    %1144 = vmatpush1.msra.mxu0 0.0
    %1145 = vmatprep.subr.mxu0 0.0
    %1146 = vmatpush1.msra.mxu0 0.0
    %1147 = vmatprep.subr.mxu0 0.0
    %1148 = vmatpush1.msra.mxu0 0.0
    %1149 = vmatprep.mubr.f32.mxu0 0.0
    %1150 = vmatmul.mubr.f32.gmra.mrb[0].mxu0 %v1083
    %v1151 = vpop.f32.mrb[0].mxu0
    %v1152 = vadd.f32 %v246, %v1151
    %v1153 = vpop.f32.mrb[0].mxu0
    %1154 = vdwg.mxu0
    %v1155 = vrot.slane %v1010, 2
    %1156 = vrot.lane.b32.xlu0 %v1155, 96
    %v1157 = vpop.permute.xlu0 %1156
    %v1158 = vsel %vm248, %v1157, 0
    %1160 = vmatprep.subr.mxu0 0.0
    %1161 = vmatpush1.msra.mxu0 %v237
    %1162 = vmatprep.subr.mxu0 0.0
    %1163 = vmatpush1.msra.mxu0 %v238
    %1164 = vmatprep.subr.mxu0 0.0
    %1165 = vmatpush1.msra.mxu0 %v239
    %1166 = vmatprep.subr.mxu0 0.0
    %1167 = vmatpush1.msra.mxu0 %v240
    %1168 = vmatprep.subr.mxu0 0.0
    %1169 = vmatpush1.msra.mxu0 0.0
    %1170 = vmatprep.subr.mxu0 0.0
    %1171 = vmatpush1.msra.mxu0 0.0
    %1172 = vmatprep.subr.mxu0 0.0
    %1173 = vmatpush1.msra.mxu0 0.0
    %1174 = vmatprep.subr.mxu0 0.0
    %1175 = vmatpush1.msra.mxu0 0.0
    %1176 = vmatprep.subr.mxu0 0.0
    %1177 = vmatpush1.msra.mxu0 0.0
    %1178 = vmatprep.subr.mxu0 0.0
    %1179 = vmatpush1.msra.mxu0 0.0
    %1180 = vmatprep.subr.mxu0 0.0
    %1181 = vmatpush1.msra.mxu0 0.0
    %1182 = vmatprep.subr.mxu0 0.0
    %1183 = vmatpush1.msra.mxu0 0.0
    %1184 = vmatprep.subr.mxu0 0.0
    %1185 = vmatpush1.msra.mxu0 0.0
    %1186 = vmatprep.subr.mxu0 0.0
    %1187 = vmatpush1.msra.mxu0 0.0
    %1188 = vmatprep.subr.mxu0 0.0
    %1189 = vmatpush1.msra.mxu0 0.0
    %1190 = vmatprep.subr.mxu0 0.0
    %1191 = vmatpush1.msra.mxu0 0.0
    %1192 = vmatprep.subr.mxu0 0.0
    %1193 = vmatpush1.msra.mxu0 0.0
    %1194 = vmatprep.subr.mxu0 0.0
    %1195 = vmatpush1.msra.mxu0 0.0
    %1196 = vmatprep.subr.mxu0 0.0
    %1197 = vmatpush1.msra.mxu0 0.0
    %1198 = vmatprep.subr.mxu0 0.0
    %1199 = vmatpush1.msra.mxu0 0.0
    %1200 = vmatprep.subr.mxu0 0.0
    %1201 = vmatpush1.msra.mxu0 0.0
    %1202 = vmatprep.subr.mxu0 0.0
    %1203 = vmatpush1.msra.mxu0 0.0
    %1204 = vmatprep.subr.mxu0 0.0
    %1205 = vmatpush1.msra.mxu0 0.0
    %1206 = vmatprep.subr.mxu0 0.0
    %1207 = vmatpush1.msra.mxu0 0.0
    %1208 = vmatprep.subr.mxu0 0.0
    %1209 = vmatpush1.msra.mxu0 0.0
    %1210 = vmatprep.subr.mxu0 0.0
    %1211 = vmatpush1.msra.mxu0 0.0
    %1212 = vmatprep.subr.mxu0 0.0
    %1213 = vmatpush1.msra.mxu0 0.0
    %1214 = vmatprep.subr.mxu0 0.0
    %1215 = vmatpush1.msra.mxu0 0.0
    %1216 = vmatprep.subr.mxu0 0.0
    %1217 = vmatpush1.msra.mxu0 0.0
    %1218 = vmatprep.subr.mxu0 0.0
    %1219 = vmatpush1.msra.mxu0 0.0
    %1220 = vmatprep.subr.mxu0 0.0
    %1221 = vmatpush1.msra.mxu0 0.0
    %1222 = vmatprep.subr.mxu0 0.0
    %1223 = vmatpush1.msra.mxu0 0.0
    %1224 = vmatprep.mubr.f32.mxu0 0.0
    %1225 = vmatmul.mubr.f32.gmra.mrb[0].mxu0 %v1158
    %v1226 = vpop.f32.mrb[0].mxu0
    %v1227 = vadd.f32 %v326, %v1226
    %v1228 = vpop.f32.mrb[0].mxu0
    %1229 = vdwg.mxu0
    %v1231 = vrot.slane %v1152, 2
    %v1233 = vadd.f32 %v140, %v1231
    %v1234 = vxor.u32 %v1233, 2147483648
    %v1235 = vmul.f32 %v1234, 1.442695
    %v1236 = vpow.pop %v1235
    %v1237 = vadd.f32 %v1236, 1.0
    %v1238 = vrcp.pop %v1237
    %v1239 = vmul.f32 1.0, %v1238
    %1240 = vrot.lane.b32.xlu0 %v1231, 64
    %v1241 = vpop.permute.xlu0 %1240
    %v1243 = vmul.f32 %v1239, %v1241
    %1245 = vrot.lane.b32.xlu0 %v1243, 64
    %v1246 = vpop.permute.xlu0 %1245
    %v1248 = vadd.f32 %v140, %v1246
    %v1249 = vtanh.pop %v1248
    %v1250 = vsub.f32 1.0, %v1239
    %1252 = vrot.lane.b32.xlu0 %v1249, 96
    %v1253 = vpop.permute.xlu0 %1252
    %v1255 = vmul.f32 %v1250, %v1253
    %v1256 = vrot.slane %v980, 6
    %v1258 = vmul.f32 %v1239, %v1256
    %v1259 = vadd.f32 %v1255, %v1258
    %v1260 = vadd.f32 %v229, %v1227
    %v1261 = vxor.u32 %v1260, 2147483648
    %v1262 = vmul.f32 %v1261, 1.442695
    %v1263 = vpow.pop %v1262
    %v1264 = vadd.f32 %v1263, 1.0
    %v1265 = vrcp.pop %v1264
    %v1266 = vmul.f32 1.0, %v1265
    %1268 = vrot.lane.b32.xlu0 %v1227, 64
    %v1269 = vpop.permute.xlu0 %1268
    %v1271 = vmul.f32 %v1266, %v1269
    %1273 = vrot.lane.b32.xlu0 %v1271, 64
    %v1274 = vpop.permute.xlu0 %1273
    %v1276 = vadd.f32 %v229, %v1274
    %v1277 = vtanh.pop %v1276
    %v1278 = vsub.f32 1.0, %v1266
    %1280 = vrot.lane.b32.xlu0 %v1277, 96
    %v1281 = vpop.permute.xlu0 %1280
    %v1283 = vmul.f32 %v1278, %v1281
    %v1285 = vmul.f32 %v1266, %v1155
    %v1286 = vadd.f32 %v1283, %v1285
    %v1288 = vcombine.high %v1259, %v1259
    %v1290 = vunpack.c.l.s4 1966171168
    %v1291 = vunpack.c.0.s8 %v1290
    %v1292 = vlaneseq
    %v1293 = vshrl.u32 %v1292, 7
    %v1294 = vsub.s32 %v1291, %v1293
    %v1295 = vrot.slane %v1288, %v1294
    %v1296 = vcombine.high %v1295, %v1295
    %v1298 = vunpack.c.l.s4 1966171168
    %v1299 = vunpack.c.0.s8 %v1298
    %v1300 = vlaneseq
    %v1301 = vshrl.u32 %v1300, 7
    %v1302 = vsub.s32 %v1299, %v1301
    %v1303 = vrot.slane %v1295, %v1302
    %v1305 = vunpack.c.l.s4 1966171168
    %v1306 = vunpack.c.0.s8 %v1305
    %v1307 = vlaneseq
    %v1308 = vshrl.u32 %v1307, 7
    %v1309 = vsub.s32 %v1306, %v1308
    %v1310 = vrot.slane %v1296, %v1309
    %v1311 = vcombine.high %v1303, %v1303
    %v1312 = vcombine.high %v1310, %v1310
    %v1313 = vlaneseq
    %v1314 = vshrl.u32 %v1313, 7
    %v1315 = vsub.s32 0, %v1314
    %v1316 = vrot.slane %v1311, %v1315
    %v1317 = vlaneseq
    %v1318 = vshrl.u32 %v1317, 7
    %v1319 = vsub.s32 0, %v1318
    %v1320 = vrot.slane %v1312, %v1319
    %1321 = vrot.lane.b32.xlu0 %v1316, 96
    %v1322 = vpop.permute.xlu0 %1321
    %1323 = vrot.lane.b32.xlu0 %v1320, 96
    %v1324 = vpop.permute.xlu0 %1323
    %1327 = vst.msk [vmem:[#allocation2 + $0x3] sm:$0x1] %vm489, %v1322
    %1328 = vst.msk [vmem:[#allocation2 + $0xb] sm:$0x1] %vm489, %v1324
    %v1331 = vunpack.c.l.s4 1966171168
    %v1332 = vunpack.c.0.s8 %v1331
    %v1333 = vlaneseq
    %v1334 = vshrl.u32 %v1333, 7
    %v1335 = vsub.s32 %v1332, %v1334
    %v1336 = vrot.slane %v1286, %v1335
    %v1337 = vcombine.high %v1336, %v1336
    %v1339 = vunpack.c.l.s4 1966171168
    %v1340 = vunpack.c.0.s8 %v1339
    %v1341 = vlaneseq
    %v1342 = vshrl.u32 %v1341, 7
    %v1343 = vsub.s32 %v1340, %v1342
    %v1344 = vrot.slane %v1336, %v1343
    %v1346 = vunpack.c.l.s4 1966171168
    %v1347 = vunpack.c.0.s8 %v1346
    %v1348 = vlaneseq
    %v1349 = vshrl.u32 %v1348, 7
    %v1350 = vsub.s32 %v1347, %v1349
    %v1351 = vrot.slane %v1337, %v1350
    %1354 = vst.msk [vmem:[#allocation2 + $0x4] sm:$0x1] %vm520, %v1344
    %1355 = vst.msk [vmem:[#allocation2 + $0xc] sm:$0x1] %vm520, %v1351
    %v1356 = vrot.slane %v1259, 6
    %1357 = vrot.lane.b32.xlu0 %v1356, 96
    %v1358 = vpop.permute.xlu0 %1357
    %v1359 = vsel %vm248, %v1358, 0
    %1361 = vmatprep.subr.mxu0 0.0
    %1362 = vmatpush1.msra.mxu0 %v232
    %1363 = vmatprep.subr.mxu0 0.0
    %1364 = vmatpush1.msra.mxu0 %v233
    %1365 = vmatprep.subr.mxu0 0.0
    %1366 = vmatpush1.msra.mxu0 %v234
    %1367 = vmatprep.subr.mxu0 0.0
    %1368 = vmatpush1.msra.mxu0 %v235
    %1369 = vmatprep.subr.mxu0 0.0
    %1370 = vmatpush1.msra.mxu0 0.0
    %1371 = vmatprep.subr.mxu0 0.0
    %1372 = vmatpush1.msra.mxu0 0.0
    %1373 = vmatprep.subr.mxu0 0.0
    %1374 = vmatpush1.msra.mxu0 0.0
    %1375 = vmatprep.subr.mxu0 0.0
    %1376 = vmatpush1.msra.mxu0 0.0
    %1377 = vmatprep.subr.mxu0 0.0
    %1378 = vmatpush1.msra.mxu0 0.0
    %1379 = vmatprep.subr.mxu0 0.0
    %1380 = vmatpush1.msra.mxu0 0.0
    %1381 = vmatprep.subr.mxu0 0.0
    %1382 = vmatpush1.msra.mxu0 0.0
    %1383 = vmatprep.subr.mxu0 0.0
    %1384 = vmatpush1.msra.mxu0 0.0
    %1385 = vmatprep.subr.mxu0 0.0
    %1386 = vmatpush1.msra.mxu0 0.0
    %1387 = vmatprep.subr.mxu0 0.0
    %1388 = vmatpush1.msra.mxu0 0.0
    %1389 = vmatprep.subr.mxu0 0.0
    %1390 = vmatpush1.msra.mxu0 0.0
    %1391 = vmatprep.subr.mxu0 0.0
    %1392 = vmatpush1.msra.mxu0 0.0
    %1393 = vmatprep.subr.mxu0 0.0
    %1394 = vmatpush1.msra.mxu0 0.0
    %1395 = vmatprep.subr.mxu0 0.0
    %1396 = vmatpush1.msra.mxu0 0.0
    %1397 = vmatprep.subr.mxu0 0.0
    %1398 = vmatpush1.msra.mxu0 0.0
    %1399 = vmatprep.subr.mxu0 0.0
    %1400 = vmatpush1.msra.mxu0 0.0
    %1401 = vmatprep.subr.mxu0 0.0
    %1402 = vmatpush1.msra.mxu0 0.0
    %1403 = vmatprep.subr.mxu0 0.0
    %1404 = vmatpush1.msra.mxu0 0.0
    %1405 = vmatprep.subr.mxu0 0.0
    %1406 = vmatpush1.msra.mxu0 0.0
    %1407 = vmatprep.subr.mxu0 0.0
    %1408 = vmatpush1.msra.mxu0 0.0
    %1409 = vmatprep.subr.mxu0 0.0
    %1410 = vmatpush1.msra.mxu0 0.0
    %1411 = vmatprep.subr.mxu0 0.0
    %1412 = vmatpush1.msra.mxu0 0.0
    %1413 = vmatprep.subr.mxu0 0.0
    %1414 = vmatpush1.msra.mxu0 0.0
    %1415 = vmatprep.subr.mxu0 0.0
    %1416 = vmatpush1.msra.mxu0 0.0
    %1417 = vmatprep.subr.mxu0 0.0
    %1418 = vmatpush1.msra.mxu0 0.0
    %1419 = vmatprep.subr.mxu0 0.0
    %1420 = vmatpush1.msra.mxu0 0.0
    %1421 = vmatprep.subr.mxu0 0.0
    %1422 = vmatpush1.msra.mxu0 0.0
    %1423 = vmatprep.subr.mxu0 0.0
    %1424 = vmatpush1.msra.mxu0 0.0
    %1425 = vmatprep.mubr.f32.mxu0 0.0
    %1426 = vmatmul.mubr.f32.gmra.mrb[0].mxu0 %v1359
    %v1427 = vpop.f32.mrb[0].mxu0
    %v1428 = vadd.f32 %v246, %v1427
    %v1429 = vpop.f32.mrb[0].mxu0
    %1430 = vdwg.mxu0
    %1431 = vrot.lane.b32.xlu0 %v1286, 96
    %v1432 = vpop.permute.xlu0 %1431
    %v1433 = vsel %vm248, %v1432, 0
    %1435 = vmatprep.subr.mxu0 0.0
    %1436 = vmatpush1.msra.mxu0 %v237
    %1437 = vmatprep.subr.mxu0 0.0
    %1438 = vmatpush1.msra.mxu0 %v238
    %1439 = vmatprep.subr.mxu0 0.0
    %1440 = vmatpush1.msra.mxu0 %v239
    %1441 = vmatprep.subr.mxu0 0.0
    %1442 = vmatpush1.msra.mxu0 %v240
    %1443 = vmatprep.subr.mxu0 0.0
    %1444 = vmatpush1.msra.mxu0 0.0
    %1445 = vmatprep.subr.mxu0 0.0
    %1446 = vmatpush1.msra.mxu0 0.0
    %1447 = vmatprep.subr.mxu0 0.0
    %1448 = vmatpush1.msra.mxu0 0.0
    %1449 = vmatprep.subr.mxu0 0.0
    %1450 = vmatpush1.msra.mxu0 0.0
    %1451 = vmatprep.subr.mxu0 0.0
    %1452 = vmatpush1.msra.mxu0 0.0
    %1453 = vmatprep.subr.mxu0 0.0
    %1454 = vmatpush1.msra.mxu0 0.0
    %1455 = vmatprep.subr.mxu0 0.0
    %1456 = vmatpush1.msra.mxu0 0.0
    %1457 = vmatprep.subr.mxu0 0.0
    %1458 = vmatpush1.msra.mxu0 0.0
    %1459 = vmatprep.subr.mxu0 0.0
    %1460 = vmatpush1.msra.mxu0 0.0
    %1461 = vmatprep.subr.mxu0 0.0
    %1462 = vmatpush1.msra.mxu0 0.0
    %1463 = vmatprep.subr.mxu0 0.0
    %1464 = vmatpush1.msra.mxu0 0.0
    %1465 = vmatprep.subr.mxu0 0.0
    %1466 = vmatpush1.msra.mxu0 0.0
    %1467 = vmatprep.subr.mxu0 0.0
    %1468 = vmatpush1.msra.mxu0 0.0
    %1469 = vmatprep.subr.mxu0 0.0
    %1470 = vmatpush1.msra.mxu0 0.0
    %1471 = vmatprep.subr.mxu0 0.0
    %1472 = vmatpush1.msra.mxu0 0.0
    %1473 = vmatprep.subr.mxu0 0.0
    %1474 = vmatpush1.msra.mxu0 0.0
    %1475 = vmatprep.subr.mxu0 0.0
    %1476 = vmatpush1.msra.mxu0 0.0
    %1477 = vmatprep.subr.mxu0 0.0
    %1478 = vmatpush1.msra.mxu0 0.0
    %1479 = vmatprep.subr.mxu0 0.0
    %1480 = vmatpush1.msra.mxu0 0.0
    %1481 = vmatprep.subr.mxu0 0.0
    %1482 = vmatpush1.msra.mxu0 0.0
    %1483 = vmatprep.subr.mxu0 0.0
    %1484 = vmatpush1.msra.mxu0 0.0
    %1485 = vmatprep.subr.mxu0 0.0
    %1486 = vmatpush1.msra.mxu0 0.0
    %1487 = vmatprep.subr.mxu0 0.0
    %1488 = vmatpush1.msra.mxu0 0.0
    %1489 = vmatprep.subr.mxu0 0.0
    %1490 = vmatpush1.msra.mxu0 0.0
    %1491 = vmatprep.subr.mxu0 0.0
    %1492 = vmatpush1.msra.mxu0 0.0
    %1493 = vmatprep.subr.mxu0 0.0
    %1494 = vmatpush1.msra.mxu0 0.0
    %1495 = vmatprep.subr.mxu0 0.0
    %1496 = vmatpush1.msra.mxu0 0.0
    %1497 = vmatprep.subr.mxu0 0.0
    %1498 = vmatpush1.msra.mxu0 0.0
    %1499 = vmatprep.mubr.f32.mxu0 0.0
    %1500 = vmatmul.mubr.f32.gmra.mrb[0].mxu0 %v1433
    %v1501 = vpop.f32.mrb[0].mxu0
    %v1502 = vadd.f32 %v326, %v1501
    %v1503 = vpop.f32.mrb[0].mxu0
    %1504 = vdwg.mxu0
    %v1505 = vadd.f32 %v145, %v1428
    %v1506 = vxor.u32 %v1505, 2147483648
    %v1507 = vmul.f32 %v1506, 1.442695
    %v1508 = vpow.pop %v1507
    %v1509 = vadd.f32 %v1508, 1.0
    %v1510 = vrcp.pop %v1509
    %v1511 = vmul.f32 1.0, %v1510
    %1513 = vrot.lane.b32.xlu0 %v1428, 64
    %v1514 = vpop.permute.xlu0 %1513
    %v1516 = vmul.f32 %v1511, %v1514
    %1518 = vrot.lane.b32.xlu0 %v1516, 64
    %v1519 = vpop.permute.xlu0 %1518
    %v1521 = vadd.f32 %v145, %v1519
    %v1522 = vtanh.pop %v1521
    %v1523 = vsub.f32 1.0, %v1511
    %1525 = vrot.lane.b32.xlu0 %v1522, 96
    %v1526 = vpop.permute.xlu0 %1525
    %v1528 = vmul.f32 %v1523, %v1526
    %v1530 = vmul.f32 %v1511, %v1356
    %v1531 = vadd.f32 %v1528, %v1530
    %v1533 = vrot.slane %v1502, 2
    %v1535 = vadd.f32 %v224, %v1533
    %v1536 = vxor.u32 %v1535, 2147483648
    %v1537 = vmul.f32 %v1536, 1.442695
    %v1538 = vpow.pop %v1537
    %v1539 = vadd.f32 %v1538, 1.0
    %v1540 = vrcp.pop %v1539
    %v1541 = vmul.f32 1.0, %v1540
    %1542 = vrot.lane.b32.xlu0 %v1533, 64
    %v1543 = vpop.permute.xlu0 %1542
    %v1545 = vmul.f32 %v1541, %v1543
    %1547 = vrot.lane.b32.xlu0 %v1545, 64
    %v1548 = vpop.permute.xlu0 %1547
    %v1550 = vadd.f32 %v224, %v1548
    %v1551 = vtanh.pop %v1550
    %v1552 = vsub.f32 1.0, %v1541
    %1554 = vrot.lane.b32.xlu0 %v1551, 96
    %v1555 = vpop.permute.xlu0 %1554
    %v1557 = vmul.f32 %v1552, %v1555
    %v1558 = vrot.slane %v1286, 2
    %v1560 = vmul.f32 %v1541, %v1558
    %v1561 = vadd.f32 %v1557, %v1560
    %v1564 = vunpack.c.l.s4 1966171168
    %v1565 = vunpack.c.0.s8 %v1564
    %v1566 = vlaneseq
    %v1567 = vshrl.u32 %v1566, 7
    %v1568 = vsub.s32 %v1565, %v1567
    %v1569 = vrot.slane %v1531, %v1568
    %v1570 = vcombine.high %v1569, %v1569
    %v1572 = vunpack.c.l.s4 1966171168
    %v1573 = vunpack.c.0.s8 %v1572
    %v1574 = vlaneseq
    %v1575 = vshrl.u32 %v1574, 7
    %v1576 = vsub.s32 %v1573, %v1575
    %v1577 = vrot.slane %v1569, %v1576
    %v1579 = vunpack.c.l.s4 1966171168
    %v1580 = vunpack.c.0.s8 %v1579
    %v1581 = vlaneseq
    %v1582 = vshrl.u32 %v1581, 7
    %v1583 = vsub.s32 %v1580, %v1582
    %v1584 = vrot.slane %v1570, %v1583
    %v1585 = vlaneseq
    %v1586 = vshrl.u32 %v1585, 7
    %v1587 = vsub.s32 0, %v1586
    %v1588 = vrot.slane %v1577, %v1587
    %v1589 = vlaneseq
    %v1590 = vshrl.u32 %v1589, 7
    %v1591 = vsub.s32 0, %v1590
    %v1592 = vrot.slane %v1584, %v1591
    %1593 = vrot.lane.b32.xlu0 %v1588, 96
    %v1594 = vpop.permute.xlu0 %1593
    %1595 = vrot.lane.b32.xlu0 %v1592, 96
    %v1596 = vpop.permute.xlu0 %1595
    %1599 = vst.msk [vmem:[#allocation2 + $0x4] sm:$0x1] %vm489, %v1594
    %1600 = vst.msk [vmem:[#allocation2 + $0xc] sm:$0x1] %vm489, %v1596
    %v1602 = vcombine.high %v1561, %v1561
    %v1604 = vunpack.c.l.s4 1966171168
    %v1605 = vunpack.c.0.s8 %v1604
    %v1606 = vlaneseq
    %v1607 = vshrl.u32 %v1606, 7
    %v1608 = vsub.s32 %v1605, %v1607
    %v1609 = vrot.slane %v1602, %v1608
    %v1610 = vcombine.high %v1609, %v1609
    %v1612 = vunpack.c.l.s4 1966171168
    %v1613 = vunpack.c.0.s8 %v1612
    %v1614 = vlaneseq
    %v1615 = vshrl.u32 %v1614, 7
    %v1616 = vsub.s32 %v1613, %v1615
    %v1617 = vrot.slane %v1609, %v1616
    %v1619 = vunpack.c.l.s4 1966171168
    %v1620 = vunpack.c.0.s8 %v1619
    %v1621 = vlaneseq
    %v1622 = vshrl.u32 %v1621, 7
    %v1623 = vsub.s32 %v1620, %v1622
    %v1624 = vrot.slane %v1610, %v1623
    %v1625 = vcombine.high %v1617, %v1617
    %v1626 = vcombine.high %v1624, %v1624
    %1629 = vst.msk [vmem:[#allocation2 + $0x3] sm:$0x1] %vm520, %v1625
    %1630 = vst.msk [vmem:[#allocation2 + $0xb] sm:$0x1] %vm520, %v1626
    %1631 = vrot.lane.b32.xlu0 %v1531, 96
    %v1632 = vpop.permute.xlu0 %1631
    %v1633 = vsel %vm248, %v1632, 0
    %1635 = vmatprep.subr.mxu0 0.0
    %1636 = vmatpush1.msra.mxu0 %v232
    %1637 = vmatprep.subr.mxu0 0.0
    %1638 = vmatpush1.msra.mxu0 %v233
    %1639 = vmatprep.subr.mxu0 0.0
    %1640 = vmatpush1.msra.mxu0 %v234
    %1641 = vmatprep.subr.mxu0 0.0
    %1642 = vmatpush1.msra.mxu0 %v235
    %1643 = vmatprep.subr.mxu0 0.0
    %1644 = vmatpush1.msra.mxu0 0.0
    %1645 = vmatprep.subr.mxu0 0.0
    %1646 = vmatpush1.msra.mxu0 0.0
    %1647 = vmatprep.subr.mxu0 0.0
    %1648 = vmatpush1.msra.mxu0 0.0
    %1649 = vmatprep.subr.mxu0 0.0
    %1650 = vmatpush1.msra.mxu0 0.0
    %1651 = vmatprep.subr.mxu0 0.0
    %1652 = vmatpush1.msra.mxu0 0.0
    %1653 = vmatprep.subr.mxu0 0.0
    %1654 = vmatpush1.msra.mxu0 0.0
    %1655 = vmatprep.subr.mxu0 0.0
    %1656 = vmatpush1.msra.mxu0 0.0
    %1657 = vmatprep.subr.mxu0 0.0
    %1658 = vmatpush1.msra.mxu0 0.0
    %1659 = vmatprep.subr.mxu0 0.0
    %1660 = vmatpush1.msra.mxu0 0.0
    %1661 = vmatprep.subr.mxu0 0.0
    %1662 = vmatpush1.msra.mxu0 0.0
    %1663 = vmatprep.subr.mxu0 0.0
    %1664 = vmatpush1.msra.mxu0 0.0
    %1665 = vmatprep.subr.mxu0 0.0
    %1666 = vmatpush1.msra.mxu0 0.0
    %1667 = vmatprep.subr.mxu0 0.0
    %1668 = vmatpush1.msra.mxu0 0.0
    %1669 = vmatprep.subr.mxu0 0.0
    %1670 = vmatpush1.msra.mxu0 0.0
    %1671 = vmatprep.subr.mxu0 0.0
    %1672 = vmatpush1.msra.mxu0 0.0
    %1673 = vmatprep.subr.mxu0 0.0
    %1674 = vmatpush1.msra.mxu0 0.0
    %1675 = vmatprep.subr.mxu0 0.0
    %1676 = vmatpush1.msra.mxu0 0.0
    %1677 = vmatprep.subr.mxu0 0.0
    %1678 = vmatpush1.msra.mxu0 0.0
    %1679 = vmatprep.subr.mxu0 0.0
    %1680 = vmatpush1.msra.mxu0 0.0
    %1681 = vmatprep.subr.mxu0 0.0
    %1682 = vmatpush1.msra.mxu0 0.0
    %1683 = vmatprep.subr.mxu0 0.0
    %1684 = vmatpush1.msra.mxu0 0.0
    %1685 = vmatprep.subr.mxu0 0.0
    %1686 = vmatpush1.msra.mxu0 0.0
    %1687 = vmatprep.subr.mxu0 0.0
    %1688 = vmatpush1.msra.mxu0 0.0
    %1689 = vmatprep.subr.mxu0 0.0
    %1690 = vmatpush1.msra.mxu0 0.0
    %1691 = vmatprep.subr.mxu0 0.0
    %1692 = vmatpush1.msra.mxu0 0.0
    %1693 = vmatprep.subr.mxu0 0.0
    %1694 = vmatpush1.msra.mxu0 0.0
    %1695 = vmatprep.subr.mxu0 0.0
    %1696 = vmatpush1.msra.mxu0 0.0
    %1697 = vmatprep.subr.mxu0 0.0
    %1698 = vmatpush1.msra.mxu0 0.0
    %1699 = vmatprep.mubr.f32.mxu0 0.0
    %1700 = vmatmul.mubr.f32.gmra.mrb[0].mxu0 %v1633
    %v1701 = vpop.f32.mrb[0].mxu0
    %v1702 = vadd.f32 %v246, %v1701
    %v1703 = vpop.f32.mrb[0].mxu0
    %1704 = vdwg.mxu0
    %v1705 = vrot.slane %v1561, 6
    %1706 = vrot.lane.b32.xlu0 %v1705, 96
    %v1707 = vpop.permute.xlu0 %1706
    %v1708 = vsel %vm248, %v1707, 0
    %1710 = vmatprep.subr.mxu0 0.0
    %1711 = vmatpush1.msra.mxu0 %v237
    %1712 = vmatprep.subr.mxu0 0.0
    %1713 = vmatpush1.msra.mxu0 %v238
    %1714 = vmatprep.subr.mxu0 0.0
    %1715 = vmatpush1.msra.mxu0 %v239
    %1716 = vmatprep.subr.mxu0 0.0
    %1717 = vmatpush1.msra.mxu0 %v240
    %1718 = vmatprep.subr.mxu0 0.0
    %1719 = vmatpush1.msra.mxu0 0.0
    %1720 = vmatprep.subr.mxu0 0.0
    %1721 = vmatpush1.msra.mxu0 0.0
    %1722 = vmatprep.subr.mxu0 0.0
    %1723 = vmatpush1.msra.mxu0 0.0
    %1724 = vmatprep.subr.mxu0 0.0
    %1725 = vmatpush1.msra.mxu0 0.0
    %1726 = vmatprep.subr.mxu0 0.0
    %1727 = vmatpush1.msra.mxu0 0.0
    %1728 = vmatprep.subr.mxu0 0.0
    %1729 = vmatpush1.msra.mxu0 0.0
    %1730 = vmatprep.subr.mxu0 0.0
    %1731 = vmatpush1.msra.mxu0 0.0
    %1732 = vmatprep.subr.mxu0 0.0
    %1733 = vmatpush1.msra.mxu0 0.0
    %1734 = vmatprep.subr.mxu0 0.0
    %1735 = vmatpush1.msra.mxu0 0.0
    %1736 = vmatprep.subr.mxu0 0.0
    %1737 = vmatpush1.msra.mxu0 0.0
    %1738 = vmatprep.subr.mxu0 0.0
    %1739 = vmatpush1.msra.mxu0 0.0
    %1740 = vmatprep.subr.mxu0 0.0
    %1741 = vmatpush1.msra.mxu0 0.0
    %1742 = vmatprep.subr.mxu0 0.0
    %1743 = vmatpush1.msra.mxu0 0.0
    %1744 = vmatprep.subr.mxu0 0.0
    %1745 = vmatpush1.msra.mxu0 0.0
    %1746 = vmatprep.subr.mxu0 0.0
    %1747 = vmatpush1.msra.mxu0 0.0
    %1748 = vmatprep.subr.mxu0 0.0
    %1749 = vmatpush1.msra.mxu0 0.0
    %1750 = vmatprep.subr.mxu0 0.0
    %1751 = vmatpush1.msra.mxu0 0.0
    %1752 = vmatprep.subr.mxu0 0.0
    %1753 = vmatpush1.msra.mxu0 0.0
    %1754 = vmatprep.subr.mxu0 0.0
    %1755 = vmatpush1.msra.mxu0 0.0
    %1756 = vmatprep.subr.mxu0 0.0
    %1757 = vmatpush1.msra.mxu0 0.0
    %1758 = vmatprep.subr.mxu0 0.0
    %1759 = vmatpush1.msra.mxu0 0.0
    %1760 = vmatprep.subr.mxu0 0.0
    %1761 = vmatpush1.msra.mxu0 0.0
    %1762 = vmatprep.subr.mxu0 0.0
    %1763 = vmatpush1.msra.mxu0 0.0
    %1764 = vmatprep.subr.mxu0 0.0
    %1765 = vmatpush1.msra.mxu0 0.0
    %1766 = vmatprep.subr.mxu0 0.0
    %1767 = vmatpush1.msra.mxu0 0.0
    %1768 = vmatprep.subr.mxu0 0.0
    %1769 = vmatpush1.msra.mxu0 0.0
    %1770 = vmatprep.subr.mxu0 0.0
    %1771 = vmatpush1.msra.mxu0 0.0
    %1772 = vmatprep.subr.mxu0 0.0
    %1773 = vmatpush1.msra.mxu0 0.0
    %1774 = vmatprep.mubr.f32.mxu0 0.0
    %1775 = vmatmul.mubr.f32.gmra.mrb[0].mxu0 %v1708
    %v1776 = vpop.f32.mrb[0].mxu0
    %v1777 = vadd.f32 %v326, %v1776
    %v1778 = vpop.f32.mrb[0].mxu0
    %1779 = vdwg.mxu0
    %v1781 = vrot.slane %v1702, 6
    %v1783 = vadd.f32 %v145, %v1781
    %v1784 = vxor.u32 %v1783, 2147483648
    %v1785 = vmul.f32 %v1784, 1.442695
    %v1786 = vpow.pop %v1785
    %v1787 = vadd.f32 %v1786, 1.0
    %v1788 = vrcp.pop %v1787
    %v1789 = vmul.f32 1.0, %v1788
    %1790 = vrot.lane.b32.xlu0 %v1781, 64
    %v1791 = vpop.permute.xlu0 %1790
    %v1793 = vmul.f32 %v1789, %v1791
    %1795 = vrot.lane.b32.xlu0 %v1793, 64
    %v1796 = vpop.permute.xlu0 %1795
    %v1798 = vadd.f32 %v145, %v1796
    %v1799 = vtanh.pop %v1798
    %v1800 = vsub.f32 1.0, %v1789
    %1802 = vrot.lane.b32.xlu0 %v1799, 96
    %v1803 = vpop.permute.xlu0 %1802
    %v1805 = vmul.f32 %v1800, %v1803
    %v1806 = vrot.slane %v1531, 6
    %v1808 = vmul.f32 %v1789, %v1806
    %v1809 = vadd.f32 %v1805, %v1808
    %v1811 = vrot.slane %v1777, 4
    %v1813 = vadd.f32 %v224, %v1811
    %v1814 = vxor.u32 %v1813, 2147483648
    %v1815 = vmul.f32 %v1814, 1.442695
    %v1816 = vpow.pop %v1815
    %v1817 = vadd.f32 %v1816, 1.0
    %v1818 = vrcp.pop %v1817
    %v1819 = vmul.f32 1.0, %v1818
    %1820 = vrot.lane.b32.xlu0 %v1811, 64
    %v1821 = vpop.permute.xlu0 %1820
    %v1823 = vmul.f32 %v1819, %v1821
    %1825 = vrot.lane.b32.xlu0 %v1823, 64
    %v1826 = vpop.permute.xlu0 %1825
    %v1828 = vadd.f32 %v224, %v1826
    %v1829 = vtanh.pop %v1828
    %v1830 = vsub.f32 1.0, %v1819
    %1832 = vrot.lane.b32.xlu0 %v1829, 96
    %v1833 = vpop.permute.xlu0 %1832
    %v1835 = vmul.f32 %v1830, %v1833
    %v1836 = vrot.slane %v1561, 2
    %v1838 = vmul.f32 %v1819, %v1836
    %v1839 = vadd.f32 %v1835, %v1838
    %v1842 = vunpack.c.l.s4 1966171168
    %v1843 = vunpack.c.0.s8 %v1842
    %v1844 = vlaneseq
    %v1845 = vshrl.u32 %v1844, 7
    %v1846 = vsub.s32 %v1843, %v1845
    %v1847 = vrot.slane %v1809, %v1846
    %v1848 = vcombine.high %v1847, %v1847
    %v1850 = vunpack.c.l.s4 1966171168
    %v1851 = vunpack.c.0.s8 %v1850
    %v1852 = vlaneseq
    %v1853 = vshrl.u32 %v1852, 7
    %v1854 = vsub.s32 %v1851, %v1853
    %v1855 = vrot.slane %v1847, %v1854
    %v1857 = vunpack.c.l.s4 1966171168
    %v1858 = vunpack.c.0.s8 %v1857
    %v1859 = vlaneseq
    %v1860 = vshrl.u32 %v1859, 7
    %v1861 = vsub.s32 %v1858, %v1860
    %v1862 = vrot.slane %v1848, %v1861
    %v1863 = vcombine.high %v1855, %v1855
    %v1864 = vcombine.high %v1862, %v1862
    %v1865 = vlaneseq
    %v1866 = vshrl.u32 %v1865, 7
    %v1867 = vsub.s32 0, %v1866
    %v1868 = vrot.slane %v1863, %v1867
    %v1869 = vlaneseq
    %v1870 = vshrl.u32 %v1869, 7
    %v1871 = vsub.s32 0, %v1870
    %v1872 = vrot.slane %v1864, %v1871
    %1873 = vrot.lane.b32.xlu0 %v1868, 96
    %v1874 = vpop.permute.xlu0 %1873
    %1875 = vrot.lane.b32.xlu0 %v1872, 96
    %v1876 = vpop.permute.xlu0 %1875
    %1879 = vst.msk [vmem:[#allocation2 + $0x5] sm:$0x1] %vm489, %v1874
    %1880 = vst.msk [vmem:[#allocation2 + $0xd] sm:$0x1] %vm489, %v1876
    %v1882 = vcombine.high %v1839, %v1839
    %v1884 = vunpack.c.l.s4 1966171168
    %v1885 = vunpack.c.0.s8 %v1884
    %v1886 = vlaneseq
    %v1887 = vshrl.u32 %v1886, 7
    %v1888 = vsub.s32 %v1885, %v1887
    %v1889 = vrot.slane %v1882, %v1888
    %v1890 = vcombine.high %v1889, %v1889
    %v1892 = vunpack.c.l.s4 1966171168
    %v1893 = vunpack.c.0.s8 %v1892
    %v1894 = vlaneseq
    %v1895 = vshrl.u32 %v1894, 7
    %v1896 = vsub.s32 %v1893, %v1895
    %v1897 = vrot.slane %v1889, %v1896
    %v1899 = vunpack.c.l.s4 1966171168
    %v1900 = vunpack.c.0.s8 %v1899
    %v1901 = vlaneseq
    %v1902 = vshrl.u32 %v1901, 7
    %v1903 = vsub.s32 %v1900, %v1902
    %v1904 = vrot.slane %v1890, %v1903
    %1907 = vst.msk [vmem:[#allocation2 + $0x2] sm:$0x1] %vm520, %v1897
    %1908 = vst.msk [vmem:[#allocation2 + $0xa] sm:$0x1] %vm520, %v1904
    %v1909 = vrot.slane %v1809, 2
    %1910 = vrot.lane.b32.xlu0 %v1909, 96
    %v1911 = vpop.permute.xlu0 %1910
    %v1912 = vsel %vm248, %v1911, 0
    %1914 = vmatprep.subr.mxu0 0.0
    %1915 = vmatpush1.msra.mxu0 %v232
    %1916 = vmatprep.subr.mxu0 0.0
    %1917 = vmatpush1.msra.mxu0 %v233
    %1918 = vmatprep.subr.mxu0 0.0
    %1919 = vmatpush1.msra.mxu0 %v234
    %1920 = vmatprep.subr.mxu0 0.0
    %1921 = vmatpush1.msra.mxu0 %v235
    %1922 = vmatprep.subr.mxu0 0.0
    %1923 = vmatpush1.msra.mxu0 0.0
    %1924 = vmatprep.subr.mxu0 0.0
    %1925 = vmatpush1.msra.mxu0 0.0
    %1926 = vmatprep.subr.mxu0 0.0
    %1927 = vmatpush1.msra.mxu0 0.0
    %1928 = vmatprep.subr.mxu0 0.0
    %1929 = vmatpush1.msra.mxu0 0.0
    %1930 = vmatprep.subr.mxu0 0.0
    %1931 = vmatpush1.msra.mxu0 0.0
    %1932 = vmatprep.subr.mxu0 0.0
    %1933 = vmatpush1.msra.mxu0 0.0
    %1934 = vmatprep.subr.mxu0 0.0
    %1935 = vmatpush1.msra.mxu0 0.0
    %1936 = vmatprep.subr.mxu0 0.0
    %1937 = vmatpush1.msra.mxu0 0.0
    %1938 = vmatprep.subr.mxu0 0.0
    %1939 = vmatpush1.msra.mxu0 0.0
    %1940 = vmatprep.subr.mxu0 0.0
    %1941 = vmatpush1.msra.mxu0 0.0
    %1942 = vmatprep.subr.mxu0 0.0
    %1943 = vmatpush1.msra.mxu0 0.0
    %1944 = vmatprep.subr.mxu0 0.0
    %1945 = vmatpush1.msra.mxu0 0.0
    %1946 = vmatprep.subr.mxu0 0.0
    %1947 = vmatpush1.msra.mxu0 0.0
    %1948 = vmatprep.subr.mxu0 0.0
    %1949 = vmatpush1.msra.mxu0 0.0
    %1950 = vmatprep.subr.mxu0 0.0
    %1951 = vmatpush1.msra.mxu0 0.0
    %1952 = vmatprep.subr.mxu0 0.0
    %1953 = vmatpush1.msra.mxu0 0.0
    %1954 = vmatprep.subr.mxu0 0.0
    %1955 = vmatpush1.msra.mxu0 0.0
    %1956 = vmatprep.subr.mxu0 0.0
    %1957 = vmatpush1.msra.mxu0 0.0
    %1958 = vmatprep.subr.mxu0 0.0
    %1959 = vmatpush1.msra.mxu0 0.0
    %1960 = vmatprep.subr.mxu0 0.0
    %1961 = vmatpush1.msra.mxu0 0.0
    %1962 = vmatprep.subr.mxu0 0.0
    %1963 = vmatpush1.msra.mxu0 0.0
    %1964 = vmatprep.subr.mxu0 0.0
    %1965 = vmatpush1.msra.mxu0 0.0
    %1966 = vmatprep.subr.mxu0 0.0
    %1967 = vmatpush1.msra.mxu0 0.0
    %1968 = vmatprep.subr.mxu0 0.0
    %1969 = vmatpush1.msra.mxu0 0.0
    %1970 = vmatprep.subr.mxu0 0.0
    %1971 = vmatpush1.msra.mxu0 0.0
    %1972 = vmatprep.subr.mxu0 0.0
    %1973 = vmatpush1.msra.mxu0 0.0
    %1974 = vmatprep.subr.mxu0 0.0
    %1975 = vmatpush1.msra.mxu0 0.0
    %1976 = vmatprep.subr.mxu0 0.0
    %1977 = vmatpush1.msra.mxu0 0.0
    %1978 = vmatprep.mubr.f32.mxu0 0.0
    %1979 = vmatmul.mubr.f32.gmra.mrb[0].mxu0 %v1912
    %v1980 = vpop.f32.mrb[0].mxu0
    %v1981 = vadd.f32 %v246, %v1980
    %v1982 = vpop.f32.mrb[0].mxu0
    %1983 = vdwg.mxu0
    %v1984 = vrot.slane %v1839, 4
    %1985 = vrot.lane.b32.xlu0 %v1984, 96
    %v1986 = vpop.permute.xlu0 %1985
    %v1987 = vsel %vm248, %v1986, 0
    %1989 = vmatprep.subr.mxu0 0.0
    %1990 = vmatpush1.msra.mxu0 %v237
    %1991 = vmatprep.subr.mxu0 0.0
    %1992 = vmatpush1.msra.mxu0 %v238
    %1993 = vmatprep.subr.mxu0 0.0
    %1994 = vmatpush1.msra.mxu0 %v239
    %1995 = vmatprep.subr.mxu0 0.0
    %1996 = vmatpush1.msra.mxu0 %v240
    %1997 = vmatprep.subr.mxu0 0.0
    %1998 = vmatpush1.msra.mxu0 0.0
    %1999 = vmatprep.subr.mxu0 0.0
    %2000 = vmatpush1.msra.mxu0 0.0
    %2001 = vmatprep.subr.mxu0 0.0
    %2002 = vmatpush1.msra.mxu0 0.0
    %2003 = vmatprep.subr.mxu0 0.0
    %2004 = vmatpush1.msra.mxu0 0.0
    %2005 = vmatprep.subr.mxu0 0.0
    %2006 = vmatpush1.msra.mxu0 0.0
    %2007 = vmatprep.subr.mxu0 0.0
    %2008 = vmatpush1.msra.mxu0 0.0
    %2009 = vmatprep.subr.mxu0 0.0
    %2010 = vmatpush1.msra.mxu0 0.0
    %2011 = vmatprep.subr.mxu0 0.0
    %2012 = vmatpush1.msra.mxu0 0.0
    %2013 = vmatprep.subr.mxu0 0.0
    %2014 = vmatpush1.msra.mxu0 0.0
    %2015 = vmatprep.subr.mxu0 0.0
    %2016 = vmatpush1.msra.mxu0 0.0
    %2017 = vmatprep.subr.mxu0 0.0
    %2018 = vmatpush1.msra.mxu0 0.0
    %2019 = vmatprep.subr.mxu0 0.0
    %2020 = vmatpush1.msra.mxu0 0.0
    %2021 = vmatprep.subr.mxu0 0.0
    %2022 = vmatpush1.msra.mxu0 0.0
    %2023 = vmatprep.subr.mxu0 0.0
    %2024 = vmatpush1.msra.mxu0 0.0
    %2025 = vmatprep.subr.mxu0 0.0
    %2026 = vmatpush1.msra.mxu0 0.0
    %2027 = vmatprep.subr.mxu0 0.0
    %2028 = vmatpush1.msra.mxu0 0.0
    %2029 = vmatprep.subr.mxu0 0.0
    %2030 = vmatpush1.msra.mxu0 0.0
    %2031 = vmatprep.subr.mxu0 0.0
    %2032 = vmatpush1.msra.mxu0 0.0
    %2033 = vmatprep.subr.mxu0 0.0
    %2034 = vmatpush1.msra.mxu0 0.0
    %2035 = vmatprep.subr.mxu0 0.0
    %2036 = vmatpush1.msra.mxu0 0.0
    %2037 = vmatprep.subr.mxu0 0.0
    %2038 = vmatpush1.msra.mxu0 0.0
    %2039 = vmatprep.subr.mxu0 0.0
    %2040 = vmatpush1.msra.mxu0 0.0
    %2041 = vmatprep.subr.mxu0 0.0
    %2042 = vmatpush1.msra.mxu0 0.0
    %2043 = vmatprep.subr.mxu0 0.0
    %2044 = vmatpush1.msra.mxu0 0.0
    %2045 = vmatprep.subr.mxu0 0.0
    %2046 = vmatpush1.msra.mxu0 0.0
    %2047 = vmatprep.subr.mxu0 0.0
    %2048 = vmatpush1.msra.mxu0 0.0
    %2049 = vmatprep.subr.mxu0 0.0
    %2050 = vmatpush1.msra.mxu0 0.0
    %2051 = vmatprep.subr.mxu0 0.0
    %2052 = vmatpush1.msra.mxu0 0.0
    %2053 = vmatprep.mubr.f32.mxu0 0.0
    %2054 = vmatmul.mubr.f32.gmra.mrb[0].mxu0 %v1987
    %v2055 = vpop.f32.mrb[0].mxu0
    %v2056 = vadd.f32 %v326, %v2055
    %v2057 = vpop.f32.mrb[0].mxu0
    %2058 = vdwg.mxu0
    %v2060 = vrot.slane %v1981, 4
    %v2062 = vadd.f32 %v145, %v2060
    %v2063 = vxor.u32 %v2062, 2147483648
    %v2064 = vmul.f32 %v2063, 1.442695
    %v2065 = vpow.pop %v2064
    %v2066 = vadd.f32 %v2065, 1.0
    %v2067 = vrcp.pop %v2066
    %v2068 = vmul.f32 1.0, %v2067
    %2069 = vrot.lane.b32.xlu0 %v2060, 64
    %v2070 = vpop.permute.xlu0 %2069
    %v2072 = vmul.f32 %v2068, %v2070
    %2074 = vrot.lane.b32.xlu0 %v2072, 64
    %v2075 = vpop.permute.xlu0 %2074
    %v2077 = vadd.f32 %v145, %v2075
    %v2078 = vtanh.pop %v2077
    %v2079 = vsub.f32 1.0, %v2068
    %2081 = vrot.lane.b32.xlu0 %v2078, 96
    %v2082 = vpop.permute.xlu0 %2081
    %v2084 = vmul.f32 %v2079, %v2082
    %v2085 = vrot.slane %v1809, 6
    %v2087 = vmul.f32 %v2068, %v2085
    %v2088 = vadd.f32 %v2084, %v2087
    %v2090 = vrot.slane %v2056, 6
    %v2092 = vadd.f32 %v224, %v2090
    %v2093 = vxor.u32 %v2092, 2147483648
    %v2094 = vmul.f32 %v2093, 1.442695
    %v2095 = vpow.pop %v2094
    %v2096 = vadd.f32 %v2095, 1.0
    %v2097 = vrcp.pop %v2096
    %v2098 = vmul.f32 1.0, %v2097
    %2099 = vrot.lane.b32.xlu0 %v2090, 64
    %v2100 = vpop.permute.xlu0 %2099
    %v2102 = vmul.f32 %v2098, %v2100
    %2104 = vrot.lane.b32.xlu0 %v2102, 64
    %v2105 = vpop.permute.xlu0 %2104
    %v2107 = vadd.f32 %v224, %v2105
    %v2108 = vtanh.pop %v2107
    %v2109 = vsub.f32 1.0, %v2098
    %2111 = vrot.lane.b32.xlu0 %v2108, 96
    %v2112 = vpop.permute.xlu0 %2111
    %v2114 = vmul.f32 %v2109, %v2112
    %v2115 = vrot.slane %v1839, 2
    %v2117 = vmul.f32 %v2098, %v2115
    %v2118 = vadd.f32 %v2114, %v2117
    %v2120 = vcombine.high %v2088, %v2088
    %v2122 = vunpack.c.l.s4 1966171168
    %v2123 = vunpack.c.0.s8 %v2122
    %v2124 = vlaneseq
    %v2125 = vshrl.u32 %v2124, 7
    %v2126 = vsub.s32 %v2123, %v2125
    %v2127 = vrot.slane %v2120, %v2126
    %v2128 = vcombine.high %v2127, %v2127
    %v2130 = vunpack.c.l.s4 1966171168
    %v2131 = vunpack.c.0.s8 %v2130
    %v2132 = vlaneseq
    %v2133 = vshrl.u32 %v2132, 7
    %v2134 = vsub.s32 %v2131, %v2133
    %v2135 = vrot.slane %v2127, %v2134
    %v2137 = vunpack.c.l.s4 1966171168
    %v2138 = vunpack.c.0.s8 %v2137
    %v2139 = vlaneseq
    %v2140 = vshrl.u32 %v2139, 7
    %v2141 = vsub.s32 %v2138, %v2140
    %v2142 = vrot.slane %v2128, %v2141
    %v2143 = vlaneseq
    %v2144 = vshrl.u32 %v2143, 7
    %v2145 = vsub.s32 0, %v2144
    %v2146 = vrot.slane %v2135, %v2145
    %v2147 = vlaneseq
    %v2148 = vshrl.u32 %v2147, 7
    %v2149 = vsub.s32 0, %v2148
    %v2150 = vrot.slane %v2142, %v2149
    %2151 = vrot.lane.b32.xlu0 %v2146, 96
    %v2152 = vpop.permute.xlu0 %2151
    %2153 = vrot.lane.b32.xlu0 %v2150, 96
    %v2154 = vpop.permute.xlu0 %2153
    %2157 = vst.msk [vmem:[#allocation2 + $0x6] sm:$0x1] %vm489, %v2152
    %2158 = vst.msk [vmem:[#allocation2 + $0xe] sm:$0x1] %vm489, %v2154
    %v2161 = vunpack.c.l.s4 1966171168
    %v2162 = vunpack.c.0.s8 %v2161
    %v2163 = vlaneseq
    %v2164 = vshrl.u32 %v2163, 7
    %v2165 = vsub.s32 %v2162, %v2164
    %v2166 = vrot.slane %v2118, %v2165
    %v2167 = vcombine.high %v2166, %v2166
    %v2169 = vunpack.c.l.s4 1966171168
    %v2170 = vunpack.c.0.s8 %v2169
    %v2171 = vlaneseq
    %v2172 = vshrl.u32 %v2171, 7
    %v2173 = vsub.s32 %v2170, %v2172
    %v2174 = vrot.slane %v2166, %v2173
    %v2176 = vunpack.c.l.s4 1966171168
    %v2177 = vunpack.c.0.s8 %v2176
    %v2178 = vlaneseq
    %v2179 = vshrl.u32 %v2178, 7
    %v2180 = vsub.s32 %v2177, %v2179
    %v2181 = vrot.slane %v2167, %v2180
    %v2182 = vcombine.high %v2174, %v2174
    %v2183 = vcombine.high %v2181, %v2181
    %2186 = vst.msk [vmem:[#allocation2 + $0x1] sm:$0x1] %vm520, %v2182
    %2187 = vst.msk [vmem:[#allocation2 + $0x9] sm:$0x1] %vm520, %v2183
    %v2188 = vrot.slane %v2088, 4
    %2189 = vrot.lane.b32.xlu0 %v2188, 96
    %v2190 = vpop.permute.xlu0 %2189
    %v2191 = vsel %vm248, %v2190, 0
    %2193 = vmatprep.subr.mxu0 0.0
    %2194 = vmatpush1.msra.mxu0 %v232
    %2195 = vmatprep.subr.mxu0 0.0
    %2196 = vmatpush1.msra.mxu0 %v233
    %2197 = vmatprep.subr.mxu0 0.0
    %2198 = vmatpush1.msra.mxu0 %v234
    %2199 = vmatprep.subr.mxu0 0.0
    %2200 = vmatpush1.msra.mxu0 %v235
    %2201 = vmatprep.subr.mxu0 0.0
    %2202 = vmatpush1.msra.mxu0 0.0
    %2203 = vmatprep.subr.mxu0 0.0
    %2204 = vmatpush1.msra.mxu0 0.0
    %2205 = vmatprep.subr.mxu0 0.0
    %2206 = vmatpush1.msra.mxu0 0.0
    %2207 = vmatprep.subr.mxu0 0.0
    %2208 = vmatpush1.msra.mxu0 0.0
    %2209 = vmatprep.subr.mxu0 0.0
    %2210 = vmatpush1.msra.mxu0 0.0
    %2211 = vmatprep.subr.mxu0 0.0
    %2212 = vmatpush1.msra.mxu0 0.0
    %2213 = vmatprep.subr.mxu0 0.0
    %2214 = vmatpush1.msra.mxu0 0.0
    %2215 = vmatprep.subr.mxu0 0.0
    %2216 = vmatpush1.msra.mxu0 0.0
    %2217 = vmatprep.subr.mxu0 0.0
    %2218 = vmatpush1.msra.mxu0 0.0
    %2219 = vmatprep.subr.mxu0 0.0
    %2220 = vmatpush1.msra.mxu0 0.0
    %2221 = vmatprep.subr.mxu0 0.0
    %2222 = vmatpush1.msra.mxu0 0.0
    %2223 = vmatprep.subr.mxu0 0.0
    %2224 = vmatpush1.msra.mxu0 0.0
    %2225 = vmatprep.subr.mxu0 0.0
    %2226 = vmatpush1.msra.mxu0 0.0
    %2227 = vmatprep.subr.mxu0 0.0
    %2228 = vmatpush1.msra.mxu0 0.0
    %2229 = vmatprep.subr.mxu0 0.0
    %2230 = vmatpush1.msra.mxu0 0.0
    %2231 = vmatprep.subr.mxu0 0.0
    %2232 = vmatpush1.msra.mxu0 0.0
    %2233 = vmatprep.subr.mxu0 0.0
    %2234 = vmatpush1.msra.mxu0 0.0
    %2235 = vmatprep.subr.mxu0 0.0
    %2236 = vmatpush1.msra.mxu0 0.0
    %2237 = vmatprep.subr.mxu0 0.0
    %2238 = vmatpush1.msra.mxu0 0.0
    %2239 = vmatprep.subr.mxu0 0.0
    %2240 = vmatpush1.msra.mxu0 0.0
    %2241 = vmatprep.subr.mxu0 0.0
    %2242 = vmatpush1.msra.mxu0 0.0
    %2243 = vmatprep.subr.mxu0 0.0
    %2244 = vmatpush1.msra.mxu0 0.0
    %2245 = vmatprep.subr.mxu0 0.0
    %2246 = vmatpush1.msra.mxu0 0.0
    %2247 = vmatprep.subr.mxu0 0.0
    %2248 = vmatpush1.msra.mxu0 0.0
    %2249 = vmatprep.subr.mxu0 0.0
    %2250 = vmatpush1.msra.mxu0 0.0
    %2251 = vmatprep.subr.mxu0 0.0
    %2252 = vmatpush1.msra.mxu0 0.0
    %2253 = vmatprep.subr.mxu0 0.0
    %2254 = vmatpush1.msra.mxu0 0.0
    %2255 = vmatprep.subr.mxu0 0.0
    %2256 = vmatpush1.msra.mxu0 0.0
    %2257 = vmatprep.mubr.f32.mxu0 0.0
    %2258 = vmatmul.mubr.f32.gmra.mrb[0].mxu0 %v2191
    %v2259 = vpop.f32.mrb[0].mxu0
    %v2260 = vadd.f32 %v246, %v2259
    %v2261 = vpop.f32.mrb[0].mxu0
    %2262 = vdwg.mxu0
    %v2263 = vrot.slane %v2118, 2
    %2264 = vrot.lane.b32.xlu0 %v2263, 96
    %v2265 = vpop.permute.xlu0 %2264
    %v2266 = vsel %vm248, %v2265, 0
    %2268 = vmatprep.subr.mxu0 0.0
    %2269 = vmatpush1.msra.mxu0 %v237
    %2270 = vmatprep.subr.mxu0 0.0
    %2271 = vmatpush1.msra.mxu0 %v238
    %2272 = vmatprep.subr.mxu0 0.0
    %2273 = vmatpush1.msra.mxu0 %v239
    %2274 = vmatprep.subr.mxu0 0.0
    %2275 = vmatpush1.msra.mxu0 %v240
    %2276 = vmatprep.subr.mxu0 0.0
    %2277 = vmatpush1.msra.mxu0 0.0
    %2278 = vmatprep.subr.mxu0 0.0
    %2279 = vmatpush1.msra.mxu0 0.0
    %2280 = vmatprep.subr.mxu0 0.0
    %2281 = vmatpush1.msra.mxu0 0.0
    %2282 = vmatprep.subr.mxu0 0.0
    %2283 = vmatpush1.msra.mxu0 0.0
    %2284 = vmatprep.subr.mxu0 0.0
    %2285 = vmatpush1.msra.mxu0 0.0
    %2286 = vmatprep.subr.mxu0 0.0
    %2287 = vmatpush1.msra.mxu0 0.0
    %2288 = vmatprep.subr.mxu0 0.0
    %2289 = vmatpush1.msra.mxu0 0.0
    %2290 = vmatprep.subr.mxu0 0.0
    %2291 = vmatpush1.msra.mxu0 0.0
    %2292 = vmatprep.subr.mxu0 0.0
    %2293 = vmatpush1.msra.mxu0 0.0
    %2294 = vmatprep.subr.mxu0 0.0
    %2295 = vmatpush1.msra.mxu0 0.0
    %2296 = vmatprep.subr.mxu0 0.0
    %2297 = vmatpush1.msra.mxu0 0.0
    %2298 = vmatprep.subr.mxu0 0.0
    %2299 = vmatpush1.msra.mxu0 0.0
    %2300 = vmatprep.subr.mxu0 0.0
    %2301 = vmatpush1.msra.mxu0 0.0
    %2302 = vmatprep.subr.mxu0 0.0
    %2303 = vmatpush1.msra.mxu0 0.0
    %2304 = vmatprep.subr.mxu0 0.0
    %2305 = vmatpush1.msra.mxu0 0.0
    %2306 = vmatprep.subr.mxu0 0.0
    %2307 = vmatpush1.msra.mxu0 0.0
    %2308 = vmatprep.subr.mxu0 0.0
    %2309 = vmatpush1.msra.mxu0 0.0
    %2310 = vmatprep.subr.mxu0 0.0
    %2311 = vmatpush1.msra.mxu0 0.0
    %2312 = vmatprep.subr.mxu0 0.0
    %2313 = vmatpush1.msra.mxu0 0.0
    %2314 = vmatprep.subr.mxu0 0.0
    %2315 = vmatpush1.msra.mxu0 0.0
    %2316 = vmatprep.subr.mxu0 0.0
    %2317 = vmatpush1.msra.mxu0 0.0
    %2318 = vmatprep.subr.mxu0 0.0
    %2319 = vmatpush1.msra.mxu0 0.0
    %2320 = vmatprep.subr.mxu0 0.0
    %2321 = vmatpush1.msra.mxu0 0.0
    %2322 = vmatprep.subr.mxu0 0.0
    %2323 = vmatpush1.msra.mxu0 0.0
    %2324 = vmatprep.subr.mxu0 0.0
    %2325 = vmatpush1.msra.mxu0 0.0
    %2326 = vmatprep.subr.mxu0 0.0
    %2327 = vmatpush1.msra.mxu0 0.0
    %2328 = vmatprep.subr.mxu0 0.0
    %2329 = vmatpush1.msra.mxu0 0.0
    %2330 = vmatprep.subr.mxu0 0.0
    %2331 = vmatpush1.msra.mxu0 0.0
    %2332 = vmatprep.mubr.f32.mxu0 0.0
    %2333 = vmatmul.mubr.f32.gmra.mrb[0].mxu0 %v2266
    %v2334 = vpop.f32.mrb[0].mxu0
    %v2335 = vadd.f32 %v326, %v2334
    %v2336 = vpop.f32.mrb[0].mxu0
    %2337 = vdwg.mxu0
    %v2339 = vrot.slane %v2260, 2
    %v2341 = vadd.f32 %v145, %v2339
    %v2342 = vxor.u32 %v2341, 2147483648
    %v2343 = vmul.f32 %v2342, 1.442695
    %v2344 = vpow.pop %v2343
    %v2345 = vadd.f32 %v2344, 1.0
    %v2346 = vrcp.pop %v2345
    %v2347 = vmul.f32 1.0, %v2346
    %2348 = vrot.lane.b32.xlu0 %v2339, 64
    %v2349 = vpop.permute.xlu0 %2348
    %v2351 = vmul.f32 %v2347, %v2349
    %2353 = vrot.lane.b32.xlu0 %v2351, 64
    %v2354 = vpop.permute.xlu0 %2353
    %v2356 = vadd.f32 %v145, %v2354
    %v2357 = vtanh.pop %v2356
    %v2358 = vsub.f32 1.0, %v2347
    %2360 = vrot.lane.b32.xlu0 %v2357, 96
    %v2361 = vpop.permute.xlu0 %2360
    %v2363 = vmul.f32 %v2358, %v2361
    %v2364 = vrot.slane %v2088, 6
    %v2366 = vmul.f32 %v2347, %v2364
    %v2367 = vadd.f32 %v2363, %v2366
    %v2368 = vadd.f32 %v224, %v2335
    %v2369 = vxor.u32 %v2368, 2147483648
    %v2370 = vmul.f32 %v2369, 1.442695
    %v2371 = vpow.pop %v2370
    %v2372 = vadd.f32 %v2371, 1.0
    %v2373 = vrcp.pop %v2372
    %v2374 = vmul.f32 1.0, %v2373
    %2376 = vrot.lane.b32.xlu0 %v2335, 64
    %v2377 = vpop.permute.xlu0 %2376
    %v2379 = vmul.f32 %v2374, %v2377
    %2381 = vrot.lane.b32.xlu0 %v2379, 64
    %v2382 = vpop.permute.xlu0 %2381
    %v2384 = vadd.f32 %v224, %v2382
    %v2385 = vtanh.pop %v2384
    %v2386 = vsub.f32 1.0, %v2374
    %2388 = vrot.lane.b32.xlu0 %v2385, 96
    %v2389 = vpop.permute.xlu0 %2388
    %v2391 = vmul.f32 %v2386, %v2389
    %v2393 = vmul.f32 %v2374, %v2263
    %v2394 = vadd.f32 %v2391, %v2393
    %v2396 = vcombine.high %v2367, %v2367
    %v2398 = vunpack.c.l.s4 1966171168
    %v2399 = vunpack.c.0.s8 %v2398
    %v2400 = vlaneseq
    %v2401 = vshrl.u32 %v2400, 7
    %v2402 = vsub.s32 %v2399, %v2401
    %v2403 = vrot.slane %v2396, %v2402
    %v2404 = vcombine.high %v2403, %v2403
    %v2406 = vunpack.c.l.s4 1966171168
    %v2407 = vunpack.c.0.s8 %v2406
    %v2408 = vlaneseq
    %v2409 = vshrl.u32 %v2408, 7
    %v2410 = vsub.s32 %v2407, %v2409
    %v2411 = vrot.slane %v2403, %v2410
    %v2413 = vunpack.c.l.s4 1966171168
    %v2414 = vunpack.c.0.s8 %v2413
    %v2415 = vlaneseq
    %v2416 = vshrl.u32 %v2415, 7
    %v2417 = vsub.s32 %v2414, %v2416
    %v2418 = vrot.slane %v2404, %v2417
    %v2419 = vcombine.high %v2411, %v2411
    %v2420 = vcombine.high %v2418, %v2418
    %v2421 = vlaneseq
    %v2422 = vshrl.u32 %v2421, 7
    %v2423 = vsub.s32 0, %v2422
    %v2424 = vrot.slane %v2419, %v2423
    %v2425 = vlaneseq
    %v2426 = vshrl.u32 %v2425, 7
    %v2427 = vsub.s32 0, %v2426
    %v2428 = vrot.slane %v2420, %v2427
    %2429 = vrot.lane.b32.xlu0 %v2424, 96
    %v2430 = vpop.permute.xlu0 %2429
    %2431 = vrot.lane.b32.xlu0 %v2428, 96
    %v2432 = vpop.permute.xlu0 %2431
    %2435 = vst.msk [vmem:[#allocation2 + $0x7] sm:$0x1] %vm489, %v2430
    %2436 = vst.msk [vmem:[#allocation2 + $0xf] sm:$0x1] %vm489, %v2432
    %v2439 = vunpack.c.l.s4 1966171168
    %v2440 = vunpack.c.0.s8 %v2439
    %v2441 = vlaneseq
    %v2442 = vshrl.u32 %v2441, 7
    %v2443 = vsub.s32 %v2440, %v2442
    %v2444 = vrot.slane %v2394, %v2443
    %v2445 = vcombine.high %v2444, %v2444
    %v2447 = vunpack.c.l.s4 1966171168
    %v2448 = vunpack.c.0.s8 %v2447
    %v2449 = vlaneseq
    %v2450 = vshrl.u32 %v2449, 7
    %v2451 = vsub.s32 %v2448, %v2450
    %v2452 = vrot.slane %v2444, %v2451
    %v2454 = vunpack.c.l.s4 1966171168
    %v2455 = vunpack.c.0.s8 %v2454
    %v2456 = vlaneseq
    %v2457 = vshrl.u32 %v2456, 7
    %v2458 = vsub.s32 %v2455, %v2457
    %v2459 = vrot.slane %v2445, %v2458
    %2462 = vst.msk [vmem:[#allocation2] sm:$0x1] %vm520, %v2452
    %2463 = vst.msk [vmem:[#allocation2 + $0x8] sm:$0x1] %vm520, %v2459
    %2464 = vrot.lane.b32.xlu0 %v2367, 96
    %v2465 = vpop.permute.xlu0 %2464
    %v2467 = vrot.slane %v2394, 2
    %v2469 = vsel %vm248, %v2465, %v2467
    %v2470 = vld [vmem:[#allocation2] sm:$0xff]
    %v2471 = vld [vmem:[#allocation2 + $0x8] sm:$0xff]
    %v2472 = vld [vmem:[%s9] sm:$0xff]
    %v2473 = vld [vmem:[%s9 + $0x8] sm:$0xff]
    %v2474 = vld [vmem:[%s9 + $0x10] sm:$0xff]
    %v2475 = vld [vmem:[%s9 + $0x18] sm:$0xff]
    %v2476 = vld [vmem:[%s9 + $0x20] sm:$0xff]
    %v2477 = vld [vmem:[%s9 + $0x28] sm:$0xff]
    %v2478 = vld [vmem:[%s9 + $0x30] sm:$0xff]
    %v2479 = vld [vmem:[%s9 + $0x38] sm:$0xff]
    %v2480 = vld [vmem:[%s10] sm:$0x1]
    %v2482 = vlaneseq
    %v2483 = vshrl.u32 %v2482, 7
    %v2484 = vsub.s32 0, %v2483
    %v2485 = vrot.slane %v2480, %v2484
    %v2488 = vrot.slane %v2469, 6
    %vm2489 = vcmask 523264
    %v2490 = vsel %vm2489, %v2488, 0
    %2492 = vmatprep.subr.mxu0 0.0
    %2493 = vmatpush1.msra.mxu0 %v2472
    %2494 = vmatprep.subr.mxu0 0.0
    %2495 = vmatpush1.msra.mxu0 %v2473
    %2496 = vmatprep.subr.mxu0 0.0
    %2497 = vmatpush1.msra.mxu0 %v2474
    %2498 = vmatprep.subr.mxu0 0.0
    %2499 = vmatpush1.msra.mxu0 %v2475
    %2500 = vmatprep.subr.mxu0 0.0
    %2501 = vmatpush1.msra.mxu0 %v2476
    %2502 = vmatprep.subr.mxu0 0.0
    %2503 = vmatpush1.msra.mxu0 %v2477
    %2504 = vmatprep.subr.mxu0 0.0
    %2505 = vmatpush1.msra.mxu0 %v2478
    %2506 = vmatprep.subr.mxu0 0.0
    %2507 = vmatpush1.msra.mxu0 %v2479
    %2508 = vmatprep.subr.mxu0 0.0
    %2509 = vmatpush1.msra.mxu0 0.0
    %2510 = vmatprep.subr.mxu0 0.0
    %2511 = vmatpush1.msra.mxu0 0.0
    %2512 = vmatprep.subr.mxu0 0.0
    %2513 = vmatpush1.msra.mxu0 0.0
    %2514 = vmatprep.subr.mxu0 0.0
    %2515 = vmatpush1.msra.mxu0 0.0
    %2516 = vmatprep.subr.mxu0 0.0
    %2517 = vmatpush1.msra.mxu0 0.0
    %2518 = vmatprep.subr.mxu0 0.0
    %2519 = vmatpush1.msra.mxu0 0.0
    %2520 = vmatprep.subr.mxu0 0.0
    %2521 = vmatpush1.msra.mxu0 0.0
    %2522 = vmatprep.subr.mxu0 0.0
    %2523 = vmatpush1.msra.mxu0 0.0
    %2524 = vmatprep.subr.mxu0 0.0
    %2525 = vmatpush1.msra.mxu0 0.0
    %2526 = vmatprep.subr.mxu0 0.0
    %2527 = vmatpush1.msra.mxu0 0.0
    %2528 = vmatprep.subr.mxu0 0.0
    %2529 = vmatpush1.msra.mxu0 0.0
    %2530 = vmatprep.subr.mxu0 0.0
    %2531 = vmatpush1.msra.mxu0 0.0
    %2532 = vmatprep.subr.mxu0 0.0
    %2533 = vmatpush1.msra.mxu0 0.0
    %2534 = vmatprep.subr.mxu0 0.0
    %2535 = vmatpush1.msra.mxu0 0.0
    %2536 = vmatprep.subr.mxu0 0.0
    %2537 = vmatpush1.msra.mxu0 0.0
    %2538 = vmatprep.subr.mxu0 0.0
    %2539 = vmatpush1.msra.mxu0 0.0
    %2540 = vmatprep.subr.mxu0 0.0
    %2541 = vmatpush1.msra.mxu0 0.0
    %2542 = vmatprep.subr.mxu0 0.0
    %2543 = vmatpush1.msra.mxu0 0.0
    %2544 = vmatprep.subr.mxu0 0.0
    %2545 = vmatpush1.msra.mxu0 0.0
    %2546 = vmatprep.subr.mxu0 0.0
    %2547 = vmatpush1.msra.mxu0 0.0
    %2548 = vmatprep.subr.mxu0 0.0
    %2549 = vmatpush1.msra.mxu0 0.0
    %2550 = vmatprep.subr.mxu0 0.0
    %2551 = vmatpush1.msra.mxu0 0.0
    %2552 = vmatprep.subr.mxu0 0.0
    %2553 = vmatpush1.msra.mxu0 0.0
    %2554 = vmatprep.subr.mxu0 0.0
    %2555 = vmatpush1.msra.mxu0 0.0
    %2556 = vmatprep.mubr.f32.mxu0 0.0
    %2557 = vmatmul.mubr.f32.gmra.mrb[0].mxu0 %v2490
    %v2558 = vpop.f32.mrb[0].mxu0
    %v2559 = vadd.f32 %v2485, %v2558
    %v2560 = vpop.f32.mrb[0].mxu0
    %2561 = vdwg.mxu0
    %v2564 = vunpack.c.l.s4 1966171168
    %v2565 = vunpack.c.0.s8 %v2564
    %v2566 = vlaneseq
    %v2567 = vshrl.u32 %v2566, 7
    %v2568 = vsub.s32 %v2565, %v2567
    %v2569 = vrot.slane %v2559, %v2568
    %v2570 = vcombine.high %v2569, %v2569
    %v2572 = vunpack.c.l.s4 1966171168
    %v2573 = vunpack.c.0.s8 %v2572
    %v2574 = vlaneseq
    %v2575 = vshrl.u32 %v2574, 7
    %v2576 = vsub.s32 %v2573, %v2575
    %v2577 = vrot.slane %v2569, %v2576
    %v2579 = vunpack.c.l.s4 1966171168
    %v2580 = vunpack.c.0.s8 %v2579
    %v2581 = vlaneseq
    %v2582 = vshrl.u32 %v2581, 7
    %v2583 = vsub.s32 %v2580, %v2582
    %v2584 = vrot.slane %v2570, %v2583
    %vm2585 = vcmask 64512
    %v2586 = vsel %vm2585, %v2577, 0
    %2588 = vmatprep.subr.mxu0 0.0
    %2589 = vmatpush1.msra.mxu0 %v2470
    %2590 = vmatprep.subr.mxu0 0.0
    %2591 = vmatpush1.msra.mxu0 0.0
    %2592 = vmatprep.subr.mxu0 0.0
    %2593 = vmatpush1.msra.mxu0 0.0
    %2594 = vmatprep.subr.mxu0 0.0
    %2595 = vmatpush1.msra.mxu0 0.0
    %2596 = vmatprep.subr.mxu0 0.0
    %2597 = vmatpush1.msra.mxu0 0.0
    %2598 = vmatprep.subr.mxu0 0.0
    %2599 = vmatpush1.msra.mxu0 0.0
    %2600 = vmatprep.subr.mxu0 0.0
    %2601 = vmatpush1.msra.mxu0 0.0
    %2602 = vmatprep.subr.mxu0 0.0
    %2603 = vmatpush1.msra.mxu0 0.0
    %2604 = vmatprep.subr.mxu0 0.0
    %2605 = vmatpush1.msra.mxu0 0.0
    %2606 = vmatprep.subr.mxu0 0.0
    %2607 = vmatpush1.msra.mxu0 0.0
    %2608 = vmatprep.subr.mxu0 0.0
    %2609 = vmatpush1.msra.mxu0 0.0
    %2610 = vmatprep.subr.mxu0 0.0
    %2611 = vmatpush1.msra.mxu0 0.0
    %2612 = vmatprep.subr.mxu0 0.0
    %2613 = vmatpush1.msra.mxu0 0.0
    %2614 = vmatprep.subr.mxu0 0.0
    %2615 = vmatpush1.msra.mxu0 0.0
    %2616 = vmatprep.subr.mxu0 0.0
    %2617 = vmatpush1.msra.mxu0 0.0
    %2618 = vmatprep.subr.mxu0 0.0
    %2619 = vmatpush1.msra.mxu0 0.0
    %2620 = vmatprep.subr.mxu0 0.0
    %2621 = vmatpush1.msra.mxu0 0.0
    %2622 = vmatprep.subr.mxu0 0.0
    %2623 = vmatpush1.msra.mxu0 0.0
    %2624 = vmatprep.subr.mxu0 0.0
    %2625 = vmatpush1.msra.mxu0 0.0
    %2626 = vmatprep.subr.mxu0 0.0
    %2627 = vmatpush1.msra.mxu0 0.0
    %2628 = vmatprep.subr.mxu0 0.0
    %2629 = vmatpush1.msra.mxu0 0.0
    %2630 = vmatprep.subr.mxu0 0.0
    %2631 = vmatpush1.msra.mxu0 0.0
    %2632 = vmatprep.subr.mxu0 0.0
    %2633 = vmatpush1.msra.mxu0 0.0
    %2634 = vmatprep.subr.mxu0 0.0
    %2635 = vmatpush1.msra.mxu0 0.0
    %2636 = vmatprep.subr.mxu0 0.0
    %2637 = vmatpush1.msra.mxu0 0.0
    %2638 = vmatprep.subr.mxu0 0.0
    %2639 = vmatpush1.msra.mxu0 0.0
    %2640 = vmatprep.subr.mxu0 0.0
    %2641 = vmatpush1.msra.mxu0 0.0
    %2642 = vmatprep.subr.mxu0 0.0
    %2643 = vmatpush1.msra.mxu0 0.0
    %2644 = vmatprep.subr.mxu0 0.0
    %2645 = vmatpush1.msra.mxu0 0.0
    %2646 = vmatprep.subr.mxu0 0.0
    %2647 = vmatpush1.msra.mxu0 0.0
    %2648 = vmatprep.subr.mxu0 0.0
    %2649 = vmatpush1.msra.mxu0 0.0
    %2650 = vmatprep.subr.mxu0 0.0
    %2651 = vmatpush1.msra.mxu0 0.0
    %2652 = vmatprep.mubr.f32.mxu0 0.0
    %2653 = vmatmul.mubr.f32.gmra.mrb[0].mxu0 %v2586
    %v2654 = vpop.f32.mrb[0].mxu0
    %v2655 = vadd.f32 0.0, %v2654
    %v2656 = vpop.f32.mrb[0].mxu0
    %2657 = vdwg.mxu0
    %v2658 = vsel %vm2585, %v2584, 0
    %2660 = vmatprep.subr.mxu0 0.0
    %2661 = vmatpush1.msra.mxu0 %v2471
    %2662 = vmatprep.subr.mxu0 0.0
    %2663 = vmatpush1.msra.mxu0 0.0
    %2664 = vmatprep.subr.mxu0 0.0
    %2665 = vmatpush1.msra.mxu0 0.0
    %2666 = vmatprep.subr.mxu0 0.0
    %2667 = vmatpush1.msra.mxu0 0.0
    %2668 = vmatprep.subr.mxu0 0.0
    %2669 = vmatpush1.msra.mxu0 0.0
    %2670 = vmatprep.subr.mxu0 0.0
    %2671 = vmatpush1.msra.mxu0 0.0
    %2672 = vmatprep.subr.mxu0 0.0
    %2673 = vmatpush1.msra.mxu0 0.0
    %2674 = vmatprep.subr.mxu0 0.0
    %2675 = vmatpush1.msra.mxu0 0.0
    %2676 = vmatprep.subr.mxu0 0.0
    %2677 = vmatpush1.msra.mxu0 0.0
    %2678 = vmatprep.subr.mxu0 0.0
    %2679 = vmatpush1.msra.mxu0 0.0
    %2680 = vmatprep.subr.mxu0 0.0
    %2681 = vmatpush1.msra.mxu0 0.0
    %2682 = vmatprep.subr.mxu0 0.0
    %2683 = vmatpush1.msra.mxu0 0.0
    %2684 = vmatprep.subr.mxu0 0.0
    %2685 = vmatpush1.msra.mxu0 0.0
    %2686 = vmatprep.subr.mxu0 0.0
    %2687 = vmatpush1.msra.mxu0 0.0
    %2688 = vmatprep.subr.mxu0 0.0
    %2689 = vmatpush1.msra.mxu0 0.0
    %2690 = vmatprep.subr.mxu0 0.0
    %2691 = vmatpush1.msra.mxu0 0.0
    %2692 = vmatprep.subr.mxu0 0.0
    %2693 = vmatpush1.msra.mxu0 0.0
    %2694 = vmatprep.subr.mxu0 0.0
    %2695 = vmatpush1.msra.mxu0 0.0
    %2696 = vmatprep.subr.mxu0 0.0
    %2697 = vmatpush1.msra.mxu0 0.0
    %2698 = vmatprep.subr.mxu0 0.0
    %2699 = vmatpush1.msra.mxu0 0.0
    %2700 = vmatprep.subr.mxu0 0.0
    %2701 = vmatpush1.msra.mxu0 0.0
    %2702 = vmatprep.subr.mxu0 0.0
    %2703 = vmatpush1.msra.mxu0 0.0
    %2704 = vmatprep.subr.mxu0 0.0
    %2705 = vmatpush1.msra.mxu0 0.0
    %2706 = vmatprep.subr.mxu0 0.0
    %2707 = vmatpush1.msra.mxu0 0.0
    %2708 = vmatprep.subr.mxu0 0.0
    %2709 = vmatpush1.msra.mxu0 0.0
    %2710 = vmatprep.subr.mxu0 0.0
    %2711 = vmatpush1.msra.mxu0 0.0
    %2712 = vmatprep.subr.mxu0 0.0
    %2713 = vmatpush1.msra.mxu0 0.0
    %2714 = vmatprep.subr.mxu0 0.0
    %2715 = vmatpush1.msra.mxu0 0.0
    %2716 = vmatprep.subr.mxu0 0.0
    %2717 = vmatpush1.msra.mxu0 0.0
    %2718 = vmatprep.subr.mxu0 0.0
    %2719 = vmatpush1.msra.mxu0 0.0
    %2720 = vmatprep.subr.mxu0 0.0
    %2721 = vmatpush1.msra.mxu0 0.0
    %2722 = vmatprep.subr.mxu0 0.0
    %2723 = vmatpush1.msra.mxu0 0.0
    %2724 = vmatprep.mubr.f32.mxu0 0.0
    %2725 = vmatmul.mubr.f32.gmra.mrb[0].mxu0 %v2658
    %v2726 = vpop.f32.mrb[0].mxu0
    %v2727 = vadd.f32 0.0, %v2726
    %v2728 = vpop.f32.mrb[0].mxu0
    %2729 = vdwg.mxu0
    %v2732 = vrot.slane %v2727, 7
    %vm2733 = vcmask 1041409
    %v2734 = vsel %vm2733, %v2732, %v2655
    %v2735 = vsel %vm2489, %v2734, 0
    %2737 = vmatprep.subr.mxu0 0.0
    %2738 = vmatpush1.msra.mxu0 %v2472
    %2739 = vmatprep.subr.mxu0 0.0
    %2740 = vmatpush1.msra.mxu0 %v2473
    %2741 = vmatprep.subr.mxu0 0.0
    %2742 = vmatpush1.msra.mxu0 %v2474
    %2743 = vmatprep.subr.mxu0 0.0
    %2744 = vmatpush1.msra.mxu0 %v2475
    %2745 = vmatprep.subr.mxu0 0.0
    %2746 = vmatpush1.msra.mxu0 %v2476
    %2747 = vmatprep.subr.mxu0 0.0
    %2748 = vmatpush1.msra.mxu0 %v2477
    %2749 = vmatprep.subr.mxu0 0.0
    %2750 = vmatpush1.msra.mxu0 %v2478
    %2751 = vmatprep.subr.mxu0 0.0
    %2752 = vmatpush1.msra.mxu0 %v2479
    %2753 = vmatprep.subr.mxu0 0.0
    %2754 = vmatpush1.msra.mxu0 0.0
    %2755 = vmatprep.subr.mxu0 0.0
    %2756 = vmatpush1.msra.mxu0 0.0
    %2757 = vmatprep.subr.mxu0 0.0
    %2758 = vmatpush1.msra.mxu0 0.0
    %2759 = vmatprep.subr.mxu0 0.0
    %2760 = vmatpush1.msra.mxu0 0.0
    %2761 = vmatprep.subr.mxu0 0.0
    %2762 = vmatpush1.msra.mxu0 0.0
    %2763 = vmatprep.subr.mxu0 0.0
    %2764 = vmatpush1.msra.mxu0 0.0
    %2765 = vmatprep.subr.mxu0 0.0
    %2766 = vmatpush1.msra.mxu0 0.0
    %2767 = vmatprep.subr.mxu0 0.0
    %2768 = vmatpush1.msra.mxu0 0.0
    %2769 = vmatprep.subr.mxu0 0.0
    %2770 = vmatpush1.msra.mxu0 0.0
    %2771 = vmatprep.subr.mxu0 0.0
    %2772 = vmatpush1.msra.mxu0 0.0
    %2773 = vmatprep.subr.mxu0 0.0
    %2774 = vmatpush1.msra.mxu0 0.0
    %2775 = vmatprep.subr.mxu0 0.0
    %2776 = vmatpush1.msra.mxu0 0.0
    %2777 = vmatprep.subr.mxu0 0.0
    %2778 = vmatpush1.msra.mxu0 0.0
    %2779 = vmatprep.subr.mxu0 0.0
    %2780 = vmatpush1.msra.mxu0 0.0
    %2781 = vmatprep.subr.mxu0 0.0
    %2782 = vmatpush1.msra.mxu0 0.0
    %2783 = vmatprep.subr.mxu0 0.0
    %2784 = vmatpush1.msra.mxu0 0.0
    %2785 = vmatprep.subr.mxu0 0.0
    %2786 = vmatpush1.msra.mxu0 0.0
    %2787 = vmatprep.subr.mxu0 0.0
    %2788 = vmatpush1.msra.mxu0 0.0
    %2789 = vmatprep.subr.mxu0 0.0
    %2790 = vmatpush1.msra.mxu0 0.0
    %2791 = vmatprep.subr.mxu0 0.0
    %2792 = vmatpush1.msra.mxu0 0.0
    %2793 = vmatprep.subr.mxu0 0.0
    %2794 = vmatpush1.msra.mxu0 0.0
    %2795 = vmatprep.subr.mxu0 0.0
    %2796 = vmatpush1.msra.mxu0 0.0
    %2797 = vmatprep.subr.mxu0 0.0
    %2798 = vmatpush1.msra.mxu0 0.0
    %2799 = vmatprep.subr.mxu0 0.0
    %2800 = vmatpush1.msra.mxu0 0.0
    %2801 = vmatprep.mubr.f32.mxu0 0.0
    %2802 = vmatmul.mubr.f32.gmra.mrb[0].mxu0 %v2735
    %v2803 = vpop.f32.mrb[0].mxu0
    %v2804 = vadd.f32 %v2485, %v2803
    %v2805 = vpop.f32.mrb[0].mxu0
    %2806 = vdwg.mxu0
    %vm2807 = vcmask 58368
    %v2808 = vsel %vm2807, %v2804, -inf
    %2809 = vmax.xlane.f32.xlu0 %v2808
    %v2810 = vpop.xlane.xlu0 %2809
    %v2811 = vsub.f32 %v2804, %v2810
    %v2812 = vmul.f32 %v2811, 1.442695
    %v2813 = vpow.pop %v2812
    %v2814 = vsel %vm2807, %v2813, 0.0
    %2815 = vadd.xlane.f32.xlu0 %v2814
    %v2816 = vpop.xlane.xlu0 %2815
    %v2817 = vrcp.pop %v2816
    %v2818 = vmul.f32 %v2813, %v2817
    %v2821 = vunpack.c.l.s4 1966171168
    %v2822 = vunpack.c.0.s8 %v2821
    %v2823 = vlaneseq
    %v2824 = vshrl.u32 %v2823, 7
    %v2825 = vsub.s32 %v2822, %v2824
    %v2826 = vrot.slane %v2818, %v2825
    %v2827 = vcombine.high %v2826, %v2826
    %v2829 = vunpack.c.l.s4 1966171168
    %v2830 = vunpack.c.0.s8 %v2829
    %v2831 = vlaneseq
    %v2832 = vshrl.u32 %v2831, 7
    %v2833 = vsub.s32 %v2830, %v2832
    %v2834 = vrot.slane %v2826, %v2833
    %v2836 = vunpack.c.l.s4 1966171168
    %v2837 = vunpack.c.0.s8 %v2836
    %v2838 = vlaneseq
    %v2839 = vshrl.u32 %v2838, 7
    %v2840 = vsub.s32 %v2837, %v2839
    %v2841 = vrot.slane %v2827, %v2840
    %v2842 = vsel %vm2585, %v2834, 0
    %2844 = vmatprep.subr.mxu0 0.0
    %2845 = vmatpush1.msra.mxu0 %v2470
    %2846 = vmatprep.subr.mxu0 0.0
    %2847 = vmatpush1.msra.mxu0 0.0
    %2848 = vmatprep.subr.mxu0 0.0
    %2849 = vmatpush1.msra.mxu0 0.0
    %2850 = vmatprep.subr.mxu0 0.0
    %2851 = vmatpush1.msra.mxu0 0.0
    %2852 = vmatprep.subr.mxu0 0.0
    %2853 = vmatpush1.msra.mxu0 0.0
    %2854 = vmatprep.subr.mxu0 0.0
    %2855 = vmatpush1.msra.mxu0 0.0
    %2856 = vmatprep.subr.mxu0 0.0
    %2857 = vmatpush1.msra.mxu0 0.0
    %2858 = vmatprep.subr.mxu0 0.0
    %2859 = vmatpush1.msra.mxu0 0.0
    %2860 = vmatprep.subr.mxu0 0.0
    %2861 = vmatpush1.msra.mxu0 0.0
    %2862 = vmatprep.subr.mxu0 0.0
    %2863 = vmatpush1.msra.mxu0 0.0
    %2864 = vmatprep.subr.mxu0 0.0
    %2865 = vmatpush1.msra.mxu0 0.0
    %2866 = vmatprep.subr.mxu0 0.0
    %2867 = vmatpush1.msra.mxu0 0.0
    %2868 = vmatprep.subr.mxu0 0.0
    %2869 = vmatpush1.msra.mxu0 0.0
    %2870 = vmatprep.subr.mxu0 0.0
    %2871 = vmatpush1.msra.mxu0 0.0
    %2872 = vmatprep.subr.mxu0 0.0
    %2873 = vmatpush1.msra.mxu0 0.0
    %2874 = vmatprep.subr.mxu0 0.0
    %2875 = vmatpush1.msra.mxu0 0.0
    %2876 = vmatprep.subr.mxu0 0.0
    %2877 = vmatpush1.msra.mxu0 0.0
    %2878 = vmatprep.subr.mxu0 0.0
    %2879 = vmatpush1.msra.mxu0 0.0
    %2880 = vmatprep.subr.mxu0 0.0
    %2881 = vmatpush1.msra.mxu0 0.0
    %2882 = vmatprep.subr.mxu0 0.0
    %2883 = vmatpush1.msra.mxu0 0.0
    %2884 = vmatprep.subr.mxu0 0.0
    %2885 = vmatpush1.msra.mxu0 0.0
    %2886 = vmatprep.subr.mxu0 0.0
    %2887 = vmatpush1.msra.mxu0 0.0
    %2888 = vmatprep.subr.mxu0 0.0
    %2889 = vmatpush1.msra.mxu0 0.0
    %2890 = vmatprep.subr.mxu0 0.0
    %2891 = vmatpush1.msra.mxu0 0.0
    %2892 = vmatprep.subr.mxu0 0.0
    %2893 = vmatpush1.msra.mxu0 0.0
    %2894 = vmatprep.subr.mxu0 0.0
    %2895 = vmatpush1.msra.mxu0 0.0
    %2896 = vmatprep.subr.mxu0 0.0
    %2897 = vmatpush1.msra.mxu0 0.0
    %2898 = vmatprep.subr.mxu0 0.0
    %2899 = vmatpush1.msra.mxu0 0.0
    %2900 = vmatprep.subr.mxu0 0.0
    %2901 = vmatpush1.msra.mxu0 0.0
    %2902 = vmatprep.subr.mxu0 0.0
    %2903 = vmatpush1.msra.mxu0 0.0
    %2904 = vmatprep.subr.mxu0 0.0
    %2905 = vmatpush1.msra.mxu0 0.0
    %2906 = vmatprep.subr.mxu0 0.0
    %2907 = vmatpush1.msra.mxu0 0.0
    %2908 = vmatprep.mubr.f32.mxu0 0.0
    %2909 = vmatmul.mubr.f32.gmra.mrb[0].mxu0 %v2842
    %v2910 = vpop.f32.mrb[0].mxu0
    %v2911 = vadd.f32 0.0, %v2910
    %v2912 = vpop.f32.mrb[0].mxu0
    %2913 = vdwg.mxu0
    %v2914 = vsel %vm2585, %v2841, 0
    %2916 = vmatprep.subr.mxu0 0.0
    %2917 = vmatpush1.msra.mxu0 %v2471
    %2918 = vmatprep.subr.mxu0 0.0
    %2919 = vmatpush1.msra.mxu0 0.0
    %2920 = vmatprep.subr.mxu0 0.0
    %2921 = vmatpush1.msra.mxu0 0.0
    %2922 = vmatprep.subr.mxu0 0.0
    %2923 = vmatpush1.msra.mxu0 0.0
    %2924 = vmatprep.subr.mxu0 0.0
    %2925 = vmatpush1.msra.mxu0 0.0
    %2926 = vmatprep.subr.mxu0 0.0
    %2927 = vmatpush1.msra.mxu0 0.0
    %2928 = vmatprep.subr.mxu0 0.0
    %2929 = vmatpush1.msra.mxu0 0.0
    %2930 = vmatprep.subr.mxu0 0.0
    %2931 = vmatpush1.msra.mxu0 0.0
    %2932 = vmatprep.subr.mxu0 0.0
    %2933 = vmatpush1.msra.mxu0 0.0
    %2934 = vmatprep.subr.mxu0 0.0
    %2935 = vmatpush1.msra.mxu0 0.0
    %2936 = vmatprep.subr.mxu0 0.0
    %2937 = vmatpush1.msra.mxu0 0.0
    %2938 = vmatprep.subr.mxu0 0.0
    %2939 = vmatpush1.msra.mxu0 0.0
    %2940 = vmatprep.subr.mxu0 0.0
    %2941 = vmatpush1.msra.mxu0 0.0
    %2942 = vmatprep.subr.mxu0 0.0
    %2943 = vmatpush1.msra.mxu0 0.0
    %2944 = vmatprep.subr.mxu0 0.0
    %2945 = vmatpush1.msra.mxu0 0.0
    %2946 = vmatprep.subr.mxu0 0.0
    %2947 = vmatpush1.msra.mxu0 0.0
    %2948 = vmatprep.subr.mxu0 0.0
    %2949 = vmatpush1.msra.mxu0 0.0
    %2950 = vmatprep.subr.mxu0 0.0
    %2951 = vmatpush1.msra.mxu0 0.0
    %2952 = vmatprep.subr.mxu0 0.0
    %2953 = vmatpush1.msra.mxu0 0.0
    %2954 = vmatprep.subr.mxu0 0.0
    %2955 = vmatpush1.msra.mxu0 0.0
    %2956 = vmatprep.subr.mxu0 0.0
    %2957 = vmatpush1.msra.mxu0 0.0
    %2958 = vmatprep.subr.mxu0 0.0
    %2959 = vmatpush1.msra.mxu0 0.0
    %2960 = vmatprep.subr.mxu0 0.0
    %2961 = vmatpush1.msra.mxu0 0.0
    %2962 = vmatprep.subr.mxu0 0.0
    %2963 = vmatpush1.msra.mxu0 0.0
    %2964 = vmatprep.subr.mxu0 0.0
    %2965 = vmatpush1.msra.mxu0 0.0
    %2966 = vmatprep.subr.mxu0 0.0
    %2967 = vmatpush1.msra.mxu0 0.0
    %2968 = vmatprep.subr.mxu0 0.0
    %2969 = vmatpush1.msra.mxu0 0.0
    %2970 = vmatprep.subr.mxu0 0.0
    %2971 = vmatpush1.msra.mxu0 0.0
    %2972 = vmatprep.subr.mxu0 0.0
    %2973 = vmatpush1.msra.mxu0 0.0
    %2974 = vmatprep.subr.mxu0 0.0
    %2975 = vmatpush1.msra.mxu0 0.0
    %2976 = vmatprep.subr.mxu0 0.0
    %2977 = vmatpush1.msra.mxu0 0.0
    %2978 = vmatprep.subr.mxu0 0.0
    %2979 = vmatpush1.msra.mxu0 0.0
    %2980 = vmatprep.mubr.f32.mxu0 0.0
    %2981 = vmatmul.mubr.f32.gmra.mrb[0].mxu0 %v2914
    %v2982 = vpop.f32.mrb[0].mxu0
    %v2983 = vadd.f32 0.0, %v2982
    %v2984 = vpop.f32.mrb[0].mxu0
    %2985 = vdwg.mxu0
    %v2986 = vld [vmem:[%s11] sm:$0xff]
    %v2987 = vld [vmem:[%s11 + $0x8] sm:$0xff]
    %v2988 = vld [vmem:[%s11 + $0x10] sm:$0xff]
    %v2989 = vld [vmem:[%s11 + $0x18] sm:$0xff]
    %v2990 = vld [vmem:[%s11 + $0x20] sm:$0xff]
    %v2991 = vld [vmem:[%s11 + $0x28] sm:$0xff]
    %v2992 = vld [vmem:[%s11 + $0x30] sm:$0xff]
    %v2993 = vld [vmem:[%s11 + $0x38] sm:$0xff]
    %v2994 = vld [vmem:[%s12] sm:$0x1]
    %v2996 = vlaneseq
    %v2997 = vshrl.u32 %v2996, 7
    %v2998 = vsub.s32 0, %v2997
    %v2999 = vrot.slane %v2994, %v2998
    %v3003 = vrot.slane %v2983, 7
    %v3004 = vsel %vm2733, %v3003, %v2911
    %v3005 = vsel %vm2489, %v3004, 0
    %3007 = vmatprep.subr.mxu0 0.0
    %3008 = vmatpush1.msra.mxu0 %v2986
    %3009 = vmatprep.subr.mxu0 0.0
    %3010 = vmatpush1.msra.mxu0 %v2987
    %3011 = vmatprep.subr.mxu0 0.0
    %3012 = vmatpush1.msra.mxu0 %v2988
    %3013 = vmatprep.subr.mxu0 0.0
    %3014 = vmatpush1.msra.mxu0 %v2989
    %3015 = vmatprep.subr.mxu0 0.0
    %3016 = vmatpush1.msra.mxu0 %v2990
    %3017 = vmatprep.subr.mxu0 0.0
    %3018 = vmatpush1.msra.mxu0 %v2991
    %3019 = vmatprep.subr.mxu0 0.0
    %3020 = vmatpush1.msra.mxu0 %v2992
    %3021 = vmatprep.subr.mxu0 0.0
    %3022 = vmatpush1.msra.mxu0 %v2993
    %3023 = vmatprep.subr.mxu0 0.0
    %3024 = vmatpush1.msra.mxu0 0.0
    %3025 = vmatprep.subr.mxu0 0.0
    %3026 = vmatpush1.msra.mxu0 0.0
    %3027 = vmatprep.subr.mxu0 0.0
    %3028 = vmatpush1.msra.mxu0 0.0
    %3029 = vmatprep.subr.mxu0 0.0
    %3030 = vmatpush1.msra.mxu0 0.0
    %3031 = vmatprep.subr.mxu0 0.0
    %3032 = vmatpush1.msra.mxu0 0.0
    %3033 = vmatprep.subr.mxu0 0.0
    %3034 = vmatpush1.msra.mxu0 0.0
    %3035 = vmatprep.subr.mxu0 0.0
    %3036 = vmatpush1.msra.mxu0 0.0
    %3037 = vmatprep.subr.mxu0 0.0
    %3038 = vmatpush1.msra.mxu0 0.0
    %3039 = vmatprep.subr.mxu0 0.0
    %3040 = vmatpush1.msra.mxu0 0.0
    %3041 = vmatprep.subr.mxu0 0.0
    %3042 = vmatpush1.msra.mxu0 0.0
    %3043 = vmatprep.subr.mxu0 0.0
    %3044 = vmatpush1.msra.mxu0 0.0
    %3045 = vmatprep.subr.mxu0 0.0
    %3046 = vmatpush1.msra.mxu0 0.0
    %3047 = vmatprep.subr.mxu0 0.0
    %3048 = vmatpush1.msra.mxu0 0.0
    %3049 = vmatprep.subr.mxu0 0.0
    %3050 = vmatpush1.msra.mxu0 0.0
    %3051 = vmatprep.subr.mxu0 0.0
    %3052 = vmatpush1.msra.mxu0 0.0
    %3053 = vmatprep.subr.mxu0 0.0
    %3054 = vmatpush1.msra.mxu0 0.0
    %3055 = vmatprep.subr.mxu0 0.0
    %3056 = vmatpush1.msra.mxu0 0.0
    %3057 = vmatprep.subr.mxu0 0.0
    %3058 = vmatpush1.msra.mxu0 0.0
    %3059 = vmatprep.subr.mxu0 0.0
    %3060 = vmatpush1.msra.mxu0 0.0
    %3061 = vmatprep.subr.mxu0 0.0
    %3062 = vmatpush1.msra.mxu0 0.0
    %3063 = vmatprep.subr.mxu0 0.0
    %3064 = vmatpush1.msra.mxu0 0.0
    %3065 = vmatprep.subr.mxu0 0.0
    %3066 = vmatpush1.msra.mxu0 0.0
    %3067 = vmatprep.subr.mxu0 0.0
    %3068 = vmatpush1.msra.mxu0 0.0
    %3069 = vmatprep.subr.mxu0 0.0
    %3070 = vmatpush1.msra.mxu0 0.0
    %3071 = vmatprep.mubr.f32.mxu0 0.0
    %3072 = vmatmul.mubr.f32.gmra.mrb[0].mxu0 %v3005
    %v3073 = vpop.f32.mrb[0].mxu0
    %v3074 = vadd.f32 %v2999, %v3073
    %v3075 = vpop.f32.mrb[0].mxu0
    %3076 = vdwg.mxu0
    %v3077 = vmax.f32 %v3074, 0.0
    %v3078 = vld [vmem:[%s13] sm:$0xff]
    %v3079 = vld [vmem:[%s13 + $0x8] sm:$0xff]
    %v3080 = vld [vmem:[%s13 + $0x10] sm:$0xff]
    %v3081 = vld [vmem:[%s13 + $0x18] sm:$0xff]
    %v3082 = vld [vmem:[%s14] sm:$0x1]
    %v3084 = vlaneseq
    %v3085 = vshrl.u32 %v3084, 7
    %v3086 = vsub.s32 0, %v3085
    %v3087 = vrot.slane %v3082, %v3086
    %v3090 = vsel %vm248, %v3077, 0
    %3092 = vmatprep.subr.mxu0 0.0
    %3093 = vmatpush1.msra.mxu0 %v3078
    %3094 = vmatprep.subr.mxu0 0.0
    %3095 = vmatpush1.msra.mxu0 %v3079
    %3096 = vmatprep.subr.mxu0 0.0
    %3097 = vmatpush1.msra.mxu0 %v3080
    %3098 = vmatprep.subr.mxu0 0.0
    %3099 = vmatpush1.msra.mxu0 %v3081
    %3100 = vmatprep.subr.mxu0 0.0
    %3101 = vmatpush1.msra.mxu0 0.0
    %3102 = vmatprep.subr.mxu0 0.0
    %3103 = vmatpush1.msra.mxu0 0.0
    %3104 = vmatprep.subr.mxu0 0.0
    %3105 = vmatpush1.msra.mxu0 0.0
    %3106 = vmatprep.subr.mxu0 0.0
    %3107 = vmatpush1.msra.mxu0 0.0
    %3108 = vmatprep.subr.mxu0 0.0
    %3109 = vmatpush1.msra.mxu0 0.0
    %3110 = vmatprep.subr.mxu0 0.0
    %3111 = vmatpush1.msra.mxu0 0.0
    %3112 = vmatprep.subr.mxu0 0.0
    %3113 = vmatpush1.msra.mxu0 0.0
    %3114 = vmatprep.subr.mxu0 0.0
    %3115 = vmatpush1.msra.mxu0 0.0
    %3116 = vmatprep.subr.mxu0 0.0
    %3117 = vmatpush1.msra.mxu0 0.0
    %3118 = vmatprep.subr.mxu0 0.0
    %3119 = vmatpush1.msra.mxu0 0.0
    %3120 = vmatprep.subr.mxu0 0.0
    %3121 = vmatpush1.msra.mxu0 0.0
    %3122 = vmatprep.subr.mxu0 0.0
    %3123 = vmatpush1.msra.mxu0 0.0
    %3124 = vmatprep.subr.mxu0 0.0
    %3125 = vmatpush1.msra.mxu0 0.0
    %3126 = vmatprep.subr.mxu0 0.0
    %3127 = vmatpush1.msra.mxu0 0.0
    %3128 = vmatprep.subr.mxu0 0.0
    %3129 = vmatpush1.msra.mxu0 0.0
    %3130 = vmatprep.subr.mxu0 0.0
    %3131 = vmatpush1.msra.mxu0 0.0
    %3132 = vmatprep.subr.mxu0 0.0
    %3133 = vmatpush1.msra.mxu0 0.0
    %3134 = vmatprep.subr.mxu0 0.0
    %3135 = vmatpush1.msra.mxu0 0.0
    %3136 = vmatprep.subr.mxu0 0.0
    %3137 = vmatpush1.msra.mxu0 0.0
    %3138 = vmatprep.subr.mxu0 0.0
    %3139 = vmatpush1.msra.mxu0 0.0
    %3140 = vmatprep.subr.mxu0 0.0
    %3141 = vmatpush1.msra.mxu0 0.0
    %3142 = vmatprep.subr.mxu0 0.0
    %3143 = vmatpush1.msra.mxu0 0.0
    %3144 = vmatprep.subr.mxu0 0.0
    %3145 = vmatpush1.msra.mxu0 0.0
    %3146 = vmatprep.subr.mxu0 0.0
    %3147 = vmatpush1.msra.mxu0 0.0
    %3148 = vmatprep.subr.mxu0 0.0
    %3149 = vmatpush1.msra.mxu0 0.0
    %3150 = vmatprep.subr.mxu0 0.0
    %3151 = vmatpush1.msra.mxu0 0.0
    %3152 = vmatprep.subr.mxu0 0.0
    %3153 = vmatpush1.msra.mxu0 0.0
    %3154 = vmatprep.subr.mxu0 0.0
    %3155 = vmatpush1.msra.mxu0 0.0
    %3156 = vmatprep.mubr.f32.mxu0 0.0
    %3157 = vmatmul.mubr.f32.gmra.mrb[0].mxu0 %v3090
    %v3158 = vpop.f32.mrb[0].mxu0
    %v3159 = vadd.f32 %v3087, %v3158
    %v3160 = vpop.f32.mrb[0].mxu0
    %3161 = vdwg.mxu0
    %vm3162 = vcmask 33792
    %3163 = vst.msk [vmem:[#allocation3] sm:$0x3] %vm3162, %v3159
    %vm3164 = vcmask 523270
    %3165 = vst.msk [vmem:[#allocation5 - $0x6] sm:$0xc0] %vm3164, %v2469
    %3166 = vst.msk [vmem:[#allocation7] sm:$0x3] %vm2807, %v2818
    // Predicated region
    $region62: #{tpu_custom_call.1} parent=1 // pred_check
      _
    $region63: #{tpu_custom_call.1} parent=1 // pred_check_branch
      %3168 = sbr.rel (0) target = $region65
    $region64: #{tpu_custom_call.1} parent=1 // pred_region
      %s3170 = ssub.s32 32, 32
      %3171 = vsyncadd [#allocation4], %s3170
      %s3173 = sshll.u32 [#allocation3], 4
      %s3174 = int_to_ptr.vmem [resolvable:$true] %s3173
      %3176 = dma.vmem_to_hbm [thread:$0]  %s3174, 32, %s15, [#allocation4]
    $region65: #{tpu_custom_call.1} parent=1 // pred_fallthru
      _
    // Predicated region
    $region66: #{tpu_custom_call.1} parent=1 // pred_check
      _
    $region67: #{tpu_custom_call.1} parent=1 // pred_check_branch
      %3178 = sbr.rel (0) target = $region69
    $region68: #{tpu_custom_call.1} parent=1 // pred_region
      %s3180 = ssub.s32 32, 32
      %3181 = vsyncadd [#allocation6], %s3180
      %s3183 = sshll.u32 [#allocation5], 4
      %s3184 = int_to_ptr.vmem [resolvable:$true] %s3183
      %3186 = dma.vmem_to_hbm [thread:$0]  %s3184, 32, %s16, [#allocation6]
    $region69: #{tpu_custom_call.1} parent=1 // pred_fallthru
      _
    // Predicated region
    $region70: #{tpu_custom_call.1} parent=1 // pred_check
      _
    $region71: #{tpu_custom_call.1} parent=1 // pred_check_branch
      %3188 = sbr.rel (0) target = $region73
    $region72: #{tpu_custom_call.1} parent=1 // pred_region
      %s3190 = ssub.s32 32, 32
      %3191 = vsyncadd [#allocation6], %s3190
      %s3193 = sshll.u32 [#allocation7], 4
      %s3194 = int_to_ptr.vmem [resolvable:$true] %s3193
      %3196 = dma.vmem_to_hbm [thread:$0]  %s3194, 32, %s17, [#allocation6]
    $region73: #{tpu_custom_call.1} parent=1 // pred_fallthru
      _
    // Predicated region
    $region74: #{tpu_custom_call.1} parent=1 // pred_check
      _
    $region75: #{tpu_custom_call.1} parent=1 // pred_check_branch
      %3198 = sbr.rel (0) target = $region77
    $region76: #{tpu_custom_call.1} parent=1 // pred_region
      %3199 = dma.done [#allocation4], 32
    $region77: #{tpu_custom_call.1} parent=1 // pred_fallthru
      _
    // Predicated region
    $region78: #{tpu_custom_call.1} parent=1 // pred_check
      _
    $region79: #{tpu_custom_call.1} parent=1 // pred_check_branch
      %3201 = sbr.rel (0) target = $region81
    $region80: #{tpu_custom_call.1} parent=1 // pred_region
      %3202 = dma.done [#allocation6], 32
    $region81: #{tpu_custom_call.1} parent=1 // pred_fallthru
      _
    // Predicated region
    $region82: #{tpu_custom_call.1} parent=1 // pred_check
      _
    $region83: #{tpu_custom_call.1} parent=1 // pred_check_branch
      %3204 = sbr.rel (0) target = $region85
    $region84: #{tpu_custom_call.1} parent=1 // pred_region
      %3205 = dma.done [#allocation6], 32
    $region85: #{tpu_custom_call.1} parent=1 // pred_fallthru
      _
    %3206 = vsyncpa [#allocation4], 1
    %3207 = vsyncpa [#allocation6], 1

</llo_original>
